<compile_context>
chip_gen: v7x
topology: tpu7x:2x2x1
jax: 0.10.0
libtpu: 0.0.40
codegen_flags: <defaults>
</compile_context>

<pallas_src>
import jax
import jax.numpy as jnp
from jax import lax
from jax.experimental import pallas as pl
from jax.experimental.pallas import tpu as pltpu

EPS = 1e-5  # nn.BatchNorm2d default eps


# ----------------------------------------------------------------------------
# shared depthwise 3x3 (valid, stride 1, groups=Cin), NO bias (see BN folding)
# ----------------------------------------------------------------------------
def _depthwise3x3(x, w_dw):
    # x    : (tN, H, W, Cin) f32
    # w_dw : (9, Cin)        row k = kh*3 + kw
    # ->     (tN, Ho, Wo, Cin)
    tN, H, W, Cin = x.shape
    Ho, Wo = H - 2, W - 2
    # Hoist the 3 W-window slices (W is the sublane axis); 3 copies instead of 9.
    xw = [x[:, :, dw:dw + Wo, :] for dw in range(3)]
    acc = jnp.zeros((tN, Ho, Wo, Cin), jnp.float32)
    for dh in range(3):
        for dw in range(3):
            k = dh * 3 + dw
            acc = acc + xw[dw][:, dh:dh + Ho, :, :] * w_dw[k:k + 1, :]
    return acc


def _tile_stats(t, inv_cnt_tile):
    # t: (tN, Ho, Wo, C) f32
    # -> (2, C): row 0 = per-channel sum, row 1 = per-channel sum of squared
    #            deviations from the TILE mean (numerically stable partials).
    s = jnp.sum(t, axis=(0, 1, 2), keepdims=True)[0, 0]          # (1, C)
    d = t - s * inv_cnt_tile                                      # center on tile mean
    ss = jnp.sum(d * d, axis=(0, 1, 2), keepdims=True)[0, 0]      # (1, C)
    return jnp.concatenate([s, ss], axis=0)                       # (2, C)


# ----------------------------------------------------------------------------
# pass 1: depthwise conv -> per-tile centered partial stats (for BN1)
# ----------------------------------------------------------------------------
def _make_dw_stats_kernel(inv_cnt_tile):
    def dw_stats_kernel(x_ref, w_dw_ref, stats_ref):
        acc = _depthwise3x3(x_ref[...], w_dw_ref[...])
        stats_ref[...] = _tile_stats(acc, inv_cnt_tile)[None]     # (1, 2, Cin)
    return dw_stats_kernel


# ----------------------------------------------------------------------------
# pass 2: depthwise conv + BN1(scale/shift) + ReLU + pointwise 1x1 conv
#         + per-tile centered partial stats of z (for BN2)
# ----------------------------------------------------------------------------
def _make_dwpw_kernel(use_mxu, inv_cnt_tile, z_dtype):
    def dwpw_kernel(x_ref, w_dw_ref, scale1_ref, shift1_ref, w_pw_ref,
                    z_ref, stats2_ref):
        acc = _depthwise3x3(x_ref[...], w_dw_ref[...])
        # BN1 folded to one multiply-add per element, then ReLU.
        y = jnp.maximum(acc * scale1_ref[...] + shift1_ref[...], 0.0)

        tN, Ho, Wo, Cin = y.shape
        Cout = w_pw_ref.shape[-1]
        if use_mxu:
            # MXU path: bf16 inputs, f32 accumulation (review opts #1/#2).
            y2 = y.reshape(tN * Ho * Wo, Cin).astype(jnp.bfloat16)
            w2 = w_pw_ref[...].astype(jnp.bfloat16)
            z2 = jnp.dot(y2, w2, preferred_element_type=jnp.float32)
            z = z2.reshape(tN, Ho, Wo, Cout)
        else:
            # Tiny channel counts: VPU broadcast multiply-adds.
            w_pw = w_pw_ref[...]
            z = jnp.zeros((tN, Ho, Wo, Cout), jnp.float32)
            for c in range(Cin):
                z = z + y[:, :, :, c:c + 1] * w_pw[c:c + 1, :]

        # BN2 partial stats computed from the f32 z before any down-cast.
        stats2_ref[...] = _tile_stats(z, inv_cnt_tile)[None]      # (1, 2, Cout)
        z_ref[...] = z.astype(z_dtype)
    return dwpw_kernel


# ----------------------------------------------------------------------------
# pass 3: apply BN2 (scale/shift) + ReLU
# ----------------------------------------------------------------------------
def bn2_relu_kernel(z_ref, scale2_ref, shift2_ref, o_ref):
    z = z_ref[...].astype(jnp.float32)
    o_ref[...] = jnp.maximum(z * scale2_ref[...] + shift2_ref[...], 0.0)


# ----------------------------------------------------------------------------
# helpers
# ----------------------------------------------------------------------------
def _vmem_capacity_bytes():
    try:
        return int(pltpu.get_tpu_info().vmem_capacity_bytes)
    except Exception:
        return 64 * 1024 * 1024  # conservative (v7x-sized) fallback


def _pick_block_n(N, x_bytes_per_sample, z_bytes_per_sample, block_budget):
    # pass-2 live bytes per sample: ~2x double-buffered (x, z, out) blocks plus
    # ~6x x-block of in-kernel temporaries (x tile, 3 W-window copies, acc, y).
    per_sample = 10 * x_bytes_per_sample + 6 * z_bytes_per_sample
    cap = max(1, block_budget // per_sample)
    tn = 1
    for d in range(1, N + 1):           # largest divisor of N that fits the cap
        if N % d == 0 and d <= cap:
            tn = d
    return tn


def _combine_stats(parts, cnt_tile, cnt_total):
    # parts: (T, 2, C) per-tile [sum, tile-mean-centered sumsq].
    # Chan's parallel-variance combine (avoids E[x^2]-E[x]^2 cancellation).
    sums = parts[:, 0, :]                                         # (T, C)
    css = parts[:, 1, :]                                          # (T, C)
    total = jnp.sum(sums, axis=0, keepdims=True)                  # (1, C)
    mean = total / cnt_total
    tile_mean = sums / cnt_tile                                   # (T, C)
    m2 = (jnp.sum(css, axis=0, keepdims=True)
          + jnp.sum(cnt_tile * (tile_mean - mean) ** 2, axis=0, keepdims=True))
    var = jnp.maximum(m2 / cnt_total, 0.0)
    return mean, var


# ----------------------------------------------------------------------------
# wrapper
# ----------------------------------------------------------------------------
def depthwise_pointwise_forward(x_in, params, block_n=None,
                                input_format="NCHW", output_format="NCHW",
                                z_dtype=jnp.float32):
    """PyTorch semantics: NCHW (N,Cin,H,W) f32 -> NCHW (N,Cout,H-2,W-2) f32.

    Set input_format/output_format to "NHWC" to keep activations NHWC
    end-to-end and drop both XLA layout transposes (review opt #7).
    """
    if input_format == "NCHW":
        x = jnp.transpose(x_in, (0, 2, 3, 1)).astype(jnp.float32)
    else:
        x = x_in.astype(jnp.float32)
    N, H, W, Cin = x.shape
    Cout = params["w_pw"].shape[1]
    Ho, Wo = H - 2, W - 2

    # ---- generation-aware tiling / VMEM budgeting ----------------------------
    vmem_cap = _vmem_capacity_bytes()
    if vmem_cap >= 128 * 1024 * 1024:          # v5e / v6e
        vmem_limit = 100 * 1024 * 1024
        block_budget = 64 * 1024 * 1024
    else:                                      # v7x (64 MiB physical VMEM)
        vmem_limit = 48 * 1024 * 1024
        block_budget = 24 * 1024 * 1024

    x_bytes = H * W * Cin * 4
    z_bytes = Ho * Wo * Cout * jnp.dtype(z_dtype).itemsize
    tN = _pick_block_n(N, x_bytes, z_bytes, block_budget) if block_n is None else block_n
    assert N % tN == 0
    T = N // tN
    grid = (T,)

    cnt_tile = float(tN * Ho * Wo)
    cnt_total = float(N * Ho * Wo)
    inv_cnt_tile = 1.0 / cnt_tile
    use_mxu = Cin >= 64     # MXU path needs enough contraction depth to pay off

    w_dw = params["w_dw"]
    w_pw = params["w_pw"]
    g1, b1 = params["g1"], params["b1"]
    g2, b2 = params["g2"], params["b2"]

    # Per-tile partial stats + per-tile output blocks -> every pass is purely
    # "parallel" (v7x megacore shardable, no accumulator revisits).
    cparams = pltpu.CompilerParams(
        dimension_semantics=("parallel",),
        vmem_limit_bytes=vmem_limit)

    x_spec = pl.BlockSpec((tN, H, W, Cin), lambda i: (i, 0, 0, 0))
    z_spec = pl.BlockSpec((tN, Ho, Wo, Cout), lambda i: (i, 0, 0, 0))
    wdw_spec = pl.BlockSpec((9, Cin), lambda i: (0, 0))
    wpw_spec = pl.BlockSpec((Cin, Cout), lambda i: (0, 0))
    vec_spec = lambda c: pl.BlockSpec((1, c), lambda i: (0, 0))
    stats_spec = lambda c: pl.BlockSpec((1, 2, c), lambda i: (i, 0, 0))

    # ---- pass 1: BN1 partial batch statistics --------------------------------
    stats1 = pl.pallas_call(
        _make_dw_stats_kernel(inv_cnt_tile),
        grid=grid,
        in_specs=[x_spec, wdw_spec],
        out_specs=stats_spec(Cin),
        out_shape=jax.ShapeDtypeStruct((T, 2, Cin), jnp.float32),
        compiler_params=cparams,
    )(x, w_dw)

    # Training-mode BatchNorm with batch stats makes the preceding conv bias a
    # no-op:  (a + b) - mean(a + b) == a - mean(a)   and   Var(a + b) == Var(a).
    # So b_dw / b_pw never touch the activations; each BN collapses to a single
    # per-channel scale & shift applied to the bias-free conv output.
    mean1, var1 = _combine_stats(stats1, cnt_tile, cnt_total)     # (1, Cin)
    scale1 = g1 * lax.rsqrt(var1 + EPS)
    shift1 = b1 - mean1 * scale1

    # ---- pass 2: fused dw-conv + BN1 + ReLU + 1x1 conv + BN2 partial stats ---
    z, stats2 = pl.pallas_call(
        _make_dwpw_kernel(use_mxu, inv_cnt_tile, z_dtype),
        grid=grid,
        in_specs=[x_spec, wdw_spec, vec_spec(Cin), vec_spec(Cin), wpw_spec],
        out_specs=[z_spec, stats_spec(Cout)],
        out_shape=[jax.ShapeDtypeStruct((N, Ho, Wo, Cout), z_dtype),
                   jax.ShapeDtypeStruct((T, 2, Cout), jnp.float32)],
        compiler_params=cparams,
    )(x, w_dw, scale1, shift1, w_pw)

    mean2, var2 = _combine_stats(stats2, cnt_tile, cnt_total)     # (1, Cout)
    scale2 = g2 * lax.rsqrt(var2 + EPS)
    shift2 = b2 - mean2 * scale2

    # ---- pass 3: apply BN2 + ReLU ---------------------------------------------
    out_nhwc = pl.pallas_call(
        bn2_relu_kernel,
        grid=grid,
        in_specs=[z_spec, vec_spec(Cout), vec_spec(Cout)],
        out_specs=z_spec,
        out_shape=jax.ShapeDtypeStruct((N, Ho, Wo, Cout), jnp.float32),
        compiler_params=cparams,
    )(z, scale2, shift2)

    if output_format == "NCHW":
        return jnp.transpose(out_nhwc, (0, 3, 1, 2))
    return out_nhwc


# ----------------------------------------------------------------------------
# parameters + pure-JAX reference
# ----------------------------------------------------------------------------
def make_params(key, in_channels, out_channels):
    k = jax.random.split(key, 6)
    # depthwise conv weight: PyTorch (Cin, 1, 3, 3) -> (3, 3, Cin) -> (9, Cin)
    w_dw_t = jax.random.normal(k[0], (in_channels, 1, 3, 3), jnp.float32) * 0.2
    w_dw = jnp.transpose(w_dw_t[:, 0, :, :], (1, 2, 0)).reshape(9, in_channels)
    b_dw = jax.random.normal(k[1], (1, in_channels), jnp.float32) * 0.1
    # pointwise conv weight: PyTorch (Cout, Cin, 1, 1) -> (Cin, Cout)
    w_pw_t = jax.random.normal(k[2], (out_channels, in_channels), jnp.float32) * 0.2
    w_pw = jnp.transpose(w_pw_t, (1, 0))
    b_pw = jax.random.normal(k[3], (1, out_channels), jnp.float32) * 0.1
    # BN affine params
    g1 = 1.0 + 0.1 * jax.random.normal(k[4], (1, in_channels), jnp.float32)
    b1 = jnp.zeros((1, in_channels), jnp.float32) + 0.05
    g2 = 1.0 + 0.1 * jax.random.normal(k[5], (1, out_channels), jnp.float32)
    b2 = jnp.zeros((1, out_channels), jnp.float32) - 0.05
    return dict(w_dw=w_dw, b_dw=b_dw, g1=g1, b1=b1,
                w_pw=w_pw, b_pw=b_pw, g2=g2, b2=b2)


def reference_forward(x_nchw, params):
    """Pure-JAX reference (same math as the PyTorch module, training-mode BN)."""
    x = jnp.transpose(x_nchw, (0, 2, 3, 1)).astype(jnp.float32)
    N, H, W, Cin = x.shape
    Ho, Wo = H - 2, W - 2
    acc = jnp.zeros((N, Ho, Wo, Cin), jnp.float32)
    for dh in range(3):
        for dw in range(3):
            acc = acc + x[:, dh:dh + Ho, dw:dw + Wo, :] * params["w_dw"][dh * 3 + dw]
    acc = acc + params["b_dw"]
    m1 = jnp.mean(acc, axis=(0, 1, 2), keepdims=True)
    v1 = jnp.mean((acc - m1) ** 2, axis=(0, 1, 2), keepdims=True)
    y = jnp.maximum((acc - m1) / jnp.sqrt(v1 + EPS) * params["g1"] + params["b1"], 0.0)
    z = jnp.dot(y.reshape(-1, Cin), params["w_pw"],
                precision=lax.Precision.HIGHEST) + params["b_pw"]
    m2 = jnp.mean(z, axis=0, keepdims=True)
    v2 = jnp.mean((z - m2) ** 2, axis=0, keepdims=True)
    z = jnp.maximum((z - m2) / jnp.sqrt(v2 + EPS) * params["g2"] + params["b2"], 0.0)
    Cout = params["w_pw"].shape[1]
    return jnp.transpose(z.reshape(N, Ho, Wo, Cout), (0, 3, 1, 2))


if __name__ == "__main__":
    key = jax.random.PRNGKey(0)
    kx, kp, kx2, kp2 = jax.random.split(key, 4)

    fwd = jax.jit(depthwise_pointwise_forward)

    # ---- small shape (VPU pointwise path), the module's toy config -----------
    N, Cin, H, W = 2, 4, 16, 16
    Cout = 8
    x = jax.random.normal(kx, (N, Cin, H, W), jnp.float32)
    params = make_params(kp, Cin, Cout)
    out = jax.block_until_ready(fwd(x, params))
    ref = reference_forward(x, params)
    assert out.shape == (N, Cout, H - 2, W - 2), out.shape
    assert jnp.allclose(out, ref, atol=1e-3, rtol=1e-3), "small-shape mismatch"

    # ---- production-ish channel count: exercises the MXU bf16 pointwise path --
    N2, Cin2, H2, W2, Cout2 = 2, 128, 18, 18, 128
    x2 = jax.random.normal(kx2, (N2, Cin2, H2, W2), jnp.float32)
    params2 = make_params(kp2, Cin2, Cout2)
    out2 = jax.block_until_ready(fwd(x2, params2))
    ref2 = reference_forward(x2, params2)
    assert out2.shape == (N2, Cout2, H2 - 2, W2 - 2), out2.shape
    # bf16 MXU inputs (f32 accumulation) -> looser tolerance on this path.
    assert jnp.allclose(out2, ref2, atol=3e-2, rtol=3e-2), "MXU-path mismatch"

    print("KERNEL_OK")
</pallas_src>

<mosaic_0001>
module attributes {stable_mosaic.version = 11 : i64} {
  func.func @dw_stats_kernel(%arg0: i32, %arg1: memref<2x16x16x4xf32, #tpu.memory_space<vmem>>, %arg2: memref<9x4xf32, #tpu.memory_space<vmem>>, %arg3: memref<1x2x4xf32, #tpu.memory_space<vmem>>) attributes {dimension_semantics = [#tpu.dimension_semantics<parallel>], iteration_bounds = array<i64: 1>, scalar_prefetch = 0 : i64, scratch_operands = 0 : i64, tpu.core_type = #tpu.core_type<tc>, window_params = [{transform_indices = @transform_0, window_bounds = array<i64: 2, 16, 16, 4>}, {pipeline_mode = #tpu.pipeline_mode<synchronous>, transform_indices = @transform_1, window_bounds = array<i64: 9, 4>}, {transform_indices = @transform_2, window_bounds = array<i64: 1, 2, 4>}]} {
    %c0 = arith.constant 0 : index
    %c0_0 = arith.constant 0 : index
    %c0_1 = arith.constant 0 : index
    %c0_2 = arith.constant 0 : index
    %0 = vector.load %arg1[%c0, %c0_0, %c0_1, %c0_2] : memref<2x16x16x4xf32, #tpu.memory_space<vmem>>, vector<2x16x16x4xf32>
    %c0_3 = arith.constant 0 : index
    %c0_4 = arith.constant 0 : index
    %1 = vector.load %arg2[%c0_3, %c0_4] : memref<9x4xf32, #tpu.memory_space<vmem>>, vector<9x4xf32>
    %2 = vector.extract_strided_slice %0 {offsets = [0, 0, 0, 0], sizes = [2, 16, 14, 4], strides = [1, 1, 1, 1]} : vector<2x16x16x4xf32> to vector<2x16x14x4xf32>
    %3 = vector.extract_strided_slice %0 {offsets = [0, 0, 1, 0], sizes = [2, 16, 14, 4], strides = [1, 1, 1, 1]} : vector<2x16x16x4xf32> to vector<2x16x14x4xf32>
    %4 = vector.extract_strided_slice %0 {offsets = [0, 0, 2, 0], sizes = [2, 16, 14, 4], strides = [1, 1, 1, 1]} : vector<2x16x16x4xf32> to vector<2x16x14x4xf32>
    %cst = arith.constant 0.000000e+00 : f32
    %5 = vector.broadcast %cst : f32 to vector<2x14x14x4xf32>
    %6 = vector.extract_strided_slice %2 {offsets = [0, 0, 0, 0], sizes = [2, 14, 14, 4], strides = [1, 1, 1, 1]} : vector<2x16x14x4xf32> to vector<2x14x14x4xf32>
    %7 = vector.extract_strided_slice %1 {offsets = [0, 0], sizes = [1, 4], strides = [1, 1]} : vector<9x4xf32> to vector<1x4xf32>
    %8 = vector.shape_cast %7 : vector<1x4xf32> to vector<1x1x1x4xf32>
    %9 = vector.broadcast %8 : vector<1x1x1x4xf32> to vector<2x14x14x4xf32>
    %10 = arith.mulf %6, %9 : vector<2x14x14x4xf32>
    %11 = arith.addf %5, %10 : vector<2x14x14x4xf32>
    %12 = vector.extract_strided_slice %3 {offsets = [0, 0, 0, 0], sizes = [2, 14, 14, 4], strides = [1, 1, 1, 1]} : vector<2x16x14x4xf32> to vector<2x14x14x4xf32>
    %13 = vector.extract_strided_slice %1 {offsets = [1, 0], sizes = [1, 4], strides = [1, 1]} : vector<9x4xf32> to vector<1x4xf32>
    %14 = vector.shape_cast %13 : vector<1x4xf32> to vector<1x1x1x4xf32>
    %15 = vector.broadcast %14 : vector<1x1x1x4xf32> to vector<2x14x14x4xf32>
    %16 = arith.mulf %12, %15 : vector<2x14x14x4xf32>
    %17 = arith.addf %11, %16 : vector<2x14x14x4xf32>
    %18 = vector.extract_strided_slice %4 {offsets = [0, 0, 0, 0], sizes = [2, 14, 14, 4], strides = [1, 1, 1, 1]} : vector<2x16x14x4xf32> to vector<2x14x14x4xf32>
    %19 = vector.extract_strided_slice %1 {offsets = [2, 0], sizes = [1, 4], strides = [1, 1]} : vector<9x4xf32> to vector<1x4xf32>
    %20 = vector.shape_cast %19 : vector<1x4xf32> to vector<1x1x1x4xf32>
    %21 = vector.broadcast %20 : vector<1x1x1x4xf32> to vector<2x14x14x4xf32>
    %22 = arith.mulf %18, %21 : vector<2x14x14x4xf32>
    %23 = arith.addf %17, %22 : vector<2x14x14x4xf32>
    %24 = vector.extract_strided_slice %2 {offsets = [0, 1, 0, 0], sizes = [2, 14, 14, 4], strides = [1, 1, 1, 1]} : vector<2x16x14x4xf32> to vector<2x14x14x4xf32>
    %25 = vector.extract_strided_slice %1 {offsets = [3, 0], sizes = [1, 4], strides = [1, 1]} : vector<9x4xf32> to vector<1x4xf32>
    %26 = vector.shape_cast %25 : vector<1x4xf32> to vector<1x1x1x4xf32>
    %27 = vector.broadcast %26 : vector<1x1x1x4xf32> to vector<2x14x14x4xf32>
    %28 = arith.mulf %24, %27 : vector<2x14x14x4xf32>
    %29 = arith.addf %23, %28 : vector<2x14x14x4xf32>
    %30 = vector.extract_strided_slice %3 {offsets = [0, 1, 0, 0], sizes = [2, 14, 14, 4], strides = [1, 1, 1, 1]} : vector<2x16x14x4xf32> to vector<2x14x14x4xf32>
    %31 = vector.extract_strided_slice %1 {offsets = [4, 0], sizes = [1, 4], strides = [1, 1]} : vector<9x4xf32> to vector<1x4xf32>
    %32 = vector.shape_cast %31 : vector<1x4xf32> to vector<1x1x1x4xf32>
    %33 = vector.broadcast %32 : vector<1x1x1x4xf32> to vector<2x14x14x4xf32>
    %34 = arith.mulf %30, %33 : vector<2x14x14x4xf32>
    %35 = arith.addf %29, %34 : vector<2x14x14x4xf32>
    %36 = vector.extract_strided_slice %4 {offsets = [0, 1, 0, 0], sizes = [2, 14, 14, 4], strides = [1, 1, 1, 1]} : vector<2x16x14x4xf32> to vector<2x14x14x4xf32>
    %37 = vector.extract_strided_slice %1 {offsets = [5, 0], sizes = [1, 4], strides = [1, 1]} : vector<9x4xf32> to vector<1x4xf32>
    %38 = vector.shape_cast %37 : vector<1x4xf32> to vector<1x1x1x4xf32>
    %39 = vector.broadcast %38 : vector<1x1x1x4xf32> to vector<2x14x14x4xf32>
    %40 = arith.mulf %36, %39 : vector<2x14x14x4xf32>
    %41 = arith.addf %35, %40 : vector<2x14x14x4xf32>
    %42 = vector.extract_strided_slice %2 {offsets = [0, 2, 0, 0], sizes = [2, 14, 14, 4], strides = [1, 1, 1, 1]} : vector<2x16x14x4xf32> to vector<2x14x14x4xf32>
    %43 = vector.extract_strided_slice %1 {offsets = [6, 0], sizes = [1, 4], strides = [1, 1]} : vector<9x4xf32> to vector<1x4xf32>
    %44 = vector.shape_cast %43 : vector<1x4xf32> to vector<1x1x1x4xf32>
    %45 = vector.broadcast %44 : vector<1x1x1x4xf32> to vector<2x14x14x4xf32>
    %46 = arith.mulf %42, %45 : vector<2x14x14x4xf32>
    %47 = arith.addf %41, %46 : vector<2x14x14x4xf32>
    %48 = vector.extract_strided_slice %3 {offsets = [0, 2, 0, 0], sizes = [2, 14, 14, 4], strides = [1, 1, 1, 1]} : vector<2x16x14x4xf32> to vector<2x14x14x4xf32>
    %49 = vector.extract_strided_slice %1 {offsets = [7, 0], sizes = [1, 4], strides = [1, 1]} : vector<9x4xf32> to vector<1x4xf32>
    %50 = vector.shape_cast %49 : vector<1x4xf32> to vector<1x1x1x4xf32>
    %51 = vector.broadcast %50 : vector<1x1x1x4xf32> to vector<2x14x14x4xf32>
    %52 = arith.mulf %48, %51 : vector<2x14x14x4xf32>
    %53 = arith.addf %47, %52 : vector<2x14x14x4xf32>
    %54 = vector.extract_strided_slice %4 {offsets = [0, 2, 0, 0], sizes = [2, 14, 14, 4], strides = [1, 1, 1, 1]} : vector<2x16x14x4xf32> to vector<2x14x14x4xf32>
    %55 = vector.extract_strided_slice %1 {offsets = [8, 0], sizes = [1, 4], strides = [1, 1]} : vector<9x4xf32> to vector<1x4xf32>
    %56 = vector.shape_cast %55 : vector<1x4xf32> to vector<1x1x1x4xf32>
    %57 = vector.broadcast %56 : vector<1x1x1x4xf32> to vector<2x14x14x4xf32>
    %58 = arith.mulf %54, %57 : vector<2x14x14x4xf32>
    %59 = arith.addf %53, %58 : vector<2x14x14x4xf32>
    %cst_5 = arith.constant dense<0.000000e+00> : vector<4xf32>
    %60 = vector.multi_reduction <add>, %59, %cst_5 [0, 1, 2] : vector<2x14x14x4xf32> to vector<4xf32>
    %61 = vector.shape_cast %60 : vector<4xf32> to vector<1x1x1x4xf32>
    %62 = vector.shape_cast %61 : vector<1x1x1x4xf32> to vector<1x4xf32>
    %cst_6 = arith.constant 0.00255102036 : f32
    %63 = vector.broadcast %cst_6 : f32 to vector<1x4xf32>
    %64 = arith.mulf %62, %63 : vector<1x4xf32>
    %65 = vector.shape_cast %64 : vector<1x4xf32> to vector<1x1x1x4xf32>
    %66 = vector.broadcast %65 : vector<1x1x1x4xf32> to vector<2x14x14x4xf32>
    %67 = arith.subf %59, %66 : vector<2x14x14x4xf32>
    %68 = arith.mulf %67, %67 : vector<2x14x14x4xf32>
    %cst_7 = arith.constant dense<0.000000e+00> : vector<4xf32>
    %69 = vector.multi_reduction <add>, %68, %cst_7 [0, 1, 2] : vector<2x14x14x4xf32> to vector<4xf32>
    %70 = vector.shape_cast %69 : vector<4xf32> to vector<1x1x1x4xf32>
    %71 = vector.shape_cast %70 : vector<1x1x1x4xf32> to vector<1x4xf32>
    %72 = tpu.concatenate %62, %71 in 0 : vector<1x4xf32>, vector<1x4xf32> -> vector<2x4xf32>
    %73 = vector.shape_cast %72 : vector<2x4xf32> to vector<1x2x4xf32>
    %c0_8 = arith.constant 0 : index
    %c0_9 = arith.constant 0 : index
    %c0_10 = arith.constant 0 : index
    %74 = vector.load %arg3[%c0_8, %c0_9, %c0_10] : memref<1x2x4xf32, #tpu.memory_space<vmem>>, vector<1x2x4xf32>
    tpu.vector_store %arg3[%c0_8, %c0_9, %c0_10], %73 {strides = array<i32>} : memref<1x2x4xf32, #tpu.memory_space<vmem>>, vector<1x2x4xf32>,
    return
  }
  func.func @transform_0(%arg0: i32) -> (i32, i32, i32, i32) {
    %c0_i32 = arith.constant 0 : i32
    %c0_i32_0 = arith.constant 0 : i32
    %c0_i32_1 = arith.constant 0 : i32
    %c0_i32_2 = arith.constant 0 : i32
    return %arg0, %c0_i32, %c0_i32_0, %c0_i32_1 : i32, i32, i32, i32
  }
  func.func @transform_1(%arg0: i32) -> (i32, i32) {
    %c0_i32 = arith.constant 0 : i32
    %c0_i32_0 = arith.constant 0 : i32
    %c0_i32_1 = arith.constant 0 : i32
    return %c0_i32, %c0_i32_0 : i32, i32
  }
  func.func @transform_2(%arg0: i32) -> (i32, i32, i32) {
    %c0_i32 = arith.constant 0 : i32
    %c0_i32_0 = arith.constant 0 : i32
    %c0_i32_1 = arith.constant 0 : i32
    return %arg0, %c0_i32, %c0_i32_0 : i32, i32, i32
  }
}

module attributes {stable_mosaic.version = 11 : i64} {
  func.func @bn2_relu_kernel(%arg0: i32, %arg1: memref<2x14x14x8xf32, #tpu.memory_space<vmem>>, %arg2: memref<1x8xf32, #tpu.memory_space<vmem>>, %arg3: memref<1x8xf32, #tpu.memory_space<vmem>>, %arg4: memref<2x14x14x8xf32, #tpu.memory_space<vmem>>) attributes {dimension_semantics = [#tpu.dimension_semantics<parallel>], iteration_bounds = array<i64: 1>, scalar_prefetch = 0 : i64, scratch_operands = 0 : i64, tpu.core_type = #tpu.core_type<tc>, window_params = [{transform_indices = @transform_0, window_bounds = array<i64: 2, 14, 14, 8>}, {pipeline_mode = #tpu.pipeline_mode<synchronous>, transform_indices = @transform_1, window_bounds = array<i64: 1, 8>}, {pipeline_mode = #tpu.pipeline_mode<synchronous>, transform_indices = @transform_2, window_bounds = array<i64: 1, 8>}, {transform_indices = @transform_3, window_bounds = array<i64: 2, 14, 14, 8>}]} {
    %c0 = arith.constant 0 : index
    %c0_0 = arith.constant 0 : index
    %c0_1 = arith.constant 0 : index
    %c0_2 = arith.constant 0 : index
    %0 = vector.load %arg1[%c0, %c0_0, %c0_1, %c0_2] : memref<2x14x14x8xf32, #tpu.memory_space<vmem>>, vector<2x14x14x8xf32>
    %c0_3 = arith.constant 0 : index
    %c0_4 = arith.constant 0 : index
    %1 = vector.load %arg2[%c0_3, %c0_4] : memref<1x8xf32, #tpu.memory_space<vmem>>, vector<1x8xf32>
    %2 = vector.shape_cast %1 : vector<1x8xf32> to vector<1x1x1x8xf32>
    %3 = vector.broadcast %2 : vector<1x1x1x8xf32> to vector<2x14x14x8xf32>
    %4 = arith.mulf %0, %3 : vector<2x14x14x8xf32>
    %c0_5 = arith.constant 0 : index
    %c0_6 = arith.constant 0 : index
    %5 = vector.load %arg3[%c0_5, %c0_6] : memref<1x8xf32, #tpu.memory_space<vmem>>, vector<1x8xf32>
    %6 = vector.shape_cast %5 : vector<1x8xf32> to vector<1x1x1x8xf32>
    %7 = vector.broadcast %6 : vector<1x1x1x8xf32> to vector<2x14x14x8xf32>
    %8 = arith.addf %4, %7 : vector<2x14x14x8xf32>
    %cst = arith.constant 0.000000e+00 : f32
    %9 = vector.broadcast %cst : f32 to vector<2x14x14x8xf32>
    %10 = arith.maximumf %8, %9 : vector<2x14x14x8xf32>
    %c0_7 = arith.constant 0 : index
    %c0_8 = arith.constant 0 : index
    %c0_9 = arith.constant 0 : index
    %c0_10 = arith.constant 0 : index
    %11 = vector.load %arg4[%c0_7, %c0_8, %c0_9, %c0_10] : memref<2x14x14x8xf32, #tpu.memory_space<vmem>>, vector<2x14x14x8xf32>
    tpu.vector_store %arg4[%c0_7, %c0_8, %c0_9, %c0_10], %10 {strides = array<i32>} : memref<2x14x14x8xf32, #tpu.memory_space<vmem>>, vector<2x14x14x8xf32>,
    return
  }
  func.func @transform_0(%arg0: i32) -> (i32, i32, i32, i32) {
    %c0_i32 = arith.constant 0 : i32
    %c0_i32_0 = arith.constant 0 : i32
    %c0_i32_1 = arith.constant 0 : i32
    %c0_i32_2 = arith.constant 0 : i32
    return %arg0, %c0_i32, %c0_i32_0, %c0_i32_1 : i32, i32, i32, i32
  }
  func.func @transform_1(%arg0: i32) -> (i32, i32) {
    %c0_i32 = arith.constant 0 : i32
    %c0_i32_0 = arith.constant 0 : i32
    %c0_i32_1 = arith.constant 0 : i32
    return %c0_i32, %c0_i32_0 : i32, i32
  }
  func.func @transform_2(%arg0: i32) -> (i32, i32) {
    %c0_i32 = arith.constant 0 : i32
    %c0_i32_0 = arith.constant 0 : i32
    %c0_i32_1 = arith.constant 0 : i32
    return %c0_i32, %c0_i32_0 : i32, i32
  }
  func.func @transform_3(%arg0: i32) -> (i32, i32, i32, i32) {
    %c0_i32 = arith.constant 0 : i32
    %c0_i32_0 = arith.constant 0 : i32
    %c0_i32_1 = arith.constant 0 : i32
    %c0_i32_2 = arith.constant 0 : i32
    return %arg0, %c0_i32, %c0_i32_0, %c0_i32_1 : i32, i32, i32, i32
  }
}

module attributes {stable_mosaic.version = 11 : i64} {
  func.func @dwpw_kernel(%arg0: i32, %arg1: memref<2x16x16x4xf32, #tpu.memory_space<vmem>>, %arg2: memref<9x4xf32, #tpu.memory_space<vmem>>, %arg3: memref<1x4xf32, #tpu.memory_space<vmem>>, %arg4: memref<1x4xf32, #tpu.memory_space<vmem>>, %arg5: memref<4x8xf32, #tpu.memory_space<vmem>>, %arg6: memref<2x14x14x8xf32, #tpu.memory_space<vmem>>, %arg7: memref<1x2x8xf32, #tpu.memory_space<vmem>>) attributes {dimension_semantics = [#tpu.dimension_semantics<parallel>], iteration_bounds = array<i64: 1>, scalar_prefetch = 0 : i64, scratch_operands = 0 : i64, tpu.core_type = #tpu.core_type<tc>, window_params = [{transform_indices = @transform_0, window_bounds = array<i64: 2, 16, 16, 4>}, {pipeline_mode = #tpu.pipeline_mode<synchronous>, transform_indices = @transform_1, window_bounds = array<i64: 9, 4>}, {pipeline_mode = #tpu.pipeline_mode<synchronous>, transform_indices = @transform_2, window_bounds = array<i64: 1, 4>}, {pipeline_mode = #tpu.pipeline_mode<synchronous>, transform_indices = @transform_3, window_bounds = array<i64: 1, 4>}, {pipeline_mode = #tpu.pipeline_mode<synchronous>, transform_indices = @transform_4, window_bounds = array<i64: 4, 8>}, {transform_indices = @transform_5, window_bounds = array<i64: 2, 14, 14, 8>}, {transform_indices = @transform_6, window_bounds = array<i64: 1, 2, 8>}]} {
    %c0 = arith.constant 0 : index
    %c0_0 = arith.constant 0 : index
    %c0_1 = arith.constant 0 : index
    %c0_2 = arith.constant 0 : index
    %0 = vector.load %arg1[%c0, %c0_0, %c0_1, %c0_2] : memref<2x16x16x4xf32, #tpu.memory_space<vmem>>, vector<2x16x16x4xf32>
    %c0_3 = arith.constant 0 : index
    %c0_4 = arith.constant 0 : index
    %1 = vector.load %arg2[%c0_3, %c0_4] : memref<9x4xf32, #tpu.memory_space<vmem>>, vector<9x4xf32>
    %2 = vector.extract_strided_slice %0 {offsets = [0, 0, 0, 0], sizes = [2, 16, 14, 4], strides = [1, 1, 1, 1]} : vector<2x16x16x4xf32> to vector<2x16x14x4xf32>
    %3 = vector.extract_strided_slice %0 {offsets = [0, 0, 1, 0], sizes = [2, 16, 14, 4], strides = [1, 1, 1, 1]} : vector<2x16x16x4xf32> to vector<2x16x14x4xf32>
    %4 = vector.extract_strided_slice %0 {offsets = [0, 0, 2, 0], sizes = [2, 16, 14, 4], strides = [1, 1, 1, 1]} : vector<2x16x16x4xf32> to vector<2x16x14x4xf32>
    %cst = arith.constant 0.000000e+00 : f32
    %5 = vector.broadcast %cst : f32 to vector<2x14x14x4xf32>
    %6 = vector.extract_strided_slice %2 {offsets = [0, 0, 0, 0], sizes = [2, 14, 14, 4], strides = [1, 1, 1, 1]} : vector<2x16x14x4xf32> to vector<2x14x14x4xf32>
    %7 = vector.extract_strided_slice %1 {offsets = [0, 0], sizes = [1, 4], strides = [1, 1]} : vector<9x4xf32> to vector<1x4xf32>
    %8 = vector.shape_cast %7 : vector<1x4xf32> to vector<1x1x1x4xf32>
    %9 = vector.broadcast %8 : vector<1x1x1x4xf32> to vector<2x14x14x4xf32>
    %10 = arith.mulf %6, %9 : vector<2x14x14x4xf32>
    %11 = arith.addf %5, %10 : vector<2x14x14x4xf32>
    %12 = vector.extract_strided_slice %3 {offsets = [0, 0, 0, 0], sizes = [2, 14, 14, 4], strides = [1, 1, 1, 1]} : vector<2x16x14x4xf32> to vector<2x14x14x4xf32>
    %13 = vector.extract_strided_slice %1 {offsets = [1, 0], sizes = [1, 4], strides = [1, 1]} : vector<9x4xf32> to vector<1x4xf32>
    %14 = vector.shape_cast %13 : vector<1x4xf32> to vector<1x1x1x4xf32>
    %15 = vector.broadcast %14 : vector<1x1x1x4xf32> to vector<2x14x14x4xf32>
    %16 = arith.mulf %12, %15 : vector<2x14x14x4xf32>
    %17 = arith.addf %11, %16 : vector<2x14x14x4xf32>
    %18 = vector.extract_strided_slice %4 {offsets = [0, 0, 0, 0], sizes = [2, 14, 14, 4], strides = [1, 1, 1, 1]} : vector<2x16x14x4xf32> to vector<2x14x14x4xf32>
    %19 = vector.extract_strided_slice %1 {offsets = [2, 0], sizes = [1, 4], strides = [1, 1]} : vector<9x4xf32> to vector<1x4xf32>
    %20 = vector.shape_cast %19 : vector<1x4xf32> to vector<1x1x1x4xf32>
    %21 = vector.broadcast %20 : vector<1x1x1x4xf32> to vector<2x14x14x4xf32>
    %22 = arith.mulf %18, %21 : vector<2x14x14x4xf32>
    %23 = arith.addf %17, %22 : vector<2x14x14x4xf32>
    %24 = vector.extract_strided_slice %2 {offsets = [0, 1, 0, 0], sizes = [2, 14, 14, 4], strides = [1, 1, 1, 1]} : vector<2x16x14x4xf32> to vector<2x14x14x4xf32>
    %25 = vector.extract_strided_slice %1 {offsets = [3, 0], sizes = [1, 4], strides = [1, 1]} : vector<9x4xf32> to vector<1x4xf32>
    %26 = vector.shape_cast %25 : vector<1x4xf32> to vector<1x1x1x4xf32>
    %27 = vector.broadcast %26 : vector<1x1x1x4xf32> to vector<2x14x14x4xf32>
    %28 = arith.mulf %24, %27 : vector<2x14x14x4xf32>
    %29 = arith.addf %23, %28 : vector<2x14x14x4xf32>
    %30 = vector.extract_strided_slice %3 {offsets = [0, 1, 0, 0], sizes = [2, 14, 14, 4], strides = [1, 1, 1, 1]} : vector<2x16x14x4xf32> to vector<2x14x14x4xf32>
    %31 = vector.extract_strided_slice %1 {offsets = [4, 0], sizes = [1, 4], strides = [1, 1]} : vector<9x4xf32> to vector<1x4xf32>
    %32 = vector.shape_cast %31 : vector<1x4xf32> to vector<1x1x1x4xf32>
    %33 = vector.broadcast %32 : vector<1x1x1x4xf32> to vector<2x14x14x4xf32>
    %34 = arith.mulf %30, %33 : vector<2x14x14x4xf32>
    %35 = arith.addf %29, %34 : vector<2x14x14x4xf32>
    %36 = vector.extract_strided_slice %4 {offsets = [0, 1, 0, 0], sizes = [2, 14, 14, 4], strides = [1, 1, 1, 1]} : vector<2x16x14x4xf32> to vector<2x14x14x4xf32>
    %37 = vector.extract_strided_slice %1 {offsets = [5, 0], sizes = [1, 4], strides = [1, 1]} : vector<9x4xf32> to vector<1x4xf32>
    %38 = vector.shape_cast %37 : vector<1x4xf32> to vector<1x1x1x4xf32>
    %39 = vector.broadcast %38 : vector<1x1x1x4xf32> to vector<2x14x14x4xf32>
    %40 = arith.mulf %36, %39 : vector<2x14x14x4xf32>
    %41 = arith.addf %35, %40 : vector<2x14x14x4xf32>
    %42 = vector.extract_strided_slice %2 {offsets = [0, 2, 0, 0], sizes = [2, 14, 14, 4], strides = [1, 1, 1, 1]} : vector<2x16x14x4xf32> to vector<2x14x14x4xf32>
    %43 = vector.extract_strided_slice %1 {offsets = [6, 0], sizes = [1, 4], strides = [1, 1]} : vector<9x4xf32> to vector<1x4xf32>
    %44 = vector.shape_cast %43 : vector<1x4xf32> to vector<1x1x1x4xf32>
    %45 = vector.broadcast %44 : vector<1x1x1x4xf32> to vector<2x14x14x4xf32>
    %46 = arith.mulf %42, %45 : vector<2x14x14x4xf32>
    %47 = arith.addf %41, %46 : vector<2x14x14x4xf32>
    %48 = vector.extract_strided_slice %3 {offsets = [0, 2, 0, 0], sizes = [2, 14, 14, 4], strides = [1, 1, 1, 1]} : vector<2x16x14x4xf32> to vector<2x14x14x4xf32>
    %49 = vector.extract_strided_slice %1 {offsets = [7, 0], sizes = [1, 4], strides = [1, 1]} : vector<9x4xf32> to vector<1x4xf32>
    %50 = vector.shape_cast %49 : vector<1x4xf32> to vector<1x1x1x4xf32>
    %51 = vector.broadcast %50 : vector<1x1x1x4xf32> to vector<2x14x14x4xf32>
    %52 = arith.mulf %48, %51 : vector<2x14x14x4xf32>
    %53 = arith.addf %47, %52 : vector<2x14x14x4xf32>
    %54 = vector.extract_strided_slice %4 {offsets = [0, 2, 0, 0], sizes = [2, 14, 14, 4], strides = [1, 1, 1, 1]} : vector<2x16x14x4xf32> to vector<2x14x14x4xf32>
    %55 = vector.extract_strided_slice %1 {offsets = [8, 0], sizes = [1, 4], strides = [1, 1]} : vector<9x4xf32> to vector<1x4xf32>
    %56 = vector.shape_cast %55 : vector<1x4xf32> to vector<1x1x1x4xf32>
    %57 = vector.broadcast %56 : vector<1x1x1x4xf32> to vector<2x14x14x4xf32>
    %58 = arith.mulf %54, %57 : vector<2x14x14x4xf32>
    %59 = arith.addf %53, %58 : vector<2x14x14x4xf32>
    %c0_5 = arith.constant 0 : index
    %c0_6 = arith.constant 0 : index
    %60 = vector.load %arg3[%c0_5, %c0_6] : memref<1x4xf32, #tpu.memory_space<vmem>>, vector<1x4xf32>
    %61 = vector.shape_cast %60 : vector<1x4xf32> to vector<1x1x1x4xf32>
    %62 = vector.broadcast %61 : vector<1x1x1x4xf32> to vector<2x14x14x4xf32>
    %63 = arith.mulf %59, %62 : vector<2x14x14x4xf32>
    %c0_7 = arith.constant 0 : index
    %c0_8 = arith.constant 0 : index
    %64 = vector.load %arg4[%c0_7, %c0_8] : memref<1x4xf32, #tpu.memory_space<vmem>>, vector<1x4xf32>
    %65 = vector.shape_cast %64 : vector<1x4xf32> to vector<1x1x1x4xf32>
    %66 = vector.broadcast %65 : vector<1x1x1x4xf32> to vector<2x14x14x4xf32>
    %67 = arith.addf %63, %66 : vector<2x14x14x4xf32>
    %cst_9 = arith.constant 0.000000e+00 : f32
    %68 = vector.broadcast %cst_9 : f32 to vector<2x14x14x4xf32>
    %69 = arith.maximumf %67, %68 : vector<2x14x14x4xf32>
    %c0_10 = arith.constant 0 : index
    %c0_11 = arith.constant 0 : index
    %70 = vector.load %arg5[%c0_10, %c0_11] : memref<4x8xf32, #tpu.memory_space<vmem>>, vector<4x8xf32>
    %cst_12 = arith.constant 0.000000e+00 : f32
    %71 = vector.broadcast %cst_12 : f32 to vector<2x14x14x8xf32>
    %72 = vector.extract_strided_slice %69 {offsets = [0, 0, 0, 0], sizes = [2, 14, 14, 1], strides = [1, 1, 1, 1]} : vector<2x14x14x4xf32> to vector<2x14x14x1xf32>
    %73 = vector.extract_strided_slice %70 {offsets = [0, 0], sizes = [1, 8], strides = [1, 1]} : vector<4x8xf32> to vector<1x8xf32>
    %74 = vector.shape_cast %73 : vector<1x8xf32> to vector<1x1x1x8xf32>
    %75 = vector.broadcast %72 : vector<2x14x14x1xf32> to vector<2x14x14x8xf32>
    %76 = vector.broadcast %74 : vector<1x1x1x8xf32> to vector<2x14x14x8xf32>
    %77 = arith.mulf %75, %76 : vector<2x14x14x8xf32>
    %78 = arith.addf %71, %77 : vector<2x14x14x8xf32>
    %79 = vector.extract_strided_slice %69 {offsets = [0, 0, 0, 1], sizes = [2, 14, 14, 1], strides = [1, 1, 1, 1]} : vector<2x14x14x4xf32> to vector<2x14x14x1xf32>
    %80 = vector.extract_strided_slice %70 {offsets = [1, 0], sizes = [1, 8], strides = [1, 1]} : vector<4x8xf32> to vector<1x8xf32>
    %81 = vector.shape_cast %80 : vector<1x8xf32> to vector<1x1x1x8xf32>
    %82 = vector.broadcast %79 : vector<2x14x14x1xf32> to vector<2x14x14x8xf32>
    %83 = vector.broadcast %81 : vector<1x1x1x8xf32> to vector<2x14x14x8xf32>
    %84 = arith.mulf %82, %83 : vector<2x14x14x8xf32>
    %85 = arith.addf %78, %84 : vector<2x14x14x8xf32>
    %86 = vector.extract_strided_slice %69 {offsets = [0, 0, 0, 2], sizes = [2, 14, 14, 1], strides = [1, 1, 1, 1]} : vector<2x14x14x4xf32> to vector<2x14x14x1xf32>
    %87 = vector.extract_strided_slice %70 {offsets = [2, 0], sizes = [1, 8], strides = [1, 1]} : vector<4x8xf32> to vector<1x8xf32>
    %88 = vector.shape_cast %87 : vector<1x8xf32> to vector<1x1x1x8xf32>
    %89 = vector.broadcast %86 : vector<2x14x14x1xf32> to vector<2x14x14x8xf32>
    %90 = vector.broadcast %88 : vector<1x1x1x8xf32> to vector<2x14x14x8xf32>
    %91 = arith.mulf %89, %90 : vector<2x14x14x8xf32>
    %92 = arith.addf %85, %91 : vector<2x14x14x8xf32>
    %93 = vector.extract_strided_slice %69 {offsets = [0, 0, 0, 3], sizes = [2, 14, 14, 1], strides = [1, 1, 1, 1]} : vector<2x14x14x4xf32> to vector<2x14x14x1xf32>
    %94 = vector.extract_strided_slice %70 {offsets = [3, 0], sizes = [1, 8], strides = [1, 1]} : vector<4x8xf32> to vector<1x8xf32>
    %95 = vector.shape_cast %94 : vector<1x8xf32> to vector<1x1x1x8xf32>
    %96 = vector.broadcast %93 : vector<2x14x14x1xf32> to vector<2x14x14x8xf32>
    %97 = vector.broadcast %95 : vector<1x1x1x8xf32> to vector<2x14x14x8xf32>
    %98 = arith.mulf %96, %97 : vector<2x14x14x8xf32>
    %99 = arith.addf %92, %98 : vector<2x14x14x8xf32>
    %cst_13 = arith.constant dense<0.000000e+00> : vector<8xf32>
    %100 = vector.multi_reduction <add>, %99, %cst_13 [0, 1, 2] : vector<2x14x14x8xf32> to vector<8xf32>
    %101 = vector.shape_cast %100 : vector<8xf32> to vector<1x1x1x8xf32>
    %102 = vector.shape_cast %101 : vector<1x1x1x8xf32> to vector<1x8xf32>
    %cst_14 = arith.constant 0.00255102036 : f32
    %103 = vector.broadcast %cst_14 : f32 to vector<1x8xf32>
    %104 = arith.mulf %102, %103 : vector<1x8xf32>
    %105 = vector.shape_cast %104 : vector<1x8xf32> to vector<1x1x1x8xf32>
    %106 = vector.broadcast %105 : vector<1x1x1x8xf32> to vector<2x14x14x8xf32>
    %107 = arith.subf %99, %106 : vector<2x14x14x8xf32>
    %108 = arith.mulf %107, %107 : vector<2x14x14x8xf32>
    %cst_15 = arith.constant dense<0.000000e+00> : vector<8xf32>
    %109 = vector.multi_reduction <add>, %108, %cst_15 [0, 1, 2] : vector<2x14x14x8xf32> to vector<8xf32>
    %110 = vector.shape_cast %109 : vector<8xf32> to vector<1x1x1x8xf32>
    %111 = vector.shape_cast %110 : vector<1x1x1x8xf32> to vector<1x8xf32>
    %112 = tpu.concatenate %102, %111 in 0 : vector<1x8xf32>, vector<1x8xf32> -> vector<2x8xf32>
    %113 = vector.shape_cast %112 : vector<2x8xf32> to vector<1x2x8xf32>
    %c0_16 = arith.constant 0 : index
    %c0_17 = arith.constant 0 : index
    %c0_18 = arith.constant 0 : index
    %114 = vector.load %arg7[%c0_16, %c0_17, %c0_18] : memref<1x2x8xf32, #tpu.memory_space<vmem>>, vector<1x2x8xf32>
    tpu.vector_store %arg7[%c0_16, %c0_17, %c0_18], %113 {strides = array<i32>} : memref<1x2x8xf32, #tpu.memory_space<vmem>>, vector<1x2x8xf32>,
    %c0_19 = arith.constant 0 : index
    %c0_20 = arith.constant 0 : index
    %c0_21 = arith.constant 0 : index
    %c0_22 = arith.constant 0 : index
    %115 = vector.load %arg6[%c0_19, %c0_20, %c0_21, %c0_22] : memref<2x14x14x8xf32, #tpu.memory_space<vmem>>, vector<2x14x14x8xf32>
    tpu.vector_store %arg6[%c0_19, %c0_20, %c0_21, %c0_22], %99 {strides = array<i32>} : memref<2x14x14x8xf32, #tpu.memory_space<vmem>>, vector<2x14x14x8xf32>,
    return
  }
  func.func @transform_0(%arg0: i32) -> (i32, i32, i32, i32) {
    %c0_i32 = arith.constant 0 : i32
    %c0_i32_0 = arith.constant 0 : i32
    %c0_i32_1 = arith.constant 0 : i32
    %c0_i32_2 = arith.constant 0 : i32
    return %arg0, %c0_i32, %c0_i32_0, %c0_i32_1 : i32, i32, i32, i32
  }
  func.func @transform_1(%arg0: i32) -> (i32, i32) {
    %c0_i32 = arith.constant 0 : i32
    %c0_i32_0 = arith.constant 0 : i32
    %c0_i32_1 = arith.constant 0 : i32
    return %c0_i32, %c0_i32_0 : i32, i32
  }
  func.func @transform_2(%arg0: i32) -> (i32, i32) {
    %c0_i32 = arith.constant 0 : i32
    %c0_i32_0 = arith.constant 0 : i32
    %c0_i32_1 = arith.constant 0 : i32
    return %c0_i32, %c0_i32_0 : i32, i32
  }
  func.func @transform_3(%arg0: i32) -> (i32, i32) {
    %c0_i32 = arith.constant 0 : i32
    %c0_i32_0 = arith.constant 0 : i32
    %c0_i32_1 = arith.constant 0 : i32
    return %c0_i32, %c0_i32_0 : i32, i32
  }
  func.func @transform_4(%arg0: i32) -> (i32, i32) {
    %c0_i32 = arith.constant 0 : i32
    %c0_i32_0 = arith.constant 0 : i32
    %c0_i32_1 = arith.constant 0 : i32
    return %c0_i32, %c0_i32_0 : i32, i32
  }
  func.func @transform_5(%arg0: i32) -> (i32, i32, i32, i32) {
    %c0_i32 = arith.constant 0 : i32
    %c0_i32_0 = arith.constant 0 : i32
    %c0_i32_1 = arith.constant 0 : i32
    %c0_i32_2 = arith.constant 0 : i32
    return %arg0, %c0_i32, %c0_i32_0, %c0_i32_1 : i32, i32, i32, i32
  }
  func.func @transform_6(%arg0: i32) -> (i32, i32, i32) {
    %c0_i32 = arith.constant 0 : i32
    %c0_i32_0 = arith.constant 0 : i32
    %c0_i32_1 = arith.constant 0 : i32
    return %arg0, %c0_i32, %c0_i32_0 : i32, i32, i32
  }
}

</mosaic_0001>

<llo_original>
// kernel: depthwise_pointwise_forward.5
$region0: #{depthwise_pointwise_forward.5}
  #allocation0 [shape = 'u32[]', space=smem, size = 0x4, offset = 0x4, fixed_abs, tag = 'smem constant byte address 0x4 - core index']
  #allocation1 [shape = 'u32[144,128]{1,0:T(1,128)}', space=vmem, size = 0x12000, scoped, tag = 'internal scratch']
  %s0 = inlined_call_operand.vmem [shape: f32[2,14,14,8], index: 0, kind: input, shape index: {}]
  %s1 = inlined_call_operand.vmem [shape: f32[1,8], index: 1, kind: input, shape index: {}]
  %s2 = inlined_call_operand.vmem [shape: f32[1,8], index: 2, kind: input, shape index: {}]
  %s3 = inlined_call_operand.vmem [shape: f32[2,14,14,8], index: 3, kind: output, shape index: {}]
  %s4 = sld [smem:[#allocation0]]
  $region22: #{depthwise_pointwise_forward.5} parent=0
    _
  %s6 = ssub.s32 1, %s4
  %s7 = scalar_select 0, %s6, %s4
  // Predicated region
  $region2: #{depthwise_pointwise_forward.5} parent=0 // pred_check
    _
  $region3: #{depthwise_pointwise_forward.5} parent=0 // pred_check_branch
    %9 = sbr.rel (0) target = $region5
  $region4: #{depthwise_pointwise_forward.5} parent=0 // pred_region
    _
  $region5: #{depthwise_pointwise_forward.5} parent=0 // pred_fallthru
    _
  // Predicated region
  $region6: #{depthwise_pointwise_forward.5} parent=0 // pred_check
    _
  $region7: #{depthwise_pointwise_forward.5} parent=0 // pred_check_branch
    %11 = sbr.rel (0) target = $region9
  $region8: #{depthwise_pointwise_forward.5} parent=0 // pred_region
    _
  $region9: #{depthwise_pointwise_forward.5} parent=0 // pred_fallthru
    _
  // Predicated region
  $region10: #{depthwise_pointwise_forward.5} parent=0 // pred_check
    _
  $region11: #{depthwise_pointwise_forward.5} parent=0 // pred_check_branch
    %13 = sbr.rel (0) target = $region13
  $region12: #{depthwise_pointwise_forward.5} parent=0 // pred_region
    _
  $region13: #{depthwise_pointwise_forward.5} parent=0 // pred_fallthru
    _
  %v14 = vld [vmem:[%s0] sm:$0xff]
  %v15 = vld [vmem:[%s0 + $0x8] sm:$0x3f]
  %v16 = vld [vmem:[%s0 + $0x10] sm:$0xff]
  %v17 = vld [vmem:[%s0 + $0x18] sm:$0x3f]
  %v18 = vld [vmem:[%s0 + $0x20] sm:$0xff]
  %v19 = vld [vmem:[%s0 + $0x28] sm:$0x3f]
  %v20 = vld [vmem:[%s0 + $0x30] sm:$0xff]
  %v21 = vld [vmem:[%s0 + $0x38] sm:$0x3f]
  %v22 = vld [vmem:[%s0 + $0x40] sm:$0xff]
  %v23 = vld [vmem:[%s0 + $0x48] sm:$0x3f]
  %v24 = vld [vmem:[%s0 + $0x50] sm:$0xff]
  %v25 = vld [vmem:[%s0 + $0x58] sm:$0x3f]
  %v26 = vld [vmem:[%s0 + $0x60] sm:$0xff]
  %v27 = vld [vmem:[%s0 + $0x68] sm:$0x3f]
  %v28 = vld [vmem:[%s0 + $0x70] sm:$0xff]
  %v29 = vld [vmem:[%s0 + $0x78] sm:$0x3f]
  %v30 = vld [vmem:[%s0 + $0x80] sm:$0xff]
  %v31 = vld [vmem:[%s0 + $0x88] sm:$0x3f]
  %v32 = vld [vmem:[%s0 + $0x90] sm:$0xff]
  %v33 = vld [vmem:[%s0 + $0x98] sm:$0x3f]
  %v34 = vld [vmem:[%s0 + $0xa0] sm:$0xff]
  %v35 = vld [vmem:[%s0 + $0xa8] sm:$0x3f]
  %v36 = vld [vmem:[%s0 + $0xb0] sm:$0xff]
  %v37 = vld [vmem:[%s0 + $0xb8] sm:$0x3f]
  %v38 = vld [vmem:[%s0 + $0xc0] sm:$0xff]
  %v39 = vld [vmem:[%s0 + $0xc8] sm:$0x3f]
  %v40 = vld [vmem:[%s0 + $0xd0] sm:$0xff]
  %v41 = vld [vmem:[%s0 + $0xd8] sm:$0x3f]
  %v42 = vld [vmem:[%s0 + $0xe0] sm:$0xff]
  %v43 = vld [vmem:[%s0 + $0xe8] sm:$0x3f]
  %v44 = vld [vmem:[%s0 + $0xf0] sm:$0xff]
  %v45 = vld [vmem:[%s0 + $0xf8] sm:$0x3f]
  %v46 = vld [vmem:[%s0 + $0x100] sm:$0xff]
  %v47 = vld [vmem:[%s0 + $0x108] sm:$0x3f]
  %v48 = vld [vmem:[%s0 + $0x110] sm:$0xff]
  %v49 = vld [vmem:[%s0 + $0x118] sm:$0x3f]
  %v50 = vld [vmem:[%s0 + $0x120] sm:$0xff]
  %v51 = vld [vmem:[%s0 + $0x128] sm:$0x3f]
  %v52 = vld [vmem:[%s0 + $0x130] sm:$0xff]
  %v53 = vld [vmem:[%s0 + $0x138] sm:$0x3f]
  %v54 = vld [vmem:[%s0 + $0x140] sm:$0xff]
  %v55 = vld [vmem:[%s0 + $0x148] sm:$0x3f]
  %v56 = vld [vmem:[%s0 + $0x150] sm:$0xff]
  %v57 = vld [vmem:[%s0 + $0x158] sm:$0x3f]
  %v58 = vld [vmem:[%s0 + $0x160] sm:$0xff]
  %v59 = vld [vmem:[%s0 + $0x168] sm:$0x3f]
  %v60 = vld [vmem:[%s0 + $0x170] sm:$0xff]
  %v61 = vld [vmem:[%s0 + $0x178] sm:$0x3f]
  %v62 = vld [vmem:[%s0 + $0x180] sm:$0xff]
  %v63 = vld [vmem:[%s0 + $0x188] sm:$0x3f]
  %v64 = vld [vmem:[%s0 + $0x190] sm:$0xff]
  %v65 = vld [vmem:[%s0 + $0x198] sm:$0x3f]
  %v66 = vld [vmem:[%s0 + $0x1a0] sm:$0xff]
  %v67 = vld [vmem:[%s0 + $0x1a8] sm:$0x3f]
  %v68 = vld [vmem:[%s0 + $0x1b0] sm:$0xff]
  %v69 = vld [vmem:[%s0 + $0x1b8] sm:$0x3f]
  %v70 = vld [vmem:[%s1] sm:$0x1]
  %v72 = vlaneseq
  %v73 = vshrl.u32 %v72, 7
  %v74 = vsub.s32 0, %v73
  %v75 = vrot.slane %v70, %v74
  %v77 = vmul.f32 %v14, %v75
  %v78 = vmul.f32 %v15, %v75
  %v79 = vmul.f32 %v16, %v75
  %v80 = vmul.f32 %v17, %v75
  %v81 = vmul.f32 %v18, %v75
  %v82 = vmul.f32 %v19, %v75
  %v83 = vmul.f32 %v20, %v75
  %v84 = vmul.f32 %v21, %v75
  %v85 = vmul.f32 %v22, %v75
  %v86 = vmul.f32 %v23, %v75
  %v87 = vmul.f32 %v24, %v75
  %v88 = vmul.f32 %v25, %v75
  %v89 = vmul.f32 %v26, %v75
  %v90 = vmul.f32 %v27, %v75
  %v91 = vmul.f32 %v28, %v75
  %v92 = vmul.f32 %v29, %v75
  %v93 = vmul.f32 %v30, %v75
  %v94 = vmul.f32 %v31, %v75
  %v95 = vmul.f32 %v32, %v75
  %v96 = vmul.f32 %v33, %v75
  %v97 = vmul.f32 %v34, %v75
  %v98 = vmul.f32 %v35, %v75
  %v99 = vmul.f32 %v36, %v75
  %v100 = vmul.f32 %v37, %v75
  %v101 = vmul.f32 %v38, %v75
  %v102 = vmul.f32 %v39, %v75
  %v103 = vmul.f32 %v40, %v75
  %v104 = vmul.f32 %v41, %v75
  %v105 = vmul.f32 %v42, %v75
  %v106 = vmul.f32 %v43, %v75
  %v107 = vmul.f32 %v44, %v75
  %v108 = vmul.f32 %v45, %v75
  %v109 = vmul.f32 %v46, %v75
  %v110 = vmul.f32 %v47, %v75
  %v111 = vmul.f32 %v48, %v75
  %v112 = vmul.f32 %v49, %v75
  %v113 = vmul.f32 %v50, %v75
  %v114 = vmul.f32 %v51, %v75
  %v115 = vmul.f32 %v52, %v75
  %v116 = vmul.f32 %v53, %v75
  %v117 = vmul.f32 %v54, %v75
  %v118 = vmul.f32 %v55, %v75
  %v119 = vmul.f32 %v56, %v75
  %v120 = vmul.f32 %v57, %v75
  %v121 = vmul.f32 %v58, %v75
  %v122 = vmul.f32 %v59, %v75
  %v123 = vmul.f32 %v60, %v75
  %v124 = vmul.f32 %v61, %v75
  %v125 = vmul.f32 %v62, %v75
  %v126 = vmul.f32 %v63, %v75
  %v127 = vmul.f32 %v64, %v75
  %v128 = vmul.f32 %v65, %v75
  %v129 = vmul.f32 %v66, %v75
  %v130 = vmul.f32 %v67, %v75
  %v131 = vmul.f32 %v68, %v75
  %v132 = vmul.f32 %v69, %v75
  %v133 = vld [vmem:[%s2] sm:$0x1]
  %v135 = vlaneseq
  %v136 = vshrl.u32 %v135, 7
  %v137 = vsub.s32 0, %v136
  %v138 = vrot.slane %v133, %v137
  %v140 = vadd.f32 %v77, %v138
  %v141 = vadd.f32 %v78, %v138
  %v142 = vadd.f32 %v79, %v138
  %v143 = vadd.f32 %v80, %v138
  %v144 = vadd.f32 %v81, %v138
  %v145 = vadd.f32 %v82, %v138
  %v146 = vadd.f32 %v83, %v138
  %v147 = vadd.f32 %v84, %v138
  %v148 = vadd.f32 %v85, %v138
  %v149 = vadd.f32 %v86, %v138
  %v150 = vadd.f32 %v87, %v138
  %v151 = vadd.f32 %v88, %v138
  %v152 = vadd.f32 %v89, %v138
  %v153 = vadd.f32 %v90, %v138
  %v154 = vadd.f32 %v91, %v138
  %v155 = vadd.f32 %v92, %v138
  %v156 = vadd.f32 %v93, %v138
  %v157 = vadd.f32 %v94, %v138
  %v158 = vadd.f32 %v95, %v138
  %v159 = vadd.f32 %v96, %v138
  %v160 = vadd.f32 %v97, %v138
  %v161 = vadd.f32 %v98, %v138
  %v162 = vadd.f32 %v99, %v138
  %v163 = vadd.f32 %v100, %v138
  %v164 = vadd.f32 %v101, %v138
  %v165 = vadd.f32 %v102, %v138
  %v166 = vadd.f32 %v103, %v138
  %v167 = vadd.f32 %v104, %v138
  %v168 = vadd.f32 %v105, %v138
  %v169 = vadd.f32 %v106, %v138
  %v170 = vadd.f32 %v107, %v138
  %v171 = vadd.f32 %v108, %v138
  %v172 = vadd.f32 %v109, %v138
  %v173 = vadd.f32 %v110, %v138
  %v174 = vadd.f32 %v111, %v138
  %v175 = vadd.f32 %v112, %v138
  %v176 = vadd.f32 %v113, %v138
  %v177 = vadd.f32 %v114, %v138
  %v178 = vadd.f32 %v115, %v138
  %v179 = vadd.f32 %v116, %v138
  %v180 = vadd.f32 %v117, %v138
  %v181 = vadd.f32 %v118, %v138
  %v182 = vadd.f32 %v119, %v138
  %v183 = vadd.f32 %v120, %v138
  %v184 = vadd.f32 %v121, %v138
  %v185 = vadd.f32 %v122, %v138
  %v186 = vadd.f32 %v123, %v138
  %v187 = vadd.f32 %v124, %v138
  %v188 = vadd.f32 %v125, %v138
  %v189 = vadd.f32 %v126, %v138
  %v190 = vadd.f32 %v127, %v138
  %v191 = vadd.f32 %v128, %v138
  %v192 = vadd.f32 %v129, %v138
  %v193 = vadd.f32 %v130, %v138
  %v194 = vadd.f32 %v131, %v138
  %v195 = vadd.f32 %v132, %v138
  %v196 = vmax.f32 %v140, 0.0
  %v197 = vmax.f32 %v141, 0.0
  %v198 = vmax.f32 %v142, 0.0
  %v199 = vmax.f32 %v143, 0.0
  %v200 = vmax.f32 %v144, 0.0
  %v201 = vmax.f32 %v145, 0.0
  %v202 = vmax.f32 %v146, 0.0
  %v203 = vmax.f32 %v147, 0.0
  %v204 = vmax.f32 %v148, 0.0
  %v205 = vmax.f32 %v149, 0.0
  %v206 = vmax.f32 %v150, 0.0
  %v207 = vmax.f32 %v151, 0.0
  %v208 = vmax.f32 %v152, 0.0
  %v209 = vmax.f32 %v153, 0.0
  %v210 = vmax.f32 %v154, 0.0
  %v211 = vmax.f32 %v155, 0.0
  %v212 = vmax.f32 %v156, 0.0
  %v213 = vmax.f32 %v157, 0.0
  %v214 = vmax.f32 %v158, 0.0
  %v215 = vmax.f32 %v159, 0.0
  %v216 = vmax.f32 %v160, 0.0
  %v217 = vmax.f32 %v161, 0.0
  %v218 = vmax.f32 %v162, 0.0
  %v219 = vmax.f32 %v163, 0.0
  %v220 = vmax.f32 %v164, 0.0
  %v221 = vmax.f32 %v165, 0.0
  %v222 = vmax.f32 %v166, 0.0
  %v223 = vmax.f32 %v167, 0.0
  %v224 = vmax.f32 %v168, 0.0
  %v225 = vmax.f32 %v169, 0.0
  %v226 = vmax.f32 %v170, 0.0
  %v227 = vmax.f32 %v171, 0.0
  %v228 = vmax.f32 %v172, 0.0
  %v229 = vmax.f32 %v173, 0.0
  %v230 = vmax.f32 %v174, 0.0
  %v231 = vmax.f32 %v175, 0.0
  %v232 = vmax.f32 %v176, 0.0
  %v233 = vmax.f32 %v177, 0.0
  %v234 = vmax.f32 %v178, 0.0
  %v235 = vmax.f32 %v179, 0.0
  %v236 = vmax.f32 %v180, 0.0
  %v237 = vmax.f32 %v181, 0.0
  %v238 = vmax.f32 %v182, 0.0
  %v239 = vmax.f32 %v183, 0.0
  %v240 = vmax.f32 %v184, 0.0
  %v241 = vmax.f32 %v185, 0.0
  %v242 = vmax.f32 %v186, 0.0
  %v243 = vmax.f32 %v187, 0.0
  %v244 = vmax.f32 %v188, 0.0
  %v245 = vmax.f32 %v189, 0.0
  %v246 = vmax.f32 %v190, 0.0
  %v247 = vmax.f32 %v191, 0.0
  %v248 = vmax.f32 %v192, 0.0
  %v249 = vmax.f32 %v193, 0.0
  %v250 = vmax.f32 %v194, 0.0
  %v251 = vmax.f32 %v195, 0.0
  %vm252 = vcmask 64512
  %253 = vst.msk [vmem:[%s3] sm:$0xff] %vm252, %v196
  %vm254 = vcmask 62464
  %255 = vst.msk [vmem:[%s3 + $0x8] sm:$0x3f] %vm254, %v197
  %256 = vst.msk [vmem:[%s3 + $0x10] sm:$0xff] %vm252, %v198
  %257 = vst.msk [vmem:[%s3 + $0x18] sm:$0x3f] %vm254, %v199
  %258 = vst.msk [vmem:[%s3 + $0x20] sm:$0xff] %vm252, %v200
  %259 = vst.msk [vmem:[%s3 + $0x28] sm:$0x3f] %vm254, %v201
  %260 = vst.msk [vmem:[%s3 + $0x30] sm:$0xff] %vm252, %v202
  %261 = vst.msk [vmem:[%s3 + $0x38] sm:$0x3f] %vm254, %v203
  %262 = vst.msk [vmem:[%s3 + $0x40] sm:$0xff] %vm252, %v204
  %263 = vst.msk [vmem:[%s3 + $0x48] sm:$0x3f] %vm254, %v205
  %264 = vst.msk [vmem:[%s3 + $0x50] sm:$0xff] %vm252, %v206
  %265 = vst.msk [vmem:[%s3 + $0x58] sm:$0x3f] %vm254, %v207
  %266 = vst.msk [vmem:[%s3 + $0x60] sm:$0xff] %vm252, %v208
  %267 = vst.msk [vmem:[%s3 + $0x68] sm:$0x3f] %vm254, %v209
  %268 = vst.msk [vmem:[%s3 + $0x70] sm:$0xff] %vm252, %v210
  %269 = vst.msk [vmem:[%s3 + $0x78] sm:$0x3f] %vm254, %v211
  %270 = vst.msk [vmem:[%s3 + $0x80] sm:$0xff] %vm252, %v212
  %271 = vst.msk [vmem:[%s3 + $0x88] sm:$0x3f] %vm254, %v213
  %272 = vst.msk [vmem:[%s3 + $0x90] sm:$0xff] %vm252, %v214
  %273 = vst.msk [vmem:[%s3 + $0x98] sm:$0x3f] %vm254, %v215
  %274 = vst.msk [vmem:[%s3 + $0xa0] sm:$0xff] %vm252, %v216
  %275 = vst.msk [vmem:[%s3 + $0xa8] sm:$0x3f] %vm254, %v217
  %276 = vst.msk [vmem:[%s3 + $0xb0] sm:$0xff] %vm252, %v218
  %277 = vst.msk [vmem:[%s3 + $0xb8] sm:$0x3f] %vm254, %v219
  %278 = vst.msk [vmem:[%s3 + $0xc0] sm:$0xff] %vm252, %v220
  %279 = vst.msk [vmem:[%s3 + $0xc8] sm:$0x3f] %vm254, %v221
  %280 = vst.msk [vmem:[%s3 + $0xd0] sm:$0xff] %vm252, %v222
  %281 = vst.msk [vmem:[%s3 + $0xd8] sm:$0x3f] %vm254, %v223
  %282 = vst.msk [vmem:[%s3 + $0xe0] sm:$0xff] %vm252, %v224
  %283 = vst.msk [vmem:[%s3 + $0xe8] sm:$0x3f] %vm254, %v225
  %284 = vst.msk [vmem:[%s3 + $0xf0] sm:$0xff] %vm252, %v226
  %285 = vst.msk [vmem:[%s3 + $0xf8] sm:$0x3f] %vm254, %v227
  %286 = vst.msk [vmem:[%s3 + $0x100] sm:$0xff] %vm252, %v228
  %287 = vst.msk [vmem:[%s3 + $0x108] sm:$0x3f] %vm254, %v229
  %288 = vst.msk [vmem:[%s3 + $0x110] sm:$0xff] %vm252, %v230
  %289 = vst.msk [vmem:[%s3 + $0x118] sm:$0x3f] %vm254, %v231
  %290 = vst.msk [vmem:[%s3 + $0x120] sm:$0xff] %vm252, %v232
  %291 = vst.msk [vmem:[%s3 + $0x128] sm:$0x3f] %vm254, %v233
  %292 = vst.msk [vmem:[%s3 + $0x130] sm:$0xff] %vm252, %v234
  %293 = vst.msk [vmem:[%s3 + $0x138] sm:$0x3f] %vm254, %v235
  %294 = vst.msk [vmem:[%s3 + $0x140] sm:$0xff] %vm252, %v236
  %295 = vst.msk [vmem:[%s3 + $0x148] sm:$0x3f] %vm254, %v237
  %296 = vst.msk [vmem:[%s3 + $0x150] sm:$0xff] %vm252, %v238
  %297 = vst.msk [vmem:[%s3 + $0x158] sm:$0x3f] %vm254, %v239
  %298 = vst.msk [vmem:[%s3 + $0x160] sm:$0xff] %vm252, %v240
  %299 = vst.msk [vmem:[%s3 + $0x168] sm:$0x3f] %vm254, %v241
  %300 = vst.msk [vmem:[%s3 + $0x170] sm:$0xff] %vm252, %v242
  %301 = vst.msk [vmem:[%s3 + $0x178] sm:$0x3f] %vm254, %v243
  %302 = vst.msk [vmem:[%s3 + $0x180] sm:$0xff] %vm252, %v244
  %303 = vst.msk [vmem:[%s3 + $0x188] sm:$0x3f] %vm254, %v245
  %304 = vst.msk [vmem:[%s3 + $0x190] sm:$0xff] %vm252, %v246
  %305 = vst.msk [vmem:[%s3 + $0x198] sm:$0x3f] %vm254, %v247
  %306 = vst.msk [vmem:[%s3 + $0x1a0] sm:$0xff] %vm252, %v248
  %307 = vst.msk [vmem:[%s3 + $0x1a8] sm:$0x3f] %vm254, %v249
  %308 = vst.msk [vmem:[%s3 + $0x1b0] sm:$0xff] %vm252, %v250
  %309 = vst.msk [vmem:[%s3 + $0x1b8] sm:$0x3f] %vm254, %v251
  // Predicated region
  $region14: #{depthwise_pointwise_forward.5} parent=0 // pred_check
    _
  $region15: #{depthwise_pointwise_forward.5} parent=0 // pred_check_branch
    %311 = sbr.rel (0) target = $region17
  $region16: #{depthwise_pointwise_forward.5} parent=0 // pred_region
    _
  $region17: #{depthwise_pointwise_forward.5} parent=0 // pred_fallthru
    _
  // Predicated region
  $region18: #{depthwise_pointwise_forward.5} parent=0 // pred_check
    _
  $region19: #{depthwise_pointwise_forward.5} parent=0 // pred_check_branch
    %313 = sbr.rel (0) target = $region21
  $region20: #{depthwise_pointwise_forward.5} parent=0 // pred_region
    _
  $region21: #{depthwise_pointwise_forward.5} parent=0 // pred_fallthru
    _

// kernel: depthwise_pointwise_forward.3
$region0: #{depthwise_pointwise_forward.3}
  #allocation0 [shape = 'u32[]', space=smem, size = 0x4, offset = 0x4, fixed_abs, tag = 'smem constant byte address 0x4 - core index']
  #allocation1 [shape = 'u32[144,128]{1,0:T(1,128)}', space=vmem, size = 0x12000, scoped, tag = 'internal scratch']
  %s0 = inlined_call_operand.vmem [shape: f32[2,16,16,4], index: 0, kind: input, shape index: {}]
  %s1 = inlined_call_operand.vmem [shape: f32[9,4], index: 1, kind: input, shape index: {}]
  %s2 = inlined_call_operand.vmem [shape: f32[1,2,4], index: 2, kind: output, shape index: {}]
  %s3 = sld [smem:[#allocation0]]
  $region18: #{depthwise_pointwise_forward.3} parent=0
    _
  %s5 = ssub.s32 1, %s3
  %s6 = scalar_select 0, %s5, %s3
  // Predicated region
  $region2: #{depthwise_pointwise_forward.3} parent=0 // pred_check
    _
  $region3: #{depthwise_pointwise_forward.3} parent=0 // pred_check_branch
    %8 = sbr.rel (0) target = $region5
  $region4: #{depthwise_pointwise_forward.3} parent=0 // pred_region
    _
  $region5: #{depthwise_pointwise_forward.3} parent=0 // pred_fallthru
    _
  // Predicated region
  $region6: #{depthwise_pointwise_forward.3} parent=0 // pred_check
    _
  $region7: #{depthwise_pointwise_forward.3} parent=0 // pred_check_branch
    %10 = sbr.rel (0) target = $region9
  $region8: #{depthwise_pointwise_forward.3} parent=0 // pred_region
    _
  $region9: #{depthwise_pointwise_forward.3} parent=0 // pred_fallthru
    _
  %v11 = vld [vmem:[%s0] sm:$0xff]
  %v12 = vld [vmem:[%s0 + $0x8] sm:$0xff]
  %v13 = vld [vmem:[%s0 + $0x10] sm:$0xff]
  %v14 = vld [vmem:[%s0 + $0x18] sm:$0xff]
  %v15 = vld [vmem:[%s0 + $0x20] sm:$0xff]
  %v16 = vld [vmem:[%s0 + $0x28] sm:$0xff]
  %v17 = vld [vmem:[%s0 + $0x30] sm:$0xff]
  %v18 = vld [vmem:[%s0 + $0x38] sm:$0xff]
  %v19 = vld [vmem:[%s0 + $0x40] sm:$0xff]
  %v20 = vld [vmem:[%s0 + $0x48] sm:$0xff]
  %v21 = vld [vmem:[%s0 + $0x50] sm:$0xff]
  %v22 = vld [vmem:[%s0 + $0x58] sm:$0xff]
  %v23 = vld [vmem:[%s0 + $0x60] sm:$0xff]
  %v24 = vld [vmem:[%s0 + $0x68] sm:$0xff]
  %v25 = vld [vmem:[%s0 + $0x70] sm:$0xff]
  %v26 = vld [vmem:[%s0 + $0x78] sm:$0xff]
  %v27 = vld [vmem:[%s0 + $0x80] sm:$0xff]
  %v28 = vld [vmem:[%s0 + $0x88] sm:$0xff]
  %v29 = vld [vmem:[%s0 + $0x90] sm:$0xff]
  %v30 = vld [vmem:[%s0 + $0x98] sm:$0xff]
  %v31 = vld [vmem:[%s0 + $0xa0] sm:$0xff]
  %v32 = vld [vmem:[%s0 + $0xa8] sm:$0xff]
  %v33 = vld [vmem:[%s0 + $0xb0] sm:$0xff]
  %v34 = vld [vmem:[%s0 + $0xb8] sm:$0xff]
  %v35 = vld [vmem:[%s0 + $0xc0] sm:$0xff]
  %v36 = vld [vmem:[%s0 + $0xc8] sm:$0xff]
  %v37 = vld [vmem:[%s0 + $0xd0] sm:$0xff]
  %v38 = vld [vmem:[%s0 + $0xd8] sm:$0xff]
  %v39 = vld [vmem:[%s0 + $0xe0] sm:$0xff]
  %v40 = vld [vmem:[%s0 + $0xe8] sm:$0xff]
  %v41 = vld [vmem:[%s0 + $0xf0] sm:$0xff]
  %v42 = vld [vmem:[%s0 + $0xf8] sm:$0xff]
  %v43 = vld [vmem:[%s0 + $0x100] sm:$0xff]
  %v44 = vld [vmem:[%s0 + $0x108] sm:$0xff]
  %v45 = vld [vmem:[%s0 + $0x110] sm:$0xff]
  %v46 = vld [vmem:[%s0 + $0x118] sm:$0xff]
  %v47 = vld [vmem:[%s0 + $0x120] sm:$0xff]
  %v48 = vld [vmem:[%s0 + $0x128] sm:$0xff]
  %v49 = vld [vmem:[%s0 + $0x130] sm:$0xff]
  %v50 = vld [vmem:[%s0 + $0x138] sm:$0xff]
  %v51 = vld [vmem:[%s0 + $0x140] sm:$0xff]
  %v52 = vld [vmem:[%s0 + $0x148] sm:$0xff]
  %v53 = vld [vmem:[%s0 + $0x150] sm:$0xff]
  %v54 = vld [vmem:[%s0 + $0x158] sm:$0xff]
  %v55 = vld [vmem:[%s0 + $0x160] sm:$0xff]
  %v56 = vld [vmem:[%s0 + $0x168] sm:$0xff]
  %v57 = vld [vmem:[%s0 + $0x170] sm:$0xff]
  %v58 = vld [vmem:[%s0 + $0x178] sm:$0xff]
  %v59 = vld [vmem:[%s0 + $0x180] sm:$0xff]
  %v60 = vld [vmem:[%s0 + $0x188] sm:$0xff]
  %v61 = vld [vmem:[%s0 + $0x190] sm:$0xff]
  %v62 = vld [vmem:[%s0 + $0x198] sm:$0xff]
  %v63 = vld [vmem:[%s0 + $0x1a0] sm:$0xff]
  %v64 = vld [vmem:[%s0 + $0x1a8] sm:$0xff]
  %v65 = vld [vmem:[%s0 + $0x1b0] sm:$0xff]
  %v66 = vld [vmem:[%s0 + $0x1b8] sm:$0xff]
  %v67 = vld [vmem:[%s0 + $0x1c0] sm:$0xff]
  %v68 = vld [vmem:[%s0 + $0x1c8] sm:$0xff]
  %v69 = vld [vmem:[%s0 + $0x1d0] sm:$0xff]
  %v70 = vld [vmem:[%s0 + $0x1d8] sm:$0xff]
  %v71 = vld [vmem:[%s0 + $0x1e0] sm:$0xff]
  %v72 = vld [vmem:[%s0 + $0x1e8] sm:$0xff]
  %v73 = vld [vmem:[%s0 + $0x1f0] sm:$0xff]
  %v74 = vld [vmem:[%s0 + $0x1f8] sm:$0xff]
  %v75 = vld [vmem:[%s1] sm:$0xff]
  %v76 = vld [vmem:[%s1 + $0x8] sm:$0x1]
  %v77 = vlaneseq
  %v78 = vshrl.u32 %v77, 7
  %v79 = vsub.s32 0, %v78
  %v80 = vrot.slane %v75, %v79
  %v81 = vmul.f32 %v11, %v80
  %v82 = vmul.f32 %v12, %v80
  %v83 = vmul.f32 %v13, %v80
  %v84 = vmul.f32 %v14, %v80
  %v85 = vmul.f32 %v15, %v80
  %v86 = vmul.f32 %v16, %v80
  %v87 = vmul.f32 %v17, %v80
  %v88 = vmul.f32 %v18, %v80
  %v89 = vmul.f32 %v19, %v80
  %v90 = vmul.f32 %v20, %v80
  %v91 = vmul.f32 %v21, %v80
  %v92 = vmul.f32 %v22, %v80
  %v93 = vmul.f32 %v23, %v80
  %v94 = vmul.f32 %v24, %v80
  %v95 = vmul.f32 %v25, %v80
  %v96 = vmul.f32 %v26, %v80
  %v97 = vmul.f32 %v27, %v80
  %v98 = vmul.f32 %v28, %v80
  %v99 = vmul.f32 %v29, %v80
  %v100 = vmul.f32 %v30, %v80
  %v101 = vmul.f32 %v31, %v80
  %v102 = vmul.f32 %v32, %v80
  %v103 = vmul.f32 %v33, %v80
  %v104 = vmul.f32 %v34, %v80
  %v105 = vmul.f32 %v35, %v80
  %v106 = vmul.f32 %v36, %v80
  %v107 = vmul.f32 %v37, %v80
  %v108 = vmul.f32 %v38, %v80
  %v109 = vmul.f32 %v43, %v80
  %v110 = vmul.f32 %v44, %v80
  %v111 = vmul.f32 %v45, %v80
  %v112 = vmul.f32 %v46, %v80
  %v113 = vmul.f32 %v47, %v80
  %v114 = vmul.f32 %v48, %v80
  %v115 = vmul.f32 %v49, %v80
  %v116 = vmul.f32 %v50, %v80
  %v117 = vmul.f32 %v51, %v80
  %v118 = vmul.f32 %v52, %v80
  %v119 = vmul.f32 %v53, %v80
  %v120 = vmul.f32 %v54, %v80
  %v121 = vmul.f32 %v55, %v80
  %v122 = vmul.f32 %v56, %v80
  %v123 = vmul.f32 %v57, %v80
  %v124 = vmul.f32 %v58, %v80
  %v125 = vmul.f32 %v59, %v80
  %v126 = vmul.f32 %v60, %v80
  %v127 = vmul.f32 %v61, %v80
  %v128 = vmul.f32 %v62, %v80
  %v129 = vmul.f32 %v63, %v80
  %v130 = vmul.f32 %v64, %v80
  %v131 = vmul.f32 %v65, %v80
  %v132 = vmul.f32 %v66, %v80
  %v133 = vmul.f32 %v67, %v80
  %v134 = vmul.f32 %v68, %v80
  %v135 = vmul.f32 %v69, %v80
  %v136 = vmul.f32 %v70, %v80
  %v137 = vadd.f32 %v81, 0.0
  %v138 = vadd.f32 %v82, 0.0
  %v139 = vadd.f32 %v83, 0.0
  %v140 = vadd.f32 %v84, 0.0
  %v141 = vadd.f32 %v85, 0.0
  %v142 = vadd.f32 %v86, 0.0
  %v143 = vadd.f32 %v87, 0.0
  %v144 = vadd.f32 %v88, 0.0
  %v145 = vadd.f32 %v89, 0.0
  %v146 = vadd.f32 %v90, 0.0
  %v147 = vadd.f32 %v91, 0.0
  %v148 = vadd.f32 %v92, 0.0
  %v149 = vadd.f32 %v93, 0.0
  %v150 = vadd.f32 %v94, 0.0
  %v151 = vadd.f32 %v95, 0.0
  %v152 = vadd.f32 %v96, 0.0
  %v153 = vadd.f32 %v97, 0.0
  %v154 = vadd.f32 %v98, 0.0
  %v155 = vadd.f32 %v99, 0.0
  %v156 = vadd.f32 %v100, 0.0
  %v157 = vadd.f32 %v101, 0.0
  %v158 = vadd.f32 %v102, 0.0
  %v159 = vadd.f32 %v103, 0.0
  %v160 = vadd.f32 %v104, 0.0
  %v161 = vadd.f32 %v105, 0.0
  %v162 = vadd.f32 %v106, 0.0
  %v163 = vadd.f32 %v107, 0.0
  %v164 = vadd.f32 %v108, 0.0
  %v165 = vadd.f32 %v109, 0.0
  %v166 = vadd.f32 %v110, 0.0
  %v167 = vadd.f32 %v111, 0.0
  %v168 = vadd.f32 %v112, 0.0
  %v169 = vadd.f32 %v113, 0.0
  %v170 = vadd.f32 %v114, 0.0
  %v171 = vadd.f32 %v115, 0.0
  %v172 = vadd.f32 %v116, 0.0
  %v173 = vadd.f32 %v117, 0.0
  %v174 = vadd.f32 %v118, 0.0
  %v175 = vadd.f32 %v119, 0.0
  %v176 = vadd.f32 %v120, 0.0
  %v177 = vadd.f32 %v121, 0.0
  %v178 = vadd.f32 %v122, 0.0
  %v179 = vadd.f32 %v123, 0.0
  %v180 = vadd.f32 %v124, 0.0
  %v181 = vadd.f32 %v125, 0.0
  %v182 = vadd.f32 %v126, 0.0
  %v183 = vadd.f32 %v127, 0.0
  %v184 = vadd.f32 %v128, 0.0
  %v185 = vadd.f32 %v129, 0.0
  %v186 = vadd.f32 %v130, 0.0
  %v187 = vadd.f32 %v131, 0.0
  %v188 = vadd.f32 %v132, 0.0
  %v189 = vadd.f32 %v133, 0.0
  %v190 = vadd.f32 %v134, 0.0
  %v191 = vadd.f32 %v135, 0.0
  %v192 = vadd.f32 %v136, 0.0
  %v193 = vlaneseq
  %v194 = vshrl.u32 %v193, 7
  %v195 = vsub.s32 1, %v194
  %v196 = vrot.slane %v75, %v195
  %v197 = vmul.f32 %v11, %v196
  %v198 = vmul.f32 %v12, %v196
  %v199 = vmul.f32 %v13, %v196
  %v200 = vmul.f32 %v14, %v196
  %v201 = vmul.f32 %v15, %v196
  %v202 = vmul.f32 %v16, %v196
  %v203 = vmul.f32 %v17, %v196
  %v204 = vmul.f32 %v18, %v196
  %v205 = vmul.f32 %v19, %v196
  %v206 = vmul.f32 %v20, %v196
  %v207 = vmul.f32 %v21, %v196
  %v208 = vmul.f32 %v22, %v196
  %v209 = vmul.f32 %v23, %v196
  %v210 = vmul.f32 %v24, %v196
  %v211 = vmul.f32 %v25, %v196
  %v212 = vmul.f32 %v26, %v196
  %v213 = vmul.f32 %v27, %v196
  %v214 = vmul.f32 %v28, %v196
  %v215 = vmul.f32 %v29, %v196
  %v216 = vmul.f32 %v30, %v196
  %v217 = vmul.f32 %v31, %v196
  %v218 = vmul.f32 %v32, %v196
  %v219 = vmul.f32 %v33, %v196
  %v220 = vmul.f32 %v34, %v196
  %v221 = vmul.f32 %v35, %v196
  %v222 = vmul.f32 %v36, %v196
  %v223 = vmul.f32 %v37, %v196
  %v224 = vmul.f32 %v38, %v196
  %v225 = vmul.f32 %v43, %v196
  %v226 = vmul.f32 %v44, %v196
  %v227 = vmul.f32 %v45, %v196
  %v228 = vmul.f32 %v46, %v196
  %v229 = vmul.f32 %v47, %v196
  %v230 = vmul.f32 %v48, %v196
  %v231 = vmul.f32 %v49, %v196
  %v232 = vmul.f32 %v50, %v196
  %v233 = vmul.f32 %v51, %v196
  %v234 = vmul.f32 %v52, %v196
  %v235 = vmul.f32 %v53, %v196
  %v236 = vmul.f32 %v54, %v196
  %v237 = vmul.f32 %v55, %v196
  %v238 = vmul.f32 %v56, %v196
  %v239 = vmul.f32 %v57, %v196
  %v240 = vmul.f32 %v58, %v196
  %v241 = vmul.f32 %v59, %v196
  %v242 = vmul.f32 %v60, %v196
  %v243 = vmul.f32 %v61, %v196
  %v244 = vmul.f32 %v62, %v196
  %v245 = vmul.f32 %v63, %v196
  %v246 = vmul.f32 %v64, %v196
  %v247 = vmul.f32 %v65, %v196
  %v248 = vmul.f32 %v66, %v196
  %v249 = vmul.f32 %v67, %v196
  %v250 = vmul.f32 %v68, %v196
  %v251 = vmul.f32 %v69, %v196
  %v252 = vmul.f32 %v70, %v196
  %vm309 = vcmask 1046528
  %v310 = vrot.slane %v197, 1
  %v311 = vrot.slane %v198, 1
  %v312 = vsel %vm309, %v310, %v311
  %v313 = vrot.slane %v199, 1
  %v314 = vrot.slane %v200, 1
  %v315 = vsel %vm309, %v313, %v314
  %v316 = vrot.slane %v201, 1
  %v317 = vrot.slane %v202, 1
  %v318 = vsel %vm309, %v316, %v317
  %v319 = vrot.slane %v203, 1
  %v320 = vrot.slane %v204, 1
  %v321 = vsel %vm309, %v319, %v320
  %v322 = vrot.slane %v205, 1
  %v323 = vrot.slane %v206, 1
  %v324 = vsel %vm309, %v322, %v323
  %v325 = vrot.slane %v207, 1
  %v326 = vrot.slane %v208, 1
  %v327 = vsel %vm309, %v325, %v326
  %v328 = vrot.slane %v209, 1
  %v329 = vrot.slane %v210, 1
  %v330 = vsel %vm309, %v328, %v329
  %v331 = vrot.slane %v211, 1
  %v332 = vrot.slane %v212, 1
  %v333 = vsel %vm309, %v331, %v332
  %v334 = vrot.slane %v213, 1
  %v335 = vrot.slane %v214, 1
  %v336 = vsel %vm309, %v334, %v335
  %v337 = vrot.slane %v215, 1
  %v338 = vrot.slane %v216, 1
  %v339 = vsel %vm309, %v337, %v338
  %v340 = vrot.slane %v217, 1
  %v341 = vrot.slane %v218, 1
  %v342 = vsel %vm309, %v340, %v341
  %v343 = vrot.slane %v219, 1
  %v344 = vrot.slane %v220, 1
  %v345 = vsel %vm309, %v343, %v344
  %v346 = vrot.slane %v221, 1
  %v347 = vrot.slane %v222, 1
  %v348 = vsel %vm309, %v346, %v347
  %v349 = vrot.slane %v223, 1
  %v350 = vrot.slane %v224, 1
  %v351 = vsel %vm309, %v349, %v350
  %v352 = vrot.slane %v225, 1
  %v353 = vrot.slane %v226, 1
  %v354 = vsel %vm309, %v352, %v353
  %v355 = vrot.slane %v227, 1
  %v356 = vrot.slane %v228, 1
  %v357 = vsel %vm309, %v355, %v356
  %v358 = vrot.slane %v229, 1
  %v359 = vrot.slane %v230, 1
  %v360 = vsel %vm309, %v358, %v359
  %v361 = vrot.slane %v231, 1
  %v362 = vrot.slane %v232, 1
  %v363 = vsel %vm309, %v361, %v362
  %v364 = vrot.slane %v233, 1
  %v365 = vrot.slane %v234, 1
  %v366 = vsel %vm309, %v364, %v365
  %v367 = vrot.slane %v235, 1
  %v368 = vrot.slane %v236, 1
  %v369 = vsel %vm309, %v367, %v368
  %v370 = vrot.slane %v237, 1
  %v371 = vrot.slane %v238, 1
  %v372 = vsel %vm309, %v370, %v371
  %v373 = vrot.slane %v239, 1
  %v374 = vrot.slane %v240, 1
  %v375 = vsel %vm309, %v373, %v374
  %v376 = vrot.slane %v241, 1
  %v377 = vrot.slane %v242, 1
  %v378 = vsel %vm309, %v376, %v377
  %v379 = vrot.slane %v243, 1
  %v380 = vrot.slane %v244, 1
  %v381 = vsel %vm309, %v379, %v380
  %v382 = vrot.slane %v245, 1
  %v383 = vrot.slane %v246, 1
  %v384 = vsel %vm309, %v382, %v383
  %v385 = vrot.slane %v247, 1
  %v386 = vrot.slane %v248, 1
  %v387 = vsel %vm309, %v385, %v386
  %v388 = vrot.slane %v249, 1
  %v389 = vrot.slane %v250, 1
  %v390 = vsel %vm309, %v388, %v389
  %v391 = vrot.slane %v251, 1
  %v392 = vrot.slane %v252, 1
  %v393 = vsel %vm309, %v391, %v392
  %v450 = vadd.f32 %v137, %v312
  %v451 = vadd.f32 %v138, %v311
  %v452 = vadd.f32 %v139, %v315
  %v453 = vadd.f32 %v140, %v314
  %v454 = vadd.f32 %v141, %v318
  %v455 = vadd.f32 %v142, %v317
  %v456 = vadd.f32 %v143, %v321
  %v457 = vadd.f32 %v144, %v320
  %v458 = vadd.f32 %v145, %v324
  %v459 = vadd.f32 %v146, %v323
  %v460 = vadd.f32 %v147, %v327
  %v461 = vadd.f32 %v148, %v326
  %v462 = vadd.f32 %v149, %v330
  %v463 = vadd.f32 %v150, %v329
  %v464 = vadd.f32 %v151, %v333
  %v465 = vadd.f32 %v152, %v332
  %v466 = vadd.f32 %v153, %v336
  %v467 = vadd.f32 %v154, %v335
  %v468 = vadd.f32 %v155, %v339
  %v469 = vadd.f32 %v156, %v338
  %v470 = vadd.f32 %v157, %v342
  %v471 = vadd.f32 %v158, %v341
  %v472 = vadd.f32 %v159, %v345
  %v473 = vadd.f32 %v160, %v344
  %v474 = vadd.f32 %v161, %v348
  %v475 = vadd.f32 %v162, %v347
  %v476 = vadd.f32 %v163, %v351
  %v477 = vadd.f32 %v164, %v350
  %v478 = vadd.f32 %v165, %v354
  %v479 = vadd.f32 %v166, %v353
  %v480 = vadd.f32 %v167, %v357
  %v481 = vadd.f32 %v168, %v356
  %v482 = vadd.f32 %v169, %v360
  %v483 = vadd.f32 %v170, %v359
  %v484 = vadd.f32 %v171, %v363
  %v485 = vadd.f32 %v172, %v362
  %v486 = vadd.f32 %v173, %v366
  %v487 = vadd.f32 %v174, %v365
  %v488 = vadd.f32 %v175, %v369
  %v489 = vadd.f32 %v176, %v368
  %v490 = vadd.f32 %v177, %v372
  %v491 = vadd.f32 %v178, %v371
  %v492 = vadd.f32 %v179, %v375
  %v493 = vadd.f32 %v180, %v374
  %v494 = vadd.f32 %v181, %v378
  %v495 = vadd.f32 %v182, %v377
  %v496 = vadd.f32 %v183, %v381
  %v497 = vadd.f32 %v184, %v380
  %v498 = vadd.f32 %v185, %v384
  %v499 = vadd.f32 %v186, %v383
  %v500 = vadd.f32 %v187, %v387
  %v501 = vadd.f32 %v188, %v386
  %v502 = vadd.f32 %v189, %v390
  %v503 = vadd.f32 %v190, %v389
  %v504 = vadd.f32 %v191, %v393
  %v505 = vadd.f32 %v192, %v392
  %v506 = vlaneseq
  %v507 = vshrl.u32 %v506, 7
  %v508 = vsub.s32 2, %v507
  %v509 = vrot.slane %v75, %v508
  %v510 = vmul.f32 %v11, %v509
  %v511 = vmul.f32 %v12, %v509
  %v512 = vmul.f32 %v13, %v509
  %v513 = vmul.f32 %v14, %v509
  %v514 = vmul.f32 %v15, %v509
  %v515 = vmul.f32 %v16, %v509
  %v516 = vmul.f32 %v17, %v509
  %v517 = vmul.f32 %v18, %v509
  %v518 = vmul.f32 %v19, %v509
  %v519 = vmul.f32 %v20, %v509
  %v520 = vmul.f32 %v21, %v509
  %v521 = vmul.f32 %v22, %v509
  %v522 = vmul.f32 %v23, %v509
  %v523 = vmul.f32 %v24, %v509
  %v524 = vmul.f32 %v25, %v509
  %v525 = vmul.f32 %v26, %v509
  %v526 = vmul.f32 %v27, %v509
  %v527 = vmul.f32 %v28, %v509
  %v528 = vmul.f32 %v29, %v509
  %v529 = vmul.f32 %v30, %v509
  %v530 = vmul.f32 %v31, %v509
  %v531 = vmul.f32 %v32, %v509
  %v532 = vmul.f32 %v33, %v509
  %v533 = vmul.f32 %v34, %v509
  %v534 = vmul.f32 %v35, %v509
  %v535 = vmul.f32 %v36, %v509
  %v536 = vmul.f32 %v37, %v509
  %v537 = vmul.f32 %v38, %v509
  %v538 = vmul.f32 %v43, %v509
  %v539 = vmul.f32 %v44, %v509
  %v540 = vmul.f32 %v45, %v509
  %v541 = vmul.f32 %v46, %v509
  %v542 = vmul.f32 %v47, %v509
  %v543 = vmul.f32 %v48, %v509
  %v544 = vmul.f32 %v49, %v509
  %v545 = vmul.f32 %v50, %v509
  %v546 = vmul.f32 %v51, %v509
  %v547 = vmul.f32 %v52, %v509
  %v548 = vmul.f32 %v53, %v509
  %v549 = vmul.f32 %v54, %v509
  %v550 = vmul.f32 %v55, %v509
  %v551 = vmul.f32 %v56, %v509
  %v552 = vmul.f32 %v57, %v509
  %v553 = vmul.f32 %v58, %v509
  %v554 = vmul.f32 %v59, %v509
  %v555 = vmul.f32 %v60, %v509
  %v556 = vmul.f32 %v61, %v509
  %v557 = vmul.f32 %v62, %v509
  %v558 = vmul.f32 %v63, %v509
  %v559 = vmul.f32 %v64, %v509
  %v560 = vmul.f32 %v65, %v509
  %v561 = vmul.f32 %v66, %v509
  %v562 = vmul.f32 %v67, %v509
  %v563 = vmul.f32 %v68, %v509
  %v564 = vmul.f32 %v69, %v509
  %v565 = vmul.f32 %v70, %v509
  %vm622 = vcmask 1045504
  %v623 = vrot.slane %v510, 2
  %v624 = vrot.slane %v511, 2
  %v625 = vsel %vm622, %v623, %v624
  %v626 = vrot.slane %v512, 2
  %v627 = vrot.slane %v513, 2
  %v628 = vsel %vm622, %v626, %v627
  %v629 = vrot.slane %v514, 2
  %v630 = vrot.slane %v515, 2
  %v631 = vsel %vm622, %v629, %v630
  %v632 = vrot.slane %v516, 2
  %v633 = vrot.slane %v517, 2
  %v634 = vsel %vm622, %v632, %v633
  %v635 = vrot.slane %v518, 2
  %v636 = vrot.slane %v519, 2
  %v637 = vsel %vm622, %v635, %v636
  %v638 = vrot.slane %v520, 2
  %v639 = vrot.slane %v521, 2
  %v640 = vsel %vm622, %v638, %v639
  %v641 = vrot.slane %v522, 2
  %v642 = vrot.slane %v523, 2
  %v643 = vsel %vm622, %v641, %v642
  %v644 = vrot.slane %v524, 2
  %v645 = vrot.slane %v525, 2
  %v646 = vsel %vm622, %v644, %v645
  %v647 = vrot.slane %v526, 2
  %v648 = vrot.slane %v527, 2
  %v649 = vsel %vm622, %v647, %v648
  %v650 = vrot.slane %v528, 2
  %v651 = vrot.slane %v529, 2
  %v652 = vsel %vm622, %v650, %v651
  %v653 = vrot.slane %v530, 2
  %v654 = vrot.slane %v531, 2
  %v655 = vsel %vm622, %v653, %v654
  %v656 = vrot.slane %v532, 2
  %v657 = vrot.slane %v533, 2
  %v658 = vsel %vm622, %v656, %v657
  %v659 = vrot.slane %v534, 2
  %v660 = vrot.slane %v535, 2
  %v661 = vsel %vm622, %v659, %v660
  %v662 = vrot.slane %v536, 2
  %v663 = vrot.slane %v537, 2
  %v664 = vsel %vm622, %v662, %v663
  %v665 = vrot.slane %v538, 2
  %v666 = vrot.slane %v539, 2
  %v667 = vsel %vm622, %v665, %v666
  %v668 = vrot.slane %v540, 2
  %v669 = vrot.slane %v541, 2
  %v670 = vsel %vm622, %v668, %v669
  %v671 = vrot.slane %v542, 2
  %v672 = vrot.slane %v543, 2
  %v673 = vsel %vm622, %v671, %v672
  %v674 = vrot.slane %v544, 2
  %v675 = vrot.slane %v545, 2
  %v676 = vsel %vm622, %v674, %v675
  %v677 = vrot.slane %v546, 2
  %v678 = vrot.slane %v547, 2
  %v679 = vsel %vm622, %v677, %v678
  %v680 = vrot.slane %v548, 2
  %v681 = vrot.slane %v549, 2
  %v682 = vsel %vm622, %v680, %v681
  %v683 = vrot.slane %v550, 2
  %v684 = vrot.slane %v551, 2
  %v685 = vsel %vm622, %v683, %v684
  %v686 = vrot.slane %v552, 2
  %v687 = vrot.slane %v553, 2
  %v688 = vsel %vm622, %v686, %v687
  %v689 = vrot.slane %v554, 2
  %v690 = vrot.slane %v555, 2
  %v691 = vsel %vm622, %v689, %v690
  %v692 = vrot.slane %v556, 2
  %v693 = vrot.slane %v557, 2
  %v694 = vsel %vm622, %v692, %v693
  %v695 = vrot.slane %v558, 2
  %v696 = vrot.slane %v559, 2
  %v697 = vsel %vm622, %v695, %v696
  %v698 = vrot.slane %v560, 2
  %v699 = vrot.slane %v561, 2
  %v700 = vsel %vm622, %v698, %v699
  %v701 = vrot.slane %v562, 2
  %v702 = vrot.slane %v563, 2
  %v703 = vsel %vm622, %v701, %v702
  %v704 = vrot.slane %v564, 2
  %v705 = vrot.slane %v565, 2
  %v706 = vsel %vm622, %v704, %v705
  %v763 = vadd.f32 %v450, %v625
  %v764 = vadd.f32 %v451, %v624
  %v765 = vadd.f32 %v452, %v628
  %v766 = vadd.f32 %v453, %v627
  %v767 = vadd.f32 %v454, %v631
  %v768 = vadd.f32 %v455, %v630
  %v769 = vadd.f32 %v456, %v634
  %v770 = vadd.f32 %v457, %v633
  %v771 = vadd.f32 %v458, %v637
  %v772 = vadd.f32 %v459, %v636
  %v773 = vadd.f32 %v460, %v640
  %v774 = vadd.f32 %v461, %v639
  %v775 = vadd.f32 %v462, %v643
  %v776 = vadd.f32 %v463, %v642
  %v777 = vadd.f32 %v464, %v646
  %v778 = vadd.f32 %v465, %v645
  %v779 = vadd.f32 %v466, %v649
  %v780 = vadd.f32 %v467, %v648
  %v781 = vadd.f32 %v468, %v652
  %v782 = vadd.f32 %v469, %v651
  %v783 = vadd.f32 %v470, %v655
  %v784 = vadd.f32 %v471, %v654
  %v785 = vadd.f32 %v472, %v658
  %v786 = vadd.f32 %v473, %v657
  %v787 = vadd.f32 %v474, %v661
  %v788 = vadd.f32 %v475, %v660
  %v789 = vadd.f32 %v476, %v664
  %v790 = vadd.f32 %v477, %v663
  %v791 = vadd.f32 %v478, %v667
  %v792 = vadd.f32 %v479, %v666
  %v793 = vadd.f32 %v480, %v670
  %v794 = vadd.f32 %v481, %v669
  %v795 = vadd.f32 %v482, %v673
  %v796 = vadd.f32 %v483, %v672
  %v797 = vadd.f32 %v484, %v676
  %v798 = vadd.f32 %v485, %v675
  %v799 = vadd.f32 %v486, %v679
  %v800 = vadd.f32 %v487, %v678
  %v801 = vadd.f32 %v488, %v682
  %v802 = vadd.f32 %v489, %v681
  %v803 = vadd.f32 %v490, %v685
  %v804 = vadd.f32 %v491, %v684
  %v805 = vadd.f32 %v492, %v688
  %v806 = vadd.f32 %v493, %v687
  %v807 = vadd.f32 %v494, %v691
  %v808 = vadd.f32 %v495, %v690
  %v809 = vadd.f32 %v496, %v694
  %v810 = vadd.f32 %v497, %v693
  %v811 = vadd.f32 %v498, %v697
  %v812 = vadd.f32 %v499, %v696
  %v813 = vadd.f32 %v500, %v700
  %v814 = vadd.f32 %v501, %v699
  %v815 = vadd.f32 %v502, %v703
  %v816 = vadd.f32 %v503, %v702
  %v817 = vadd.f32 %v504, %v706
  %v818 = vadd.f32 %v505, %v705
  %v819 = vlaneseq
  %v820 = vshrl.u32 %v819, 7
  %v821 = vsub.s32 3, %v820
  %v822 = vrot.slane %v75, %v821
  %v823 = vmul.f32 %v13, %v822
  %v824 = vmul.f32 %v14, %v822
  %v825 = vmul.f32 %v15, %v822
  %v826 = vmul.f32 %v16, %v822
  %v827 = vmul.f32 %v17, %v822
  %v828 = vmul.f32 %v18, %v822
  %v829 = vmul.f32 %v19, %v822
  %v830 = vmul.f32 %v20, %v822
  %v831 = vmul.f32 %v21, %v822
  %v832 = vmul.f32 %v22, %v822
  %v833 = vmul.f32 %v23, %v822
  %v834 = vmul.f32 %v24, %v822
  %v835 = vmul.f32 %v25, %v822
  %v836 = vmul.f32 %v26, %v822
  %v837 = vmul.f32 %v27, %v822
  %v838 = vmul.f32 %v28, %v822
  %v839 = vmul.f32 %v29, %v822
  %v840 = vmul.f32 %v30, %v822
  %v841 = vmul.f32 %v31, %v822
  %v842 = vmul.f32 %v32, %v822
  %v843 = vmul.f32 %v33, %v822
  %v844 = vmul.f32 %v34, %v822
  %v845 = vmul.f32 %v35, %v822
  %v846 = vmul.f32 %v36, %v822
  %v847 = vmul.f32 %v37, %v822
  %v848 = vmul.f32 %v38, %v822
  %v849 = vmul.f32 %v39, %v822
  %v850 = vmul.f32 %v40, %v822
  %v851 = vmul.f32 %v45, %v822
  %v852 = vmul.f32 %v46, %v822
  %v853 = vmul.f32 %v47, %v822
  %v854 = vmul.f32 %v48, %v822
  %v855 = vmul.f32 %v49, %v822
  %v856 = vmul.f32 %v50, %v822
  %v857 = vmul.f32 %v51, %v822
  %v858 = vmul.f32 %v52, %v822
  %v859 = vmul.f32 %v53, %v822
  %v860 = vmul.f32 %v54, %v822
  %v861 = vmul.f32 %v55, %v822
  %v862 = vmul.f32 %v56, %v822
  %v863 = vmul.f32 %v57, %v822
  %v864 = vmul.f32 %v58, %v822
  %v865 = vmul.f32 %v59, %v822
  %v866 = vmul.f32 %v60, %v822
  %v867 = vmul.f32 %v61, %v822
  %v868 = vmul.f32 %v62, %v822
  %v869 = vmul.f32 %v63, %v822
  %v870 = vmul.f32 %v64, %v822
  %v871 = vmul.f32 %v65, %v822
  %v872 = vmul.f32 %v66, %v822
  %v873 = vmul.f32 %v67, %v822
  %v874 = vmul.f32 %v68, %v822
  %v875 = vmul.f32 %v69, %v822
  %v876 = vmul.f32 %v70, %v822
  %v877 = vmul.f32 %v71, %v822
  %v878 = vmul.f32 %v72, %v822
  %v879 = vadd.f32 %v763, %v823
  %v880 = vadd.f32 %v764, %v824
  %v881 = vadd.f32 %v765, %v825
  %v882 = vadd.f32 %v766, %v826
  %v883 = vadd.f32 %v767, %v827
  %v884 = vadd.f32 %v768, %v828
  %v885 = vadd.f32 %v769, %v829
  %v886 = vadd.f32 %v770, %v830
  %v887 = vadd.f32 %v771, %v831
  %v888 = vadd.f32 %v772, %v832
  %v889 = vadd.f32 %v773, %v833
  %v890 = vadd.f32 %v774, %v834
  %v891 = vadd.f32 %v775, %v835
  %v892 = vadd.f32 %v776, %v836
  %v893 = vadd.f32 %v777, %v837
  %v894 = vadd.f32 %v778, %v838
  %v895 = vadd.f32 %v779, %v839
  %v896 = vadd.f32 %v780, %v840
  %v897 = vadd.f32 %v781, %v841
  %v898 = vadd.f32 %v782, %v842
  %v899 = vadd.f32 %v783, %v843
  %v900 = vadd.f32 %v784, %v844
  %v901 = vadd.f32 %v785, %v845
  %v902 = vadd.f32 %v786, %v846
  %v903 = vadd.f32 %v787, %v847
  %v904 = vadd.f32 %v788, %v848
  %v905 = vadd.f32 %v789, %v849
  %v906 = vadd.f32 %v790, %v850
  %v907 = vadd.f32 %v791, %v851
  %v908 = vadd.f32 %v792, %v852
  %v909 = vadd.f32 %v793, %v853
  %v910 = vadd.f32 %v794, %v854
  %v911 = vadd.f32 %v795, %v855
  %v912 = vadd.f32 %v796, %v856
  %v913 = vadd.f32 %v797, %v857
  %v914 = vadd.f32 %v798, %v858
  %v915 = vadd.f32 %v799, %v859
  %v916 = vadd.f32 %v800, %v860
  %v917 = vadd.f32 %v801, %v861
  %v918 = vadd.f32 %v802, %v862
  %v919 = vadd.f32 %v803, %v863
  %v920 = vadd.f32 %v804, %v864
  %v921 = vadd.f32 %v805, %v865
  %v922 = vadd.f32 %v806, %v866
  %v923 = vadd.f32 %v807, %v867
  %v924 = vadd.f32 %v808, %v868
  %v925 = vadd.f32 %v809, %v869
  %v926 = vadd.f32 %v810, %v870
  %v927 = vadd.f32 %v811, %v871
  %v928 = vadd.f32 %v812, %v872
  %v929 = vadd.f32 %v813, %v873
  %v930 = vadd.f32 %v814, %v874
  %v931 = vadd.f32 %v815, %v875
  %v932 = vadd.f32 %v816, %v876
  %v933 = vadd.f32 %v817, %v877
  %v934 = vadd.f32 %v818, %v878
  %v935 = vlaneseq
  %v936 = vshrl.u32 %v935, 7
  %v937 = vsub.s32 4, %v936
  %v938 = vrot.slane %v75, %v937
  %v939 = vmul.f32 %v13, %v938
  %v940 = vmul.f32 %v14, %v938
  %v941 = vmul.f32 %v15, %v938
  %v942 = vmul.f32 %v16, %v938
  %v943 = vmul.f32 %v17, %v938
  %v944 = vmul.f32 %v18, %v938
  %v945 = vmul.f32 %v19, %v938
  %v946 = vmul.f32 %v20, %v938
  %v947 = vmul.f32 %v21, %v938
  %v948 = vmul.f32 %v22, %v938
  %v949 = vmul.f32 %v23, %v938
  %v950 = vmul.f32 %v24, %v938
  %v951 = vmul.f32 %v25, %v938
  %v952 = vmul.f32 %v26, %v938
  %v953 = vmul.f32 %v27, %v938
  %v954 = vmul.f32 %v28, %v938
  %v955 = vmul.f32 %v29, %v938
  %v956 = vmul.f32 %v30, %v938
  %v957 = vmul.f32 %v31, %v938
  %v958 = vmul.f32 %v32, %v938
  %v959 = vmul.f32 %v33, %v938
  %v960 = vmul.f32 %v34, %v938
  %v961 = vmul.f32 %v35, %v938
  %v962 = vmul.f32 %v36, %v938
  %v963 = vmul.f32 %v37, %v938
  %v964 = vmul.f32 %v38, %v938
  %v965 = vmul.f32 %v39, %v938
  %v966 = vmul.f32 %v40, %v938
  %v967 = vmul.f32 %v45, %v938
  %v968 = vmul.f32 %v46, %v938
  %v969 = vmul.f32 %v47, %v938
  %v970 = vmul.f32 %v48, %v938
  %v971 = vmul.f32 %v49, %v938
  %v972 = vmul.f32 %v50, %v938
  %v973 = vmul.f32 %v51, %v938
  %v974 = vmul.f32 %v52, %v938
  %v975 = vmul.f32 %v53, %v938
  %v976 = vmul.f32 %v54, %v938
  %v977 = vmul.f32 %v55, %v938
  %v978 = vmul.f32 %v56, %v938
  %v979 = vmul.f32 %v57, %v938
  %v980 = vmul.f32 %v58, %v938
  %v981 = vmul.f32 %v59, %v938
  %v982 = vmul.f32 %v60, %v938
  %v983 = vmul.f32 %v61, %v938
  %v984 = vmul.f32 %v62, %v938
  %v985 = vmul.f32 %v63, %v938
  %v986 = vmul.f32 %v64, %v938
  %v987 = vmul.f32 %v65, %v938
  %v988 = vmul.f32 %v66, %v938
  %v989 = vmul.f32 %v67, %v938
  %v990 = vmul.f32 %v68, %v938
  %v991 = vmul.f32 %v69, %v938
  %v992 = vmul.f32 %v70, %v938
  %v993 = vmul.f32 %v71, %v938
  %v994 = vmul.f32 %v72, %v938
  %v1051 = vrot.slane %v939, 1
  %v1052 = vrot.slane %v940, 1
  %v1053 = vsel %vm309, %v1051, %v1052
  %v1054 = vrot.slane %v941, 1
  %v1055 = vrot.slane %v942, 1
  %v1056 = vsel %vm309, %v1054, %v1055
  %v1057 = vrot.slane %v943, 1
  %v1058 = vrot.slane %v944, 1
  %v1059 = vsel %vm309, %v1057, %v1058
  %v1060 = vrot.slane %v945, 1
  %v1061 = vrot.slane %v946, 1
  %v1062 = vsel %vm309, %v1060, %v1061
  %v1063 = vrot.slane %v947, 1
  %v1064 = vrot.slane %v948, 1
  %v1065 = vsel %vm309, %v1063, %v1064
  %v1066 = vrot.slane %v949, 1
  %v1067 = vrot.slane %v950, 1
  %v1068 = vsel %vm309, %v1066, %v1067
  %v1069 = vrot.slane %v951, 1
  %v1070 = vrot.slane %v952, 1
  %v1071 = vsel %vm309, %v1069, %v1070
  %v1072 = vrot.slane %v953, 1
  %v1073 = vrot.slane %v954, 1
  %v1074 = vsel %vm309, %v1072, %v1073
  %v1075 = vrot.slane %v955, 1
  %v1076 = vrot.slane %v956, 1
  %v1077 = vsel %vm309, %v1075, %v1076
  %v1078 = vrot.slane %v957, 1
  %v1079 = vrot.slane %v958, 1
  %v1080 = vsel %vm309, %v1078, %v1079
  %v1081 = vrot.slane %v959, 1
  %v1082 = vrot.slane %v960, 1
  %v1083 = vsel %vm309, %v1081, %v1082
  %v1084 = vrot.slane %v961, 1
  %v1085 = vrot.slane %v962, 1
  %v1086 = vsel %vm309, %v1084, %v1085
  %v1087 = vrot.slane %v963, 1
  %v1088 = vrot.slane %v964, 1
  %v1089 = vsel %vm309, %v1087, %v1088
  %v1090 = vrot.slane %v965, 1
  %v1091 = vrot.slane %v966, 1
  %v1092 = vsel %vm309, %v1090, %v1091
  %v1093 = vrot.slane %v967, 1
  %v1094 = vrot.slane %v968, 1
  %v1095 = vsel %vm309, %v1093, %v1094
  %v1096 = vrot.slane %v969, 1
  %v1097 = vrot.slane %v970, 1
  %v1098 = vsel %vm309, %v1096, %v1097
  %v1099 = vrot.slane %v971, 1
  %v1100 = vrot.slane %v972, 1
  %v1101 = vsel %vm309, %v1099, %v1100
  %v1102 = vrot.slane %v973, 1
  %v1103 = vrot.slane %v974, 1
  %v1104 = vsel %vm309, %v1102, %v1103
  %v1105 = vrot.slane %v975, 1
  %v1106 = vrot.slane %v976, 1
  %v1107 = vsel %vm309, %v1105, %v1106
  %v1108 = vrot.slane %v977, 1
  %v1109 = vrot.slane %v978, 1
  %v1110 = vsel %vm309, %v1108, %v1109
  %v1111 = vrot.slane %v979, 1
  %v1112 = vrot.slane %v980, 1
  %v1113 = vsel %vm309, %v1111, %v1112
  %v1114 = vrot.slane %v981, 1
  %v1115 = vrot.slane %v982, 1
  %v1116 = vsel %vm309, %v1114, %v1115
  %v1117 = vrot.slane %v983, 1
  %v1118 = vrot.slane %v984, 1
  %v1119 = vsel %vm309, %v1117, %v1118
  %v1120 = vrot.slane %v985, 1
  %v1121 = vrot.slane %v986, 1
  %v1122 = vsel %vm309, %v1120, %v1121
  %v1123 = vrot.slane %v987, 1
  %v1124 = vrot.slane %v988, 1
  %v1125 = vsel %vm309, %v1123, %v1124
  %v1126 = vrot.slane %v989, 1
  %v1127 = vrot.slane %v990, 1
  %v1128 = vsel %vm309, %v1126, %v1127
  %v1129 = vrot.slane %v991, 1
  %v1130 = vrot.slane %v992, 1
  %v1131 = vsel %vm309, %v1129, %v1130
  %v1132 = vrot.slane %v993, 1
  %v1133 = vrot.slane %v994, 1
  %v1134 = vsel %vm309, %v1132, %v1133
  %v1191 = vadd.f32 %v879, %v1053
  %v1192 = vadd.f32 %v880, %v1052
  %v1193 = vadd.f32 %v881, %v1056
  %v1194 = vadd.f32 %v882, %v1055
  %v1195 = vadd.f32 %v883, %v1059
  %v1196 = vadd.f32 %v884, %v1058
  %v1197 = vadd.f32 %v885, %v1062
  %v1198 = vadd.f32 %v886, %v1061
  %v1199 = vadd.f32 %v887, %v1065
  %v1200 = vadd.f32 %v888, %v1064
  %v1201 = vadd.f32 %v889, %v1068
  %v1202 = vadd.f32 %v890, %v1067
  %v1203 = vadd.f32 %v891, %v1071
  %v1204 = vadd.f32 %v892, %v1070
  %v1205 = vadd.f32 %v893, %v1074
  %v1206 = vadd.f32 %v894, %v1073
  %v1207 = vadd.f32 %v895, %v1077
  %v1208 = vadd.f32 %v896, %v1076
  %v1209 = vadd.f32 %v897, %v1080
  %v1210 = vadd.f32 %v898, %v1079
  %v1211 = vadd.f32 %v899, %v1083
  %v1212 = vadd.f32 %v900, %v1082
  %v1213 = vadd.f32 %v901, %v1086
  %v1214 = vadd.f32 %v902, %v1085
  %v1215 = vadd.f32 %v903, %v1089
  %v1216 = vadd.f32 %v904, %v1088
  %v1217 = vadd.f32 %v905, %v1092
  %v1218 = vadd.f32 %v906, %v1091
  %v1219 = vadd.f32 %v907, %v1095
  %v1220 = vadd.f32 %v908, %v1094
  %v1221 = vadd.f32 %v909, %v1098
  %v1222 = vadd.f32 %v910, %v1097
  %v1223 = vadd.f32 %v911, %v1101
  %v1224 = vadd.f32 %v912, %v1100
  %v1225 = vadd.f32 %v913, %v1104
  %v1226 = vadd.f32 %v914, %v1103
  %v1227 = vadd.f32 %v915, %v1107
  %v1228 = vadd.f32 %v916, %v1106
  %v1229 = vadd.f32 %v917, %v1110
  %v1230 = vadd.f32 %v918, %v1109
  %v1231 = vadd.f32 %v919, %v1113
  %v1232 = vadd.f32 %v920, %v1112
  %v1233 = vadd.f32 %v921, %v1116
  %v1234 = vadd.f32 %v922, %v1115
  %v1235 = vadd.f32 %v923, %v1119
  %v1236 = vadd.f32 %v924, %v1118
  %v1237 = vadd.f32 %v925, %v1122
  %v1238 = vadd.f32 %v926, %v1121
  %v1239 = vadd.f32 %v927, %v1125
  %v1240 = vadd.f32 %v928, %v1124
  %v1241 = vadd.f32 %v929, %v1128
  %v1242 = vadd.f32 %v930, %v1127
  %v1243 = vadd.f32 %v931, %v1131
  %v1244 = vadd.f32 %v932, %v1130
  %v1245 = vadd.f32 %v933, %v1134
  %v1246 = vadd.f32 %v934, %v1133
  %v1247 = vlaneseq
  %v1248 = vshrl.u32 %v1247, 7
  %v1249 = vsub.s32 5, %v1248
  %v1250 = vrot.slane %v75, %v1249
  %v1251 = vmul.f32 %v13, %v1250
  %v1252 = vmul.f32 %v14, %v1250
  %v1253 = vmul.f32 %v15, %v1250
  %v1254 = vmul.f32 %v16, %v1250
  %v1255 = vmul.f32 %v17, %v1250
  %v1256 = vmul.f32 %v18, %v1250
  %v1257 = vmul.f32 %v19, %v1250
  %v1258 = vmul.f32 %v20, %v1250
  %v1259 = vmul.f32 %v21, %v1250
  %v1260 = vmul.f32 %v22, %v1250
  %v1261 = vmul.f32 %v23, %v1250
  %v1262 = vmul.f32 %v24, %v1250
  %v1263 = vmul.f32 %v25, %v1250
  %v1264 = vmul.f32 %v26, %v1250
  %v1265 = vmul.f32 %v27, %v1250
  %v1266 = vmul.f32 %v28, %v1250
  %v1267 = vmul.f32 %v29, %v1250
  %v1268 = vmul.f32 %v30, %v1250
  %v1269 = vmul.f32 %v31, %v1250
  %v1270 = vmul.f32 %v32, %v1250
  %v1271 = vmul.f32 %v33, %v1250
  %v1272 = vmul.f32 %v34, %v1250
  %v1273 = vmul.f32 %v35, %v1250
  %v1274 = vmul.f32 %v36, %v1250
  %v1275 = vmul.f32 %v37, %v1250
  %v1276 = vmul.f32 %v38, %v1250
  %v1277 = vmul.f32 %v39, %v1250
  %v1278 = vmul.f32 %v40, %v1250
  %v1279 = vmul.f32 %v45, %v1250
  %v1280 = vmul.f32 %v46, %v1250
  %v1281 = vmul.f32 %v47, %v1250
  %v1282 = vmul.f32 %v48, %v1250
  %v1283 = vmul.f32 %v49, %v1250
  %v1284 = vmul.f32 %v50, %v1250
  %v1285 = vmul.f32 %v51, %v1250
  %v1286 = vmul.f32 %v52, %v1250
  %v1287 = vmul.f32 %v53, %v1250
  %v1288 = vmul.f32 %v54, %v1250
  %v1289 = vmul.f32 %v55, %v1250
  %v1290 = vmul.f32 %v56, %v1250
  %v1291 = vmul.f32 %v57, %v1250
  %v1292 = vmul.f32 %v58, %v1250
  %v1293 = vmul.f32 %v59, %v1250
  %v1294 = vmul.f32 %v60, %v1250
  %v1295 = vmul.f32 %v61, %v1250
  %v1296 = vmul.f32 %v62, %v1250
  %v1297 = vmul.f32 %v63, %v1250
  %v1298 = vmul.f32 %v64, %v1250
  %v1299 = vmul.f32 %v65, %v1250
  %v1300 = vmul.f32 %v66, %v1250
  %v1301 = vmul.f32 %v67, %v1250
  %v1302 = vmul.f32 %v68, %v1250
  %v1303 = vmul.f32 %v69, %v1250
  %v1304 = vmul.f32 %v70, %v1250
  %v1305 = vmul.f32 %v71, %v1250
  %v1306 = vmul.f32 %v72, %v1250
  %v1363 = vrot.slane %v1251, 2
  %v1364 = vrot.slane %v1252, 2
  %v1365 = vsel %vm622, %v1363, %v1364
  %v1366 = vrot.slane %v1253, 2
  %v1367 = vrot.slane %v1254, 2
  %v1368 = vsel %vm622, %v1366, %v1367
  %v1369 = vrot.slane %v1255, 2
  %v1370 = vrot.slane %v1256, 2
  %v1371 = vsel %vm622, %v1369, %v1370
  %v1372 = vrot.slane %v1257, 2
  %v1373 = vrot.slane %v1258, 2
  %v1374 = vsel %vm622, %v1372, %v1373
  %v1375 = vrot.slane %v1259, 2
  %v1376 = vrot.slane %v1260, 2
  %v1377 = vsel %vm622, %v1375, %v1376
  %v1378 = vrot.slane %v1261, 2
  %v1379 = vrot.slane %v1262, 2
  %v1380 = vsel %vm622, %v1378, %v1379
  %v1381 = vrot.slane %v1263, 2
  %v1382 = vrot.slane %v1264, 2
  %v1383 = vsel %vm622, %v1381, %v1382
  %v1384 = vrot.slane %v1265, 2
  %v1385 = vrot.slane %v1266, 2
  %v1386 = vsel %vm622, %v1384, %v1385
  %v1387 = vrot.slane %v1267, 2
  %v1388 = vrot.slane %v1268, 2
  %v1389 = vsel %vm622, %v1387, %v1388
  %v1390 = vrot.slane %v1269, 2
  %v1391 = vrot.slane %v1270, 2
  %v1392 = vsel %vm622, %v1390, %v1391
  %v1393 = vrot.slane %v1271, 2
  %v1394 = vrot.slane %v1272, 2
  %v1395 = vsel %vm622, %v1393, %v1394
  %v1396 = vrot.slane %v1273, 2
  %v1397 = vrot.slane %v1274, 2
  %v1398 = vsel %vm622, %v1396, %v1397
  %v1399 = vrot.slane %v1275, 2
  %v1400 = vrot.slane %v1276, 2
  %v1401 = vsel %vm622, %v1399, %v1400
  %v1402 = vrot.slane %v1277, 2
  %v1403 = vrot.slane %v1278, 2
  %v1404 = vsel %vm622, %v1402, %v1403
  %v1405 = vrot.slane %v1279, 2
  %v1406 = vrot.slane %v1280, 2
  %v1407 = vsel %vm622, %v1405, %v1406
  %v1408 = vrot.slane %v1281, 2
  %v1409 = vrot.slane %v1282, 2
  %v1410 = vsel %vm622, %v1408, %v1409
  %v1411 = vrot.slane %v1283, 2
  %v1412 = vrot.slane %v1284, 2
  %v1413 = vsel %vm622, %v1411, %v1412
  %v1414 = vrot.slane %v1285, 2
  %v1415 = vrot.slane %v1286, 2
  %v1416 = vsel %vm622, %v1414, %v1415
  %v1417 = vrot.slane %v1287, 2
  %v1418 = vrot.slane %v1288, 2
  %v1419 = vsel %vm622, %v1417, %v1418
  %v1420 = vrot.slane %v1289, 2
  %v1421 = vrot.slane %v1290, 2
  %v1422 = vsel %vm622, %v1420, %v1421
  %v1423 = vrot.slane %v1291, 2
  %v1424 = vrot.slane %v1292, 2
  %v1425 = vsel %vm622, %v1423, %v1424
  %v1426 = vrot.slane %v1293, 2
  %v1427 = vrot.slane %v1294, 2
  %v1428 = vsel %vm622, %v1426, %v1427
  %v1429 = vrot.slane %v1295, 2
  %v1430 = vrot.slane %v1296, 2
  %v1431 = vsel %vm622, %v1429, %v1430
  %v1432 = vrot.slane %v1297, 2
  %v1433 = vrot.slane %v1298, 2
  %v1434 = vsel %vm622, %v1432, %v1433
  %v1435 = vrot.slane %v1299, 2
  %v1436 = vrot.slane %v1300, 2
  %v1437 = vsel %vm622, %v1435, %v1436
  %v1438 = vrot.slane %v1301, 2
  %v1439 = vrot.slane %v1302, 2
  %v1440 = vsel %vm622, %v1438, %v1439
  %v1441 = vrot.slane %v1303, 2
  %v1442 = vrot.slane %v1304, 2
  %v1443 = vsel %vm622, %v1441, %v1442
  %v1444 = vrot.slane %v1305, 2
  %v1445 = vrot.slane %v1306, 2
  %v1446 = vsel %vm622, %v1444, %v1445
  %v1503 = vadd.f32 %v1191, %v1365
  %v1504 = vadd.f32 %v1192, %v1364
  %v1505 = vadd.f32 %v1193, %v1368
  %v1506 = vadd.f32 %v1194, %v1367
  %v1507 = vadd.f32 %v1195, %v1371
  %v1508 = vadd.f32 %v1196, %v1370
  %v1509 = vadd.f32 %v1197, %v1374
  %v1510 = vadd.f32 %v1198, %v1373
  %v1511 = vadd.f32 %v1199, %v1377
  %v1512 = vadd.f32 %v1200, %v1376
  %v1513 = vadd.f32 %v1201, %v1380
  %v1514 = vadd.f32 %v1202, %v1379
  %v1515 = vadd.f32 %v1203, %v1383
  %v1516 = vadd.f32 %v1204, %v1382
  %v1517 = vadd.f32 %v1205, %v1386
  %v1518 = vadd.f32 %v1206, %v1385
  %v1519 = vadd.f32 %v1207, %v1389
  %v1520 = vadd.f32 %v1208, %v1388
  %v1521 = vadd.f32 %v1209, %v1392
  %v1522 = vadd.f32 %v1210, %v1391
  %v1523 = vadd.f32 %v1211, %v1395
  %v1524 = vadd.f32 %v1212, %v1394
  %v1525 = vadd.f32 %v1213, %v1398
  %v1526 = vadd.f32 %v1214, %v1397
  %v1527 = vadd.f32 %v1215, %v1401
  %v1528 = vadd.f32 %v1216, %v1400
  %v1529 = vadd.f32 %v1217, %v1404
  %v1530 = vadd.f32 %v1218, %v1403
  %v1531 = vadd.f32 %v1219, %v1407
  %v1532 = vadd.f32 %v1220, %v1406
  %v1533 = vadd.f32 %v1221, %v1410
  %v1534 = vadd.f32 %v1222, %v1409
  %v1535 = vadd.f32 %v1223, %v1413
  %v1536 = vadd.f32 %v1224, %v1412
  %v1537 = vadd.f32 %v1225, %v1416
  %v1538 = vadd.f32 %v1226, %v1415
  %v1539 = vadd.f32 %v1227, %v1419
  %v1540 = vadd.f32 %v1228, %v1418
  %v1541 = vadd.f32 %v1229, %v1422
  %v1542 = vadd.f32 %v1230, %v1421
  %v1543 = vadd.f32 %v1231, %v1425
  %v1544 = vadd.f32 %v1232, %v1424
  %v1545 = vadd.f32 %v1233, %v1428
  %v1546 = vadd.f32 %v1234, %v1427
  %v1547 = vadd.f32 %v1235, %v1431
  %v1548 = vadd.f32 %v1236, %v1430
  %v1549 = vadd.f32 %v1237, %v1434
  %v1550 = vadd.f32 %v1238, %v1433
  %v1551 = vadd.f32 %v1239, %v1437
  %v1552 = vadd.f32 %v1240, %v1436
  %v1553 = vadd.f32 %v1241, %v1440
  %v1554 = vadd.f32 %v1242, %v1439
  %v1555 = vadd.f32 %v1243, %v1443
  %v1556 = vadd.f32 %v1244, %v1442
  %v1557 = vadd.f32 %v1245, %v1446
  %v1558 = vadd.f32 %v1246, %v1445
  %v1559 = vlaneseq
  %v1560 = vshrl.u32 %v1559, 7
  %v1561 = vsub.s32 6, %v1560
  %v1562 = vrot.slane %v75, %v1561
  %v1563 = vmul.f32 %v15, %v1562
  %v1564 = vmul.f32 %v16, %v1562
  %v1565 = vmul.f32 %v17, %v1562
  %v1566 = vmul.f32 %v18, %v1562
  %v1567 = vmul.f32 %v19, %v1562
  %v1568 = vmul.f32 %v20, %v1562
  %v1569 = vmul.f32 %v21, %v1562
  %v1570 = vmul.f32 %v22, %v1562
  %v1571 = vmul.f32 %v23, %v1562
  %v1572 = vmul.f32 %v24, %v1562
  %v1573 = vmul.f32 %v25, %v1562
  %v1574 = vmul.f32 %v26, %v1562
  %v1575 = vmul.f32 %v27, %v1562
  %v1576 = vmul.f32 %v28, %v1562
  %v1577 = vmul.f32 %v29, %v1562
  %v1578 = vmul.f32 %v30, %v1562
  %v1579 = vmul.f32 %v31, %v1562
  %v1580 = vmul.f32 %v32, %v1562
  %v1581 = vmul.f32 %v33, %v1562
  %v1582 = vmul.f32 %v34, %v1562
  %v1583 = vmul.f32 %v35, %v1562
  %v1584 = vmul.f32 %v36, %v1562
  %v1585 = vmul.f32 %v37, %v1562
  %v1586 = vmul.f32 %v38, %v1562
  %v1587 = vmul.f32 %v39, %v1562
  %v1588 = vmul.f32 %v40, %v1562
  %v1589 = vmul.f32 %v41, %v1562
  %v1590 = vmul.f32 %v42, %v1562
  %v1591 = vmul.f32 %v47, %v1562
  %v1592 = vmul.f32 %v48, %v1562
  %v1593 = vmul.f32 %v49, %v1562
  %v1594 = vmul.f32 %v50, %v1562
  %v1595 = vmul.f32 %v51, %v1562
  %v1596 = vmul.f32 %v52, %v1562
  %v1597 = vmul.f32 %v53, %v1562
  %v1598 = vmul.f32 %v54, %v1562
  %v1599 = vmul.f32 %v55, %v1562
  %v1600 = vmul.f32 %v56, %v1562
  %v1601 = vmul.f32 %v57, %v1562
  %v1602 = vmul.f32 %v58, %v1562
  %v1603 = vmul.f32 %v59, %v1562
  %v1604 = vmul.f32 %v60, %v1562
  %v1605 = vmul.f32 %v61, %v1562
  %v1606 = vmul.f32 %v62, %v1562
  %v1607 = vmul.f32 %v63, %v1562
  %v1608 = vmul.f32 %v64, %v1562
  %v1609 = vmul.f32 %v65, %v1562
  %v1610 = vmul.f32 %v66, %v1562
  %v1611 = vmul.f32 %v67, %v1562
  %v1612 = vmul.f32 %v68, %v1562
  %v1613 = vmul.f32 %v69, %v1562
  %v1614 = vmul.f32 %v70, %v1562
  %v1615 = vmul.f32 %v71, %v1562
  %v1616 = vmul.f32 %v72, %v1562
  %v1617 = vmul.f32 %v73, %v1562
  %v1618 = vmul.f32 %v74, %v1562
  %v1619 = vadd.f32 %v1503, %v1563
  %v1620 = vadd.f32 %v1504, %v1564
  %v1621 = vadd.f32 %v1505, %v1565
  %v1622 = vadd.f32 %v1506, %v1566
  %v1623 = vadd.f32 %v1507, %v1567
  %v1624 = vadd.f32 %v1508, %v1568
  %v1625 = vadd.f32 %v1509, %v1569
  %v1626 = vadd.f32 %v1510, %v1570
  %v1627 = vadd.f32 %v1511, %v1571
  %v1628 = vadd.f32 %v1512, %v1572
  %v1629 = vadd.f32 %v1513, %v1573
  %v1630 = vadd.f32 %v1514, %v1574
  %v1631 = vadd.f32 %v1515, %v1575
  %v1632 = vadd.f32 %v1516, %v1576
  %v1633 = vadd.f32 %v1517, %v1577
  %v1634 = vadd.f32 %v1518, %v1578
  %v1635 = vadd.f32 %v1519, %v1579
  %v1636 = vadd.f32 %v1520, %v1580
  %v1637 = vadd.f32 %v1521, %v1581
  %v1638 = vadd.f32 %v1522, %v1582
  %v1639 = vadd.f32 %v1523, %v1583
  %v1640 = vadd.f32 %v1524, %v1584
  %v1641 = vadd.f32 %v1525, %v1585
  %v1642 = vadd.f32 %v1526, %v1586
  %v1643 = vadd.f32 %v1527, %v1587
  %v1644 = vadd.f32 %v1528, %v1588
  %v1645 = vadd.f32 %v1529, %v1589
  %v1646 = vadd.f32 %v1530, %v1590
  %v1647 = vadd.f32 %v1531, %v1591
  %v1648 = vadd.f32 %v1532, %v1592
  %v1649 = vadd.f32 %v1533, %v1593
  %v1650 = vadd.f32 %v1534, %v1594
  %v1651 = vadd.f32 %v1535, %v1595
  %v1652 = vadd.f32 %v1536, %v1596
  %v1653 = vadd.f32 %v1537, %v1597
  %v1654 = vadd.f32 %v1538, %v1598
  %v1655 = vadd.f32 %v1539, %v1599
  %v1656 = vadd.f32 %v1540, %v1600
  %v1657 = vadd.f32 %v1541, %v1601
  %v1658 = vadd.f32 %v1542, %v1602
  %v1659 = vadd.f32 %v1543, %v1603
  %v1660 = vadd.f32 %v1544, %v1604
  %v1661 = vadd.f32 %v1545, %v1605
  %v1662 = vadd.f32 %v1546, %v1606
  %v1663 = vadd.f32 %v1547, %v1607
  %v1664 = vadd.f32 %v1548, %v1608
  %v1665 = vadd.f32 %v1549, %v1609
  %v1666 = vadd.f32 %v1550, %v1610
  %v1667 = vadd.f32 %v1551, %v1611
  %v1668 = vadd.f32 %v1552, %v1612
  %v1669 = vadd.f32 %v1553, %v1613
  %v1670 = vadd.f32 %v1554, %v1614
  %v1671 = vadd.f32 %v1555, %v1615
  %v1672 = vadd.f32 %v1556, %v1616
  %v1673 = vadd.f32 %v1557, %v1617
  %v1674 = vadd.f32 %v1558, %v1618
  %v1675 = vlaneseq
  %v1676 = vshrl.u32 %v1675, 7
  %v1677 = vsub.s32 7, %v1676
  %v1678 = vrot.slane %v75, %v1677
  %v1679 = vmul.f32 %v15, %v1678
  %v1680 = vmul.f32 %v16, %v1678
  %v1681 = vmul.f32 %v17, %v1678
  %v1682 = vmul.f32 %v18, %v1678
  %v1683 = vmul.f32 %v19, %v1678
  %v1684 = vmul.f32 %v20, %v1678
  %v1685 = vmul.f32 %v21, %v1678
  %v1686 = vmul.f32 %v22, %v1678
  %v1687 = vmul.f32 %v23, %v1678
  %v1688 = vmul.f32 %v24, %v1678
  %v1689 = vmul.f32 %v25, %v1678
  %v1690 = vmul.f32 %v26, %v1678
  %v1691 = vmul.f32 %v27, %v1678
  %v1692 = vmul.f32 %v28, %v1678
  %v1693 = vmul.f32 %v29, %v1678
  %v1694 = vmul.f32 %v30, %v1678
  %v1695 = vmul.f32 %v31, %v1678
  %v1696 = vmul.f32 %v32, %v1678
  %v1697 = vmul.f32 %v33, %v1678
  %v1698 = vmul.f32 %v34, %v1678
  %v1699 = vmul.f32 %v35, %v1678
  %v1700 = vmul.f32 %v36, %v1678
  %v1701 = vmul.f32 %v37, %v1678
  %v1702 = vmul.f32 %v38, %v1678
  %v1703 = vmul.f32 %v39, %v1678
  %v1704 = vmul.f32 %v40, %v1678
  %v1705 = vmul.f32 %v41, %v1678
  %v1706 = vmul.f32 %v42, %v1678
  %v1707 = vmul.f32 %v47, %v1678
  %v1708 = vmul.f32 %v48, %v1678
  %v1709 = vmul.f32 %v49, %v1678
  %v1710 = vmul.f32 %v50, %v1678
  %v1711 = vmul.f32 %v51, %v1678
  %v1712 = vmul.f32 %v52, %v1678
  %v1713 = vmul.f32 %v53, %v1678
  %v1714 = vmul.f32 %v54, %v1678
  %v1715 = vmul.f32 %v55, %v1678
  %v1716 = vmul.f32 %v56, %v1678
  %v1717 = vmul.f32 %v57, %v1678
  %v1718 = vmul.f32 %v58, %v1678
  %v1719 = vmul.f32 %v59, %v1678
  %v1720 = vmul.f32 %v60, %v1678
  %v1721 = vmul.f32 %v61, %v1678
  %v1722 = vmul.f32 %v62, %v1678
  %v1723 = vmul.f32 %v63, %v1678
  %v1724 = vmul.f32 %v64, %v1678
  %v1725 = vmul.f32 %v65, %v1678
  %v1726 = vmul.f32 %v66, %v1678
  %v1727 = vmul.f32 %v67, %v1678
  %v1728 = vmul.f32 %v68, %v1678
  %v1729 = vmul.f32 %v69, %v1678
  %v1730 = vmul.f32 %v70, %v1678
  %v1731 = vmul.f32 %v71, %v1678
  %v1732 = vmul.f32 %v72, %v1678
  %v1733 = vmul.f32 %v73, %v1678
  %v1734 = vmul.f32 %v74, %v1678
  %v1791 = vrot.slane %v1679, 1
  %v1792 = vrot.slane %v1680, 1
  %v1793 = vsel %vm309, %v1791, %v1792
  %v1794 = vrot.slane %v1681, 1
  %v1795 = vrot.slane %v1682, 1
  %v1796 = vsel %vm309, %v1794, %v1795
  %v1797 = vrot.slane %v1683, 1
  %v1798 = vrot.slane %v1684, 1
  %v1799 = vsel %vm309, %v1797, %v1798
  %v1800 = vrot.slane %v1685, 1
  %v1801 = vrot.slane %v1686, 1
  %v1802 = vsel %vm309, %v1800, %v1801
  %v1803 = vrot.slane %v1687, 1
  %v1804 = vrot.slane %v1688, 1
  %v1805 = vsel %vm309, %v1803, %v1804
  %v1806 = vrot.slane %v1689, 1
  %v1807 = vrot.slane %v1690, 1
  %v1808 = vsel %vm309, %v1806, %v1807
  %v1809 = vrot.slane %v1691, 1
  %v1810 = vrot.slane %v1692, 1
  %v1811 = vsel %vm309, %v1809, %v1810
  %v1812 = vrot.slane %v1693, 1
  %v1813 = vrot.slane %v1694, 1
  %v1814 = vsel %vm309, %v1812, %v1813
  %v1815 = vrot.slane %v1695, 1
  %v1816 = vrot.slane %v1696, 1
  %v1817 = vsel %vm309, %v1815, %v1816
  %v1818 = vrot.slane %v1697, 1
  %v1819 = vrot.slane %v1698, 1
  %v1820 = vsel %vm309, %v1818, %v1819
  %v1821 = vrot.slane %v1699, 1
  %v1822 = vrot.slane %v1700, 1
  %v1823 = vsel %vm309, %v1821, %v1822
  %v1824 = vrot.slane %v1701, 1
  %v1825 = vrot.slane %v1702, 1
  %v1826 = vsel %vm309, %v1824, %v1825
  %v1827 = vrot.slane %v1703, 1
  %v1828 = vrot.slane %v1704, 1
  %v1829 = vsel %vm309, %v1827, %v1828
  %v1830 = vrot.slane %v1705, 1
  %v1831 = vrot.slane %v1706, 1
  %v1832 = vsel %vm309, %v1830, %v1831
  %v1833 = vrot.slane %v1707, 1
  %v1834 = vrot.slane %v1708, 1
  %v1835 = vsel %vm309, %v1833, %v1834
  %v1836 = vrot.slane %v1709, 1
  %v1837 = vrot.slane %v1710, 1
  %v1838 = vsel %vm309, %v1836, %v1837
  %v1839 = vrot.slane %v1711, 1
  %v1840 = vrot.slane %v1712, 1
  %v1841 = vsel %vm309, %v1839, %v1840
  %v1842 = vrot.slane %v1713, 1
  %v1843 = vrot.slane %v1714, 1
  %v1844 = vsel %vm309, %v1842, %v1843
  %v1845 = vrot.slane %v1715, 1
  %v1846 = vrot.slane %v1716, 1
  %v1847 = vsel %vm309, %v1845, %v1846
  %v1848 = vrot.slane %v1717, 1
  %v1849 = vrot.slane %v1718, 1
  %v1850 = vsel %vm309, %v1848, %v1849
  %v1851 = vrot.slane %v1719, 1
  %v1852 = vrot.slane %v1720, 1
  %v1853 = vsel %vm309, %v1851, %v1852
  %v1854 = vrot.slane %v1721, 1
  %v1855 = vrot.slane %v1722, 1
  %v1856 = vsel %vm309, %v1854, %v1855
  %v1857 = vrot.slane %v1723, 1
  %v1858 = vrot.slane %v1724, 1
  %v1859 = vsel %vm309, %v1857, %v1858
  %v1860 = vrot.slane %v1725, 1
  %v1861 = vrot.slane %v1726, 1
  %v1862 = vsel %vm309, %v1860, %v1861
  %v1863 = vrot.slane %v1727, 1
  %v1864 = vrot.slane %v1728, 1
  %v1865 = vsel %vm309, %v1863, %v1864
  %v1866 = vrot.slane %v1729, 1
  %v1867 = vrot.slane %v1730, 1
  %v1868 = vsel %vm309, %v1866, %v1867
  %v1869 = vrot.slane %v1731, 1
  %v1870 = vrot.slane %v1732, 1
  %v1871 = vsel %vm309, %v1869, %v1870
  %v1872 = vrot.slane %v1733, 1
  %v1873 = vrot.slane %v1734, 1
  %v1874 = vsel %vm309, %v1872, %v1873
  %v1931 = vadd.f32 %v1619, %v1793
  %v1932 = vadd.f32 %v1620, %v1792
  %v1933 = vadd.f32 %v1621, %v1796
  %v1934 = vadd.f32 %v1622, %v1795
  %v1935 = vadd.f32 %v1623, %v1799
  %v1936 = vadd.f32 %v1624, %v1798
  %v1937 = vadd.f32 %v1625, %v1802
  %v1938 = vadd.f32 %v1626, %v1801
  %v1939 = vadd.f32 %v1627, %v1805
  %v1940 = vadd.f32 %v1628, %v1804
  %v1941 = vadd.f32 %v1629, %v1808
  %v1942 = vadd.f32 %v1630, %v1807
  %v1943 = vadd.f32 %v1631, %v1811
  %v1944 = vadd.f32 %v1632, %v1810
  %v1945 = vadd.f32 %v1633, %v1814
  %v1946 = vadd.f32 %v1634, %v1813
  %v1947 = vadd.f32 %v1635, %v1817
  %v1948 = vadd.f32 %v1636, %v1816
  %v1949 = vadd.f32 %v1637, %v1820
  %v1950 = vadd.f32 %v1638, %v1819
  %v1951 = vadd.f32 %v1639, %v1823
  %v1952 = vadd.f32 %v1640, %v1822
  %v1953 = vadd.f32 %v1641, %v1826
  %v1954 = vadd.f32 %v1642, %v1825
  %v1955 = vadd.f32 %v1643, %v1829
  %v1956 = vadd.f32 %v1644, %v1828
  %v1957 = vadd.f32 %v1645, %v1832
  %v1958 = vadd.f32 %v1646, %v1831
  %v1959 = vadd.f32 %v1647, %v1835
  %v1960 = vadd.f32 %v1648, %v1834
  %v1961 = vadd.f32 %v1649, %v1838
  %v1962 = vadd.f32 %v1650, %v1837
  %v1963 = vadd.f32 %v1651, %v1841
  %v1964 = vadd.f32 %v1652, %v1840
  %v1965 = vadd.f32 %v1653, %v1844
  %v1966 = vadd.f32 %v1654, %v1843
  %v1967 = vadd.f32 %v1655, %v1847
  %v1968 = vadd.f32 %v1656, %v1846
  %v1969 = vadd.f32 %v1657, %v1850
  %v1970 = vadd.f32 %v1658, %v1849
  %v1971 = vadd.f32 %v1659, %v1853
  %v1972 = vadd.f32 %v1660, %v1852
  %v1973 = vadd.f32 %v1661, %v1856
  %v1974 = vadd.f32 %v1662, %v1855
  %v1975 = vadd.f32 %v1663, %v1859
  %v1976 = vadd.f32 %v1664, %v1858
  %v1977 = vadd.f32 %v1665, %v1862
  %v1978 = vadd.f32 %v1666, %v1861
  %v1979 = vadd.f32 %v1667, %v1865
  %v1980 = vadd.f32 %v1668, %v1864
  %v1981 = vadd.f32 %v1669, %v1868
  %v1982 = vadd.f32 %v1670, %v1867
  %v1983 = vadd.f32 %v1671, %v1871
  %v1984 = vadd.f32 %v1672, %v1870
  %v1985 = vadd.f32 %v1673, %v1874
  %v1986 = vadd.f32 %v1674, %v1873
  %v1987 = vlaneseq
  %v1988 = vshrl.u32 %v1987, 7
  %v1989 = vsub.s32 0, %v1988
  %v1990 = vrot.slane %v76, %v1989
  %v1991 = vmul.f32 %v15, %v1990
  %v1992 = vmul.f32 %v16, %v1990
  %v1993 = vmul.f32 %v17, %v1990
  %v1994 = vmul.f32 %v18, %v1990
  %v1995 = vmul.f32 %v19, %v1990
  %v1996 = vmul.f32 %v20, %v1990
  %v1997 = vmul.f32 %v21, %v1990
  %v1998 = vmul.f32 %v22, %v1990
  %v1999 = vmul.f32 %v23, %v1990
  %v2000 = vmul.f32 %v24, %v1990
  %v2001 = vmul.f32 %v25, %v1990
  %v2002 = vmul.f32 %v26, %v1990
  %v2003 = vmul.f32 %v27, %v1990
  %v2004 = vmul.f32 %v28, %v1990
  %v2005 = vmul.f32 %v29, %v1990
  %v2006 = vmul.f32 %v30, %v1990
  %v2007 = vmul.f32 %v31, %v1990
  %v2008 = vmul.f32 %v32, %v1990
  %v2009 = vmul.f32 %v33, %v1990
  %v2010 = vmul.f32 %v34, %v1990
  %v2011 = vmul.f32 %v35, %v1990
  %v2012 = vmul.f32 %v36, %v1990
  %v2013 = vmul.f32 %v37, %v1990
  %v2014 = vmul.f32 %v38, %v1990
  %v2015 = vmul.f32 %v39, %v1990
  %v2016 = vmul.f32 %v40, %v1990
  %v2017 = vmul.f32 %v41, %v1990
  %v2018 = vmul.f32 %v42, %v1990
  %v2019 = vmul.f32 %v47, %v1990
  %v2020 = vmul.f32 %v48, %v1990
  %v2021 = vmul.f32 %v49, %v1990
  %v2022 = vmul.f32 %v50, %v1990
  %v2023 = vmul.f32 %v51, %v1990
  %v2024 = vmul.f32 %v52, %v1990
  %v2025 = vmul.f32 %v53, %v1990
  %v2026 = vmul.f32 %v54, %v1990
  %v2027 = vmul.f32 %v55, %v1990
  %v2028 = vmul.f32 %v56, %v1990
  %v2029 = vmul.f32 %v57, %v1990
  %v2030 = vmul.f32 %v58, %v1990
  %v2031 = vmul.f32 %v59, %v1990
  %v2032 = vmul.f32 %v60, %v1990
  %v2033 = vmul.f32 %v61, %v1990
  %v2034 = vmul.f32 %v62, %v1990
  %v2035 = vmul.f32 %v63, %v1990
  %v2036 = vmul.f32 %v64, %v1990
  %v2037 = vmul.f32 %v65, %v1990
  %v2038 = vmul.f32 %v66, %v1990
  %v2039 = vmul.f32 %v67, %v1990
  %v2040 = vmul.f32 %v68, %v1990
  %v2041 = vmul.f32 %v69, %v1990
  %v2042 = vmul.f32 %v70, %v1990
  %v2043 = vmul.f32 %v71, %v1990
  %v2044 = vmul.f32 %v72, %v1990
  %v2045 = vmul.f32 %v73, %v1990
  %v2046 = vmul.f32 %v74, %v1990
  %v2103 = vrot.slane %v1991, 2
  %v2104 = vrot.slane %v1992, 2
  %v2105 = vsel %vm622, %v2103, %v2104
  %v2106 = vrot.slane %v1993, 2
  %v2107 = vrot.slane %v1994, 2
  %v2108 = vsel %vm622, %v2106, %v2107
  %v2109 = vrot.slane %v1995, 2
  %v2110 = vrot.slane %v1996, 2
  %v2111 = vsel %vm622, %v2109, %v2110
  %v2112 = vrot.slane %v1997, 2
  %v2113 = vrot.slane %v1998, 2
  %v2114 = vsel %vm622, %v2112, %v2113
  %v2115 = vrot.slane %v1999, 2
  %v2116 = vrot.slane %v2000, 2
  %v2117 = vsel %vm622, %v2115, %v2116
  %v2118 = vrot.slane %v2001, 2
  %v2119 = vrot.slane %v2002, 2
  %v2120 = vsel %vm622, %v2118, %v2119
  %v2121 = vrot.slane %v2003, 2
  %v2122 = vrot.slane %v2004, 2
  %v2123 = vsel %vm622, %v2121, %v2122
  %v2124 = vrot.slane %v2005, 2
  %v2125 = vrot.slane %v2006, 2
  %v2126 = vsel %vm622, %v2124, %v2125
  %v2127 = vrot.slane %v2007, 2
  %v2128 = vrot.slane %v2008, 2
  %v2129 = vsel %vm622, %v2127, %v2128
  %v2130 = vrot.slane %v2009, 2
  %v2131 = vrot.slane %v2010, 2
  %v2132 = vsel %vm622, %v2130, %v2131
  %v2133 = vrot.slane %v2011, 2
  %v2134 = vrot.slane %v2012, 2
  %v2135 = vsel %vm622, %v2133, %v2134
  %v2136 = vrot.slane %v2013, 2
  %v2137 = vrot.slane %v2014, 2
  %v2138 = vsel %vm622, %v2136, %v2137
  %v2139 = vrot.slane %v2015, 2
  %v2140 = vrot.slane %v2016, 2
  %v2141 = vsel %vm622, %v2139, %v2140
  %v2142 = vrot.slane %v2017, 2
  %v2143 = vrot.slane %v2018, 2
  %v2144 = vsel %vm622, %v2142, %v2143
  %v2145 = vrot.slane %v2019, 2
  %v2146 = vrot.slane %v2020, 2
  %v2147 = vsel %vm622, %v2145, %v2146
  %v2148 = vrot.slane %v2021, 2
  %v2149 = vrot.slane %v2022, 2
  %v2150 = vsel %vm622, %v2148, %v2149
  %v2151 = vrot.slane %v2023, 2
  %v2152 = vrot.slane %v2024, 2
  %v2153 = vsel %vm622, %v2151, %v2152
  %v2154 = vrot.slane %v2025, 2
  %v2155 = vrot.slane %v2026, 2
  %v2156 = vsel %vm622, %v2154, %v2155
  %v2157 = vrot.slane %v2027, 2
  %v2158 = vrot.slane %v2028, 2
  %v2159 = vsel %vm622, %v2157, %v2158
  %v2160 = vrot.slane %v2029, 2
  %v2161 = vrot.slane %v2030, 2
  %v2162 = vsel %vm622, %v2160, %v2161
  %v2163 = vrot.slane %v2031, 2
  %v2164 = vrot.slane %v2032, 2
  %v2165 = vsel %vm622, %v2163, %v2164
  %v2166 = vrot.slane %v2033, 2
  %v2167 = vrot.slane %v2034, 2
  %v2168 = vsel %vm622, %v2166, %v2167
  %v2169 = vrot.slane %v2035, 2
  %v2170 = vrot.slane %v2036, 2
  %v2171 = vsel %vm622, %v2169, %v2170
  %v2172 = vrot.slane %v2037, 2
  %v2173 = vrot.slane %v2038, 2
  %v2174 = vsel %vm622, %v2172, %v2173
  %v2175 = vrot.slane %v2039, 2
  %v2176 = vrot.slane %v2040, 2
  %v2177 = vsel %vm622, %v2175, %v2176
  %v2178 = vrot.slane %v2041, 2
  %v2179 = vrot.slane %v2042, 2
  %v2180 = vsel %vm622, %v2178, %v2179
  %v2181 = vrot.slane %v2043, 2
  %v2182 = vrot.slane %v2044, 2
  %v2183 = vsel %vm622, %v2181, %v2182
  %v2184 = vrot.slane %v2045, 2
  %v2185 = vrot.slane %v2046, 2
  %v2186 = vsel %vm622, %v2184, %v2185
  %v2243 = vadd.f32 %v1931, %v2105
  %v2244 = vadd.f32 %v1932, %v2104
  %v2245 = vadd.f32 %v1933, %v2108
  %v2246 = vadd.f32 %v1934, %v2107
  %v2247 = vadd.f32 %v1935, %v2111
  %v2248 = vadd.f32 %v1936, %v2110
  %v2249 = vadd.f32 %v1937, %v2114
  %v2250 = vadd.f32 %v1938, %v2113
  %v2251 = vadd.f32 %v1939, %v2117
  %v2252 = vadd.f32 %v1940, %v2116
  %v2253 = vadd.f32 %v1941, %v2120
  %v2254 = vadd.f32 %v1942, %v2119
  %v2255 = vadd.f32 %v1943, %v2123
  %v2256 = vadd.f32 %v1944, %v2122
  %v2257 = vadd.f32 %v1945, %v2126
  %v2258 = vadd.f32 %v1946, %v2125
  %v2259 = vadd.f32 %v1947, %v2129
  %v2260 = vadd.f32 %v1948, %v2128
  %v2261 = vadd.f32 %v1949, %v2132
  %v2262 = vadd.f32 %v1950, %v2131
  %v2263 = vadd.f32 %v1951, %v2135
  %v2264 = vadd.f32 %v1952, %v2134
  %v2265 = vadd.f32 %v1953, %v2138
  %v2266 = vadd.f32 %v1954, %v2137
  %v2267 = vadd.f32 %v1955, %v2141
  %v2268 = vadd.f32 %v1956, %v2140
  %v2269 = vadd.f32 %v1957, %v2144
  %v2270 = vadd.f32 %v1958, %v2143
  %v2271 = vadd.f32 %v1959, %v2147
  %v2272 = vadd.f32 %v1960, %v2146
  %v2273 = vadd.f32 %v1961, %v2150
  %v2274 = vadd.f32 %v1962, %v2149
  %v2275 = vadd.f32 %v1963, %v2153
  %v2276 = vadd.f32 %v1964, %v2152
  %v2277 = vadd.f32 %v1965, %v2156
  %v2278 = vadd.f32 %v1966, %v2155
  %v2279 = vadd.f32 %v1967, %v2159
  %v2280 = vadd.f32 %v1968, %v2158
  %v2281 = vadd.f32 %v1969, %v2162
  %v2282 = vadd.f32 %v1970, %v2161
  %v2283 = vadd.f32 %v1971, %v2165
  %v2284 = vadd.f32 %v1972, %v2164
  %v2285 = vadd.f32 %v1973, %v2168
  %v2286 = vadd.f32 %v1974, %v2167
  %v2287 = vadd.f32 %v1975, %v2171
  %v2288 = vadd.f32 %v1976, %v2170
  %v2289 = vadd.f32 %v1977, %v2174
  %v2290 = vadd.f32 %v1978, %v2173
  %v2291 = vadd.f32 %v1979, %v2177
  %v2292 = vadd.f32 %v1980, %v2176
  %v2293 = vadd.f32 %v1981, %v2180
  %v2294 = vadd.f32 %v1982, %v2179
  %v2295 = vadd.f32 %v1983, %v2183
  %v2296 = vadd.f32 %v1984, %v2182
  %v2297 = vadd.f32 %v1985, %v2186
  %v2298 = vadd.f32 %v1986, %v2185
  %vm2299 = vcmask 31744
  %v2300 = vsel %vm2299, %v2243, 0.0
  %vm2301 = vcmask 29696
  %v2302 = vsel %vm2301, %v2244, 0.0
  %v2303 = vadd.f32 %v2300, %v2302
  %v2304 = vsel %vm2299, %v2245, 0.0
  %v2305 = vadd.f32 %v2303, %v2304
  %v2306 = vsel %vm2301, %v2246, 0.0
  %v2307 = vadd.f32 %v2305, %v2306
  %v2308 = vsel %vm2299, %v2247, 0.0
  %v2309 = vadd.f32 %v2307, %v2308
  %v2310 = vsel %vm2301, %v2248, 0.0
  %v2311 = vadd.f32 %v2309, %v2310
  %v2312 = vsel %vm2299, %v2249, 0.0
  %v2313 = vadd.f32 %v2311, %v2312
  %v2314 = vsel %vm2301, %v2250, 0.0
  %v2315 = vadd.f32 %v2313, %v2314
  %v2316 = vsel %vm2299, %v2251, 0.0
  %v2317 = vadd.f32 %v2315, %v2316
  %v2318 = vsel %vm2301, %v2252, 0.0
  %v2319 = vadd.f32 %v2317, %v2318
  %v2320 = vsel %vm2299, %v2253, 0.0
  %v2321 = vadd.f32 %v2319, %v2320
  %v2322 = vsel %vm2301, %v2254, 0.0
  %v2323 = vadd.f32 %v2321, %v2322
  %v2324 = vsel %vm2299, %v2255, 0.0
  %v2325 = vadd.f32 %v2323, %v2324
  %v2326 = vsel %vm2301, %v2256, 0.0
  %v2327 = vadd.f32 %v2325, %v2326
  %v2328 = vsel %vm2299, %v2257, 0.0
  %v2329 = vadd.f32 %v2327, %v2328
  %v2330 = vsel %vm2301, %v2258, 0.0
  %v2331 = vadd.f32 %v2329, %v2330
  %v2332 = vsel %vm2299, %v2259, 0.0
  %v2333 = vadd.f32 %v2331, %v2332
  %v2334 = vsel %vm2301, %v2260, 0.0
  %v2335 = vadd.f32 %v2333, %v2334
  %v2336 = vsel %vm2299, %v2261, 0.0
  %v2337 = vadd.f32 %v2335, %v2336
  %v2338 = vsel %vm2301, %v2262, 0.0
  %v2339 = vadd.f32 %v2337, %v2338
  %v2340 = vsel %vm2299, %v2263, 0.0
  %v2341 = vadd.f32 %v2339, %v2340
  %v2342 = vsel %vm2301, %v2264, 0.0
  %v2343 = vadd.f32 %v2341, %v2342
  %v2344 = vsel %vm2299, %v2265, 0.0
  %v2345 = vadd.f32 %v2343, %v2344
  %v2346 = vsel %vm2301, %v2266, 0.0
  %v2347 = vadd.f32 %v2345, %v2346
  %v2348 = vsel %vm2299, %v2267, 0.0
  %v2349 = vadd.f32 %v2347, %v2348
  %v2350 = vsel %vm2301, %v2268, 0.0
  %v2351 = vadd.f32 %v2349, %v2350
  %v2352 = vsel %vm2299, %v2269, 0.0
  %v2353 = vadd.f32 %v2351, %v2352
  %v2354 = vsel %vm2301, %v2270, 0.0
  %v2355 = vadd.f32 %v2353, %v2354
  %v2356 = vsel %vm2299, %v2271, 0.0
  %v2357 = vadd.f32 %v2355, %v2356
  %v2358 = vsel %vm2301, %v2272, 0.0
  %v2359 = vadd.f32 %v2357, %v2358
  %v2360 = vsel %vm2299, %v2273, 0.0
  %v2361 = vadd.f32 %v2359, %v2360
  %v2362 = vsel %vm2301, %v2274, 0.0
  %v2363 = vadd.f32 %v2361, %v2362
  %v2364 = vsel %vm2299, %v2275, 0.0
  %v2365 = vadd.f32 %v2363, %v2364
  %v2366 = vsel %vm2301, %v2276, 0.0
  %v2367 = vadd.f32 %v2365, %v2366
  %v2368 = vsel %vm2299, %v2277, 0.0
  %v2369 = vadd.f32 %v2367, %v2368
  %v2370 = vsel %vm2301, %v2278, 0.0
  %v2371 = vadd.f32 %v2369, %v2370
  %v2372 = vsel %vm2299, %v2279, 0.0
  %v2373 = vadd.f32 %v2371, %v2372
  %v2374 = vsel %vm2301, %v2280, 0.0
  %v2375 = vadd.f32 %v2373, %v2374
  %v2376 = vsel %vm2299, %v2281, 0.0
  %v2377 = vadd.f32 %v2375, %v2376
  %v2378 = vsel %vm2301, %v2282, 0.0
  %v2379 = vadd.f32 %v2377, %v2378
  %v2380 = vsel %vm2299, %v2283, 0.0
  %v2381 = vadd.f32 %v2379, %v2380
  %v2382 = vsel %vm2301, %v2284, 0.0
  %v2383 = vadd.f32 %v2381, %v2382
  %v2384 = vsel %vm2299, %v2285, 0.0
  %v2385 = vadd.f32 %v2383, %v2384
  %v2386 = vsel %vm2301, %v2286, 0.0
  %v2387 = vadd.f32 %v2385, %v2386
  %v2388 = vsel %vm2299, %v2287, 0.0
  %v2389 = vadd.f32 %v2387, %v2388
  %v2390 = vsel %vm2301, %v2288, 0.0
  %v2391 = vadd.f32 %v2389, %v2390
  %v2392 = vsel %vm2299, %v2289, 0.0
  %v2393 = vadd.f32 %v2391, %v2392
  %v2394 = vsel %vm2301, %v2290, 0.0
  %v2395 = vadd.f32 %v2393, %v2394
  %v2396 = vsel %vm2299, %v2291, 0.0
  %v2397 = vadd.f32 %v2395, %v2396
  %v2398 = vsel %vm2301, %v2292, 0.0
  %v2399 = vadd.f32 %v2397, %v2398
  %v2400 = vsel %vm2299, %v2293, 0.0
  %v2401 = vadd.f32 %v2399, %v2400
  %v2402 = vsel %vm2301, %v2294, 0.0
  %v2403 = vadd.f32 %v2401, %v2402
  %v2404 = vsel %vm2299, %v2295, 0.0
  %v2405 = vadd.f32 %v2403, %v2404
  %v2406 = vsel %vm2301, %v2296, 0.0
  %v2407 = vadd.f32 %v2405, %v2406
  %v2408 = vsel %vm2299, %v2297, 0.0
  %v2409 = vadd.f32 %v2407, %v2408
  %v2410 = vsel %vm2301, %v2298, 0.0
  %v2411 = vadd.f32 %v2409, %v2410
  %v2412 = vrot.slane %v2411, 4
  %v2413 = vadd.f32 %v2411, %v2412
  %v2414 = vrot.slane %v2413, 2
  %v2415 = vadd.f32 %v2413, %v2414
  %v2416 = vrot.slane %v2415, 1
  %v2417 = vadd.f32 %v2415, %v2416
  %v2418 = vmul.f32 %v2417, 0.0025510204
  %v2419 = vsub.f32 %v2243, %v2418
  %v2420 = vsub.f32 %v2244, %v2418
  %v2421 = vsub.f32 %v2245, %v2418
  %v2422 = vsub.f32 %v2246, %v2418
  %v2423 = vsub.f32 %v2247, %v2418
  %v2424 = vsub.f32 %v2248, %v2418
  %v2425 = vsub.f32 %v2249, %v2418
  %v2426 = vsub.f32 %v2250, %v2418
  %v2427 = vsub.f32 %v2251, %v2418
  %v2428 = vsub.f32 %v2252, %v2418
  %v2429 = vsub.f32 %v2253, %v2418
  %v2430 = vsub.f32 %v2254, %v2418
  %v2431 = vsub.f32 %v2255, %v2418
  %v2432 = vsub.f32 %v2256, %v2418
  %v2433 = vsub.f32 %v2257, %v2418
  %v2434 = vsub.f32 %v2258, %v2418
  %v2435 = vsub.f32 %v2259, %v2418
  %v2436 = vsub.f32 %v2260, %v2418
  %v2437 = vsub.f32 %v2261, %v2418
  %v2438 = vsub.f32 %v2262, %v2418
  %v2439 = vsub.f32 %v2263, %v2418
  %v2440 = vsub.f32 %v2264, %v2418
  %v2441 = vsub.f32 %v2265, %v2418
  %v2442 = vsub.f32 %v2266, %v2418
  %v2443 = vsub.f32 %v2267, %v2418
  %v2444 = vsub.f32 %v2268, %v2418
  %v2445 = vsub.f32 %v2269, %v2418
  %v2446 = vsub.f32 %v2270, %v2418
  %v2447 = vsub.f32 %v2271, %v2418
  %v2448 = vsub.f32 %v2272, %v2418
  %v2449 = vsub.f32 %v2273, %v2418
  %v2450 = vsub.f32 %v2274, %v2418
  %v2451 = vsub.f32 %v2275, %v2418
  %v2452 = vsub.f32 %v2276, %v2418
  %v2453 = vsub.f32 %v2277, %v2418
  %v2454 = vsub.f32 %v2278, %v2418
  %v2455 = vsub.f32 %v2279, %v2418
  %v2456 = vsub.f32 %v2280, %v2418
  %v2457 = vsub.f32 %v2281, %v2418
  %v2458 = vsub.f32 %v2282, %v2418
  %v2459 = vsub.f32 %v2283, %v2418
  %v2460 = vsub.f32 %v2284, %v2418
  %v2461 = vsub.f32 %v2285, %v2418
  %v2462 = vsub.f32 %v2286, %v2418
  %v2463 = vsub.f32 %v2287, %v2418
  %v2464 = vsub.f32 %v2288, %v2418
  %v2465 = vsub.f32 %v2289, %v2418
  %v2466 = vsub.f32 %v2290, %v2418
  %v2467 = vsub.f32 %v2291, %v2418
  %v2468 = vsub.f32 %v2292, %v2418
  %v2469 = vsub.f32 %v2293, %v2418
  %v2470 = vsub.f32 %v2294, %v2418
  %v2471 = vsub.f32 %v2295, %v2418
  %v2472 = vsub.f32 %v2296, %v2418
  %v2473 = vsub.f32 %v2297, %v2418
  %v2474 = vsub.f32 %v2298, %v2418
  %v2475 = vmul.f32 %v2419, %v2419
  %v2476 = vmul.f32 %v2420, %v2420
  %v2477 = vmul.f32 %v2421, %v2421
  %v2478 = vmul.f32 %v2422, %v2422
  %v2479 = vmul.f32 %v2423, %v2423
  %v2480 = vmul.f32 %v2424, %v2424
  %v2481 = vmul.f32 %v2425, %v2425
  %v2482 = vmul.f32 %v2426, %v2426
  %v2483 = vmul.f32 %v2427, %v2427
  %v2484 = vmul.f32 %v2428, %v2428
  %v2485 = vmul.f32 %v2429, %v2429
  %v2486 = vmul.f32 %v2430, %v2430
  %v2487 = vmul.f32 %v2431, %v2431
  %v2488 = vmul.f32 %v2432, %v2432
  %v2489 = vmul.f32 %v2433, %v2433
  %v2490 = vmul.f32 %v2434, %v2434
  %v2491 = vmul.f32 %v2435, %v2435
  %v2492 = vmul.f32 %v2436, %v2436
  %v2493 = vmul.f32 %v2437, %v2437
  %v2494 = vmul.f32 %v2438, %v2438
  %v2495 = vmul.f32 %v2439, %v2439
  %v2496 = vmul.f32 %v2440, %v2440
  %v2497 = vmul.f32 %v2441, %v2441
  %v2498 = vmul.f32 %v2442, %v2442
  %v2499 = vmul.f32 %v2443, %v2443
  %v2500 = vmul.f32 %v2444, %v2444
  %v2501 = vmul.f32 %v2445, %v2445
  %v2502 = vmul.f32 %v2446, %v2446
  %v2503 = vmul.f32 %v2447, %v2447
  %v2504 = vmul.f32 %v2448, %v2448
  %v2505 = vmul.f32 %v2449, %v2449
  %v2506 = vmul.f32 %v2450, %v2450
  %v2507 = vmul.f32 %v2451, %v2451
  %v2508 = vmul.f32 %v2452, %v2452
  %v2509 = vmul.f32 %v2453, %v2453
  %v2510 = vmul.f32 %v2454, %v2454
  %v2511 = vmul.f32 %v2455, %v2455
  %v2512 = vmul.f32 %v2456, %v2456
  %v2513 = vmul.f32 %v2457, %v2457
  %v2514 = vmul.f32 %v2458, %v2458
  %v2515 = vmul.f32 %v2459, %v2459
  %v2516 = vmul.f32 %v2460, %v2460
  %v2517 = vmul.f32 %v2461, %v2461
  %v2518 = vmul.f32 %v2462, %v2462
  %v2519 = vmul.f32 %v2463, %v2463
  %v2520 = vmul.f32 %v2464, %v2464
  %v2521 = vmul.f32 %v2465, %v2465
  %v2522 = vmul.f32 %v2466, %v2466
  %v2523 = vmul.f32 %v2467, %v2467
  %v2524 = vmul.f32 %v2468, %v2468
  %v2525 = vmul.f32 %v2469, %v2469
  %v2526 = vmul.f32 %v2470, %v2470
  %v2527 = vmul.f32 %v2471, %v2471
  %v2528 = vmul.f32 %v2472, %v2472
  %v2529 = vmul.f32 %v2473, %v2473
  %v2530 = vmul.f32 %v2474, %v2474
  %v2531 = vsel %vm2299, %v2475, 0.0
  %v2532 = vsel %vm2301, %v2476, 0.0
  %v2533 = vadd.f32 %v2531, %v2532
  %v2534 = vsel %vm2299, %v2477, 0.0
  %v2535 = vadd.f32 %v2533, %v2534
  %v2536 = vsel %vm2301, %v2478, 0.0
  %v2537 = vadd.f32 %v2535, %v2536
  %v2538 = vsel %vm2299, %v2479, 0.0
  %v2539 = vadd.f32 %v2537, %v2538
  %v2540 = vsel %vm2301, %v2480, 0.0
  %v2541 = vadd.f32 %v2539, %v2540
  %v2542 = vsel %vm2299, %v2481, 0.0
  %v2543 = vadd.f32 %v2541, %v2542
  %v2544 = vsel %vm2301, %v2482, 0.0
  %v2545 = vadd.f32 %v2543, %v2544
  %v2546 = vsel %vm2299, %v2483, 0.0
  %v2547 = vadd.f32 %v2545, %v2546
  %v2548 = vsel %vm2301, %v2484, 0.0
  %v2549 = vadd.f32 %v2547, %v2548
  %v2550 = vsel %vm2299, %v2485, 0.0
  %v2551 = vadd.f32 %v2549, %v2550
  %v2552 = vsel %vm2301, %v2486, 0.0
  %v2553 = vadd.f32 %v2551, %v2552
  %v2554 = vsel %vm2299, %v2487, 0.0
  %v2555 = vadd.f32 %v2553, %v2554
  %v2556 = vsel %vm2301, %v2488, 0.0
  %v2557 = vadd.f32 %v2555, %v2556
  %v2558 = vsel %vm2299, %v2489, 0.0
  %v2559 = vadd.f32 %v2557, %v2558
  %v2560 = vsel %vm2301, %v2490, 0.0
  %v2561 = vadd.f32 %v2559, %v2560
  %v2562 = vsel %vm2299, %v2491, 0.0
  %v2563 = vadd.f32 %v2561, %v2562
  %v2564 = vsel %vm2301, %v2492, 0.0
  %v2565 = vadd.f32 %v2563, %v2564
  %v2566 = vsel %vm2299, %v2493, 0.0
  %v2567 = vadd.f32 %v2565, %v2566
  %v2568 = vsel %vm2301, %v2494, 0.0
  %v2569 = vadd.f32 %v2567, %v2568
  %v2570 = vsel %vm2299, %v2495, 0.0
  %v2571 = vadd.f32 %v2569, %v2570
  %v2572 = vsel %vm2301, %v2496, 0.0
  %v2573 = vadd.f32 %v2571, %v2572
  %v2574 = vsel %vm2299, %v2497, 0.0
  %v2575 = vadd.f32 %v2573, %v2574
  %v2576 = vsel %vm2301, %v2498, 0.0
  %v2577 = vadd.f32 %v2575, %v2576
  %v2578 = vsel %vm2299, %v2499, 0.0
  %v2579 = vadd.f32 %v2577, %v2578
  %v2580 = vsel %vm2301, %v2500, 0.0
  %v2581 = vadd.f32 %v2579, %v2580
  %v2582 = vsel %vm2299, %v2501, 0.0
  %v2583 = vadd.f32 %v2581, %v2582
  %v2584 = vsel %vm2301, %v2502, 0.0
  %v2585 = vadd.f32 %v2583, %v2584
  %v2586 = vsel %vm2299, %v2503, 0.0
  %v2587 = vadd.f32 %v2585, %v2586
  %v2588 = vsel %vm2301, %v2504, 0.0
  %v2589 = vadd.f32 %v2587, %v2588
  %v2590 = vsel %vm2299, %v2505, 0.0
  %v2591 = vadd.f32 %v2589, %v2590
  %v2592 = vsel %vm2301, %v2506, 0.0
  %v2593 = vadd.f32 %v2591, %v2592
  %v2594 = vsel %vm2299, %v2507, 0.0
  %v2595 = vadd.f32 %v2593, %v2594
  %v2596 = vsel %vm2301, %v2508, 0.0
  %v2597 = vadd.f32 %v2595, %v2596
  %v2598 = vsel %vm2299, %v2509, 0.0
  %v2599 = vadd.f32 %v2597, %v2598
  %v2600 = vsel %vm2301, %v2510, 0.0
  %v2601 = vadd.f32 %v2599, %v2600
  %v2602 = vsel %vm2299, %v2511, 0.0
  %v2603 = vadd.f32 %v2601, %v2602
  %v2604 = vsel %vm2301, %v2512, 0.0
  %v2605 = vadd.f32 %v2603, %v2604
  %v2606 = vsel %vm2299, %v2513, 0.0
  %v2607 = vadd.f32 %v2605, %v2606
  %v2608 = vsel %vm2301, %v2514, 0.0
  %v2609 = vadd.f32 %v2607, %v2608
  %v2610 = vsel %vm2299, %v2515, 0.0
  %v2611 = vadd.f32 %v2609, %v2610
  %v2612 = vsel %vm2301, %v2516, 0.0
  %v2613 = vadd.f32 %v2611, %v2612
  %v2614 = vsel %vm2299, %v2517, 0.0
  %v2615 = vadd.f32 %v2613, %v2614
  %v2616 = vsel %vm2301, %v2518, 0.0
  %v2617 = vadd.f32 %v2615, %v2616
  %v2618 = vsel %vm2299, %v2519, 0.0
  %v2619 = vadd.f32 %v2617, %v2618
  %v2620 = vsel %vm2301, %v2520, 0.0
  %v2621 = vadd.f32 %v2619, %v2620
  %v2622 = vsel %vm2299, %v2521, 0.0
  %v2623 = vadd.f32 %v2621, %v2622
  %v2624 = vsel %vm2301, %v2522, 0.0
  %v2625 = vadd.f32 %v2623, %v2624
  %v2626 = vsel %vm2299, %v2523, 0.0
  %v2627 = vadd.f32 %v2625, %v2626
  %v2628 = vsel %vm2301, %v2524, 0.0
  %v2629 = vadd.f32 %v2627, %v2628
  %v2630 = vsel %vm2299, %v2525, 0.0
  %v2631 = vadd.f32 %v2629, %v2630
  %v2632 = vsel %vm2301, %v2526, 0.0
  %v2633 = vadd.f32 %v2631, %v2632
  %v2634 = vsel %vm2299, %v2527, 0.0
  %v2635 = vadd.f32 %v2633, %v2634
  %v2636 = vsel %vm2301, %v2528, 0.0
  %v2637 = vadd.f32 %v2635, %v2636
  %v2638 = vsel %vm2299, %v2529, 0.0
  %v2639 = vadd.f32 %v2637, %v2638
  %v2640 = vsel %vm2301, %v2530, 0.0
  %v2641 = vadd.f32 %v2639, %v2640
  %v2642 = vrot.slane %v2641, 4
  %v2643 = vadd.f32 %v2641, %v2642
  %v2644 = vrot.slane %v2643, 2
  %v2645 = vadd.f32 %v2643, %v2644
  %v2646 = vrot.slane %v2645, 1
  %v2647 = vadd.f32 %v2645, %v2646
  %vm2648 = vcmask 1040384
  %v2649 = vsel %vm2648, %v2417, %v2647
  %vm2650 = vcmask 25600
  %2651 = vst.msk [vmem:[%s2] sm:$0x3] %vm2650, %v2649
  // Predicated region
  $region10: #{depthwise_pointwise_forward.3} parent=0 // pred_check
    _
  $region11: #{depthwise_pointwise_forward.3} parent=0 // pred_check_branch
    %2653 = sbr.rel (0) target = $region13
  $region12: #{depthwise_pointwise_forward.3} parent=0 // pred_region
    _
  $region13: #{depthwise_pointwise_forward.3} parent=0 // pred_fallthru
    _
  // Predicated region
  $region14: #{depthwise_pointwise_forward.3} parent=0 // pred_check
    _
  $region15: #{depthwise_pointwise_forward.3} parent=0 // pred_check_branch
    %2655 = sbr.rel (0) target = $region17
  $region16: #{depthwise_pointwise_forward.3} parent=0 // pred_region
    _
  $region17: #{depthwise_pointwise_forward.3} parent=0 // pred_fallthru
    _

// kernel: depthwise_pointwise_forward.4
$region0: #{depthwise_pointwise_forward.4}
  #allocation0 [shape = 'u32[]', space=smem, size = 0x4, offset = 0x4, fixed_abs, tag = 'smem constant byte address 0x4 - core index']
  #allocation1 [shape = 'u32[144,128]{1,0:T(1,128)}', space=vmem, size = 0x12000, scoped, tag = 'internal scratch']
  %s0 = inlined_call_operand.vmem [shape: f32[2,16,16,4], index: 0, kind: input, shape index: {}]
  %s1 = inlined_call_operand.vmem [shape: f32[9,4], index: 1, kind: input, shape index: {}]
  %s2 = inlined_call_operand.vmem [shape: f32[1,4], index: 2, kind: input, shape index: {}]
  %s3 = inlined_call_operand.vmem [shape: f32[1,4], index: 3, kind: input, shape index: {}]
  %s4 = inlined_call_operand.vmem [shape: f32[4,8], index: 4, kind: input, shape index: {}]
  %s5 = inlined_call_operand.vmem [shape: f32[2,14,14,8], index: 5, kind: output, shape index: {0}]
  %s6 = inlined_call_operand.vmem [shape: f32[1,2,8], index: 6, kind: output, shape index: {1}]
  %7 = xla_tuple %s5, %s6
  %s8 = sld [smem:[#allocation0]]
  $region38: #{depthwise_pointwise_forward.4} parent=0
    _
  %s10 = ssub.s32 1, %s8
  %s11 = scalar_select 0, %s10, %s8
  // Predicated region
  $region2: #{depthwise_pointwise_forward.4} parent=0 // pred_check
    _
  $region3: #{depthwise_pointwise_forward.4} parent=0 // pred_check_branch
    %13 = sbr.rel (0) target = $region5
  $region4: #{depthwise_pointwise_forward.4} parent=0 // pred_region
    _
  $region5: #{depthwise_pointwise_forward.4} parent=0 // pred_fallthru
    _
  // Predicated region
  $region6: #{depthwise_pointwise_forward.4} parent=0 // pred_check
    _
  $region7: #{depthwise_pointwise_forward.4} parent=0 // pred_check_branch
    %15 = sbr.rel (0) target = $region9
  $region8: #{depthwise_pointwise_forward.4} parent=0 // pred_region
    _
  $region9: #{depthwise_pointwise_forward.4} parent=0 // pred_fallthru
    _
  // Predicated region
  $region10: #{depthwise_pointwise_forward.4} parent=0 // pred_check
    _
  $region11: #{depthwise_pointwise_forward.4} parent=0 // pred_check_branch
    %17 = sbr.rel (0) target = $region13
  $region12: #{depthwise_pointwise_forward.4} parent=0 // pred_region
    _
  $region13: #{depthwise_pointwise_forward.4} parent=0 // pred_fallthru
    _
  // Predicated region
  $region14: #{depthwise_pointwise_forward.4} parent=0 // pred_check
    _
  $region15: #{depthwise_pointwise_forward.4} parent=0 // pred_check_branch
    %19 = sbr.rel (0) target = $region17
  $region16: #{depthwise_pointwise_forward.4} parent=0 // pred_region
    _
  $region17: #{depthwise_pointwise_forward.4} parent=0 // pred_fallthru
    _
  // Predicated region
  $region18: #{depthwise_pointwise_forward.4} parent=0 // pred_check
    _
  $region19: #{depthwise_pointwise_forward.4} parent=0 // pred_check_branch
    %21 = sbr.rel (0) target = $region21
  $region20: #{depthwise_pointwise_forward.4} parent=0 // pred_region
    _
  $region21: #{depthwise_pointwise_forward.4} parent=0 // pred_fallthru
    _
  %v22 = vld [vmem:[%s0] sm:$0xff]
  %v23 = vld [vmem:[%s0 + $0x8] sm:$0xff]
  %v24 = vld [vmem:[%s0 + $0x10] sm:$0xff]
  %v25 = vld [vmem:[%s0 + $0x18] sm:$0xff]
  %v26 = vld [vmem:[%s0 + $0x20] sm:$0xff]
  %v27 = vld [vmem:[%s0 + $0x28] sm:$0xff]
  %v28 = vld [vmem:[%s0 + $0x30] sm:$0xff]
  %v29 = vld [vmem:[%s0 + $0x38] sm:$0xff]
  %v30 = vld [vmem:[%s0 + $0x40] sm:$0xff]
  %v31 = vld [vmem:[%s0 + $0x48] sm:$0xff]
  %v32 = vld [vmem:[%s0 + $0x50] sm:$0xff]
  %v33 = vld [vmem:[%s0 + $0x58] sm:$0xff]
  %v34 = vld [vmem:[%s0 + $0x60] sm:$0xff]
  %v35 = vld [vmem:[%s0 + $0x68] sm:$0xff]
  %v36 = vld [vmem:[%s0 + $0x70] sm:$0xff]
  %v37 = vld [vmem:[%s0 + $0x78] sm:$0xff]
  %v38 = vld [vmem:[%s0 + $0x80] sm:$0xff]
  %v39 = vld [vmem:[%s0 + $0x88] sm:$0xff]
  %v40 = vld [vmem:[%s0 + $0x90] sm:$0xff]
  %v41 = vld [vmem:[%s0 + $0x98] sm:$0xff]
  %v42 = vld [vmem:[%s0 + $0xa0] sm:$0xff]
  %v43 = vld [vmem:[%s0 + $0xa8] sm:$0xff]
  %v44 = vld [vmem:[%s0 + $0xb0] sm:$0xff]
  %v45 = vld [vmem:[%s0 + $0xb8] sm:$0xff]
  %v46 = vld [vmem:[%s0 + $0xc0] sm:$0xff]
  %v47 = vld [vmem:[%s0 + $0xc8] sm:$0xff]
  %v48 = vld [vmem:[%s0 + $0xd0] sm:$0xff]
  %v49 = vld [vmem:[%s0 + $0xd8] sm:$0xff]
  %v50 = vld [vmem:[%s0 + $0xe0] sm:$0xff]
  %v51 = vld [vmem:[%s0 + $0xe8] sm:$0xff]
  %v52 = vld [vmem:[%s0 + $0xf0] sm:$0xff]
  %v53 = vld [vmem:[%s0 + $0xf8] sm:$0xff]
  %v54 = vld [vmem:[%s0 + $0x100] sm:$0xff]
  %v55 = vld [vmem:[%s0 + $0x108] sm:$0xff]
  %v56 = vld [vmem:[%s0 + $0x110] sm:$0xff]
  %v57 = vld [vmem:[%s0 + $0x118] sm:$0xff]
  %v58 = vld [vmem:[%s0 + $0x120] sm:$0xff]
  %v59 = vld [vmem:[%s0 + $0x128] sm:$0xff]
  %v60 = vld [vmem:[%s0 + $0x130] sm:$0xff]
  %v61 = vld [vmem:[%s0 + $0x138] sm:$0xff]
  %v62 = vld [vmem:[%s0 + $0x140] sm:$0xff]
  %v63 = vld [vmem:[%s0 + $0x148] sm:$0xff]
  %v64 = vld [vmem:[%s0 + $0x150] sm:$0xff]
  %v65 = vld [vmem:[%s0 + $0x158] sm:$0xff]
  %v66 = vld [vmem:[%s0 + $0x160] sm:$0xff]
  %v67 = vld [vmem:[%s0 + $0x168] sm:$0xff]
  %v68 = vld [vmem:[%s0 + $0x170] sm:$0xff]
  %v69 = vld [vmem:[%s0 + $0x178] sm:$0xff]
  %v70 = vld [vmem:[%s0 + $0x180] sm:$0xff]
  %v71 = vld [vmem:[%s0 + $0x188] sm:$0xff]
  %v72 = vld [vmem:[%s0 + $0x190] sm:$0xff]
  %v73 = vld [vmem:[%s0 + $0x198] sm:$0xff]
  %v74 = vld [vmem:[%s0 + $0x1a0] sm:$0xff]
  %v75 = vld [vmem:[%s0 + $0x1a8] sm:$0xff]
  %v76 = vld [vmem:[%s0 + $0x1b0] sm:$0xff]
  %v77 = vld [vmem:[%s0 + $0x1b8] sm:$0xff]
  %v78 = vld [vmem:[%s0 + $0x1c0] sm:$0xff]
  %v79 = vld [vmem:[%s0 + $0x1c8] sm:$0xff]
  %v80 = vld [vmem:[%s0 + $0x1d0] sm:$0xff]
  %v81 = vld [vmem:[%s0 + $0x1d8] sm:$0xff]
  %v82 = vld [vmem:[%s0 + $0x1e0] sm:$0xff]
  %v83 = vld [vmem:[%s0 + $0x1e8] sm:$0xff]
  %v84 = vld [vmem:[%s0 + $0x1f0] sm:$0xff]
  %v85 = vld [vmem:[%s0 + $0x1f8] sm:$0xff]
  %v86 = vld [vmem:[%s1] sm:$0xff]
  %v87 = vld [vmem:[%s1 + $0x8] sm:$0x1]
  %v88 = vlaneseq
  %v89 = vshrl.u32 %v88, 7
  %v90 = vsub.s32 0, %v89
  %v91 = vrot.slane %v86, %v90
  %v92 = vmul.f32 %v22, %v91
  %v93 = vmul.f32 %v23, %v91
  %v94 = vmul.f32 %v24, %v91
  %v95 = vmul.f32 %v25, %v91
  %v96 = vmul.f32 %v26, %v91
  %v97 = vmul.f32 %v27, %v91
  %v98 = vmul.f32 %v28, %v91
  %v99 = vmul.f32 %v29, %v91
  %v100 = vmul.f32 %v30, %v91
  %v101 = vmul.f32 %v31, %v91
  %v102 = vmul.f32 %v32, %v91
  %v103 = vmul.f32 %v33, %v91
  %v104 = vmul.f32 %v34, %v91
  %v105 = vmul.f32 %v35, %v91
  %v106 = vmul.f32 %v36, %v91
  %v107 = vmul.f32 %v37, %v91
  %v108 = vmul.f32 %v38, %v91
  %v109 = vmul.f32 %v39, %v91
  %v110 = vmul.f32 %v40, %v91
  %v111 = vmul.f32 %v41, %v91
  %v112 = vmul.f32 %v42, %v91
  %v113 = vmul.f32 %v43, %v91
  %v114 = vmul.f32 %v44, %v91
  %v115 = vmul.f32 %v45, %v91
  %v116 = vmul.f32 %v46, %v91
  %v117 = vmul.f32 %v47, %v91
  %v118 = vmul.f32 %v48, %v91
  %v119 = vmul.f32 %v49, %v91
  %v120 = vmul.f32 %v54, %v91
  %v121 = vmul.f32 %v55, %v91
  %v122 = vmul.f32 %v56, %v91
  %v123 = vmul.f32 %v57, %v91
  %v124 = vmul.f32 %v58, %v91
  %v125 = vmul.f32 %v59, %v91
  %v126 = vmul.f32 %v60, %v91
  %v127 = vmul.f32 %v61, %v91
  %v128 = vmul.f32 %v62, %v91
  %v129 = vmul.f32 %v63, %v91
  %v130 = vmul.f32 %v64, %v91
  %v131 = vmul.f32 %v65, %v91
  %v132 = vmul.f32 %v66, %v91
  %v133 = vmul.f32 %v67, %v91
  %v134 = vmul.f32 %v68, %v91
  %v135 = vmul.f32 %v69, %v91
  %v136 = vmul.f32 %v70, %v91
  %v137 = vmul.f32 %v71, %v91
  %v138 = vmul.f32 %v72, %v91
  %v139 = vmul.f32 %v73, %v91
  %v140 = vmul.f32 %v74, %v91
  %v141 = vmul.f32 %v75, %v91
  %v142 = vmul.f32 %v76, %v91
  %v143 = vmul.f32 %v77, %v91
  %v144 = vmul.f32 %v78, %v91
  %v145 = vmul.f32 %v79, %v91
  %v146 = vmul.f32 %v80, %v91
  %v147 = vmul.f32 %v81, %v91
  %v148 = vadd.f32 %v92, 0.0
  %v149 = vadd.f32 %v93, 0.0
  %v150 = vadd.f32 %v94, 0.0
  %v151 = vadd.f32 %v95, 0.0
  %v152 = vadd.f32 %v96, 0.0
  %v153 = vadd.f32 %v97, 0.0
  %v154 = vadd.f32 %v98, 0.0
  %v155 = vadd.f32 %v99, 0.0
  %v156 = vadd.f32 %v100, 0.0
  %v157 = vadd.f32 %v101, 0.0
  %v158 = vadd.f32 %v102, 0.0
  %v159 = vadd.f32 %v103, 0.0
  %v160 = vadd.f32 %v104, 0.0
  %v161 = vadd.f32 %v105, 0.0
  %v162 = vadd.f32 %v106, 0.0
  %v163 = vadd.f32 %v107, 0.0
  %v164 = vadd.f32 %v108, 0.0
  %v165 = vadd.f32 %v109, 0.0
  %v166 = vadd.f32 %v110, 0.0
  %v167 = vadd.f32 %v111, 0.0
  %v168 = vadd.f32 %v112, 0.0
  %v169 = vadd.f32 %v113, 0.0
  %v170 = vadd.f32 %v114, 0.0
  %v171 = vadd.f32 %v115, 0.0
  %v172 = vadd.f32 %v116, 0.0
  %v173 = vadd.f32 %v117, 0.0
  %v174 = vadd.f32 %v118, 0.0
  %v175 = vadd.f32 %v119, 0.0
  %v176 = vadd.f32 %v120, 0.0
  %v177 = vadd.f32 %v121, 0.0
  %v178 = vadd.f32 %v122, 0.0
  %v179 = vadd.f32 %v123, 0.0
  %v180 = vadd.f32 %v124, 0.0
  %v181 = vadd.f32 %v125, 0.0
  %v182 = vadd.f32 %v126, 0.0
  %v183 = vadd.f32 %v127, 0.0
  %v184 = vadd.f32 %v128, 0.0
  %v185 = vadd.f32 %v129, 0.0
  %v186 = vadd.f32 %v130, 0.0
  %v187 = vadd.f32 %v131, 0.0
  %v188 = vadd.f32 %v132, 0.0
  %v189 = vadd.f32 %v133, 0.0
  %v190 = vadd.f32 %v134, 0.0
  %v191 = vadd.f32 %v135, 0.0
  %v192 = vadd.f32 %v136, 0.0
  %v193 = vadd.f32 %v137, 0.0
  %v194 = vadd.f32 %v138, 0.0
  %v195 = vadd.f32 %v139, 0.0
  %v196 = vadd.f32 %v140, 0.0
  %v197 = vadd.f32 %v141, 0.0
  %v198 = vadd.f32 %v142, 0.0
  %v199 = vadd.f32 %v143, 0.0
  %v200 = vadd.f32 %v144, 0.0
  %v201 = vadd.f32 %v145, 0.0
  %v202 = vadd.f32 %v146, 0.0
  %v203 = vadd.f32 %v147, 0.0
  %v204 = vlaneseq
  %v205 = vshrl.u32 %v204, 7
  %v206 = vsub.s32 1, %v205
  %v207 = vrot.slane %v86, %v206
  %v208 = vmul.f32 %v22, %v207
  %v209 = vmul.f32 %v23, %v207
  %v210 = vmul.f32 %v24, %v207
  %v211 = vmul.f32 %v25, %v207
  %v212 = vmul.f32 %v26, %v207
  %v213 = vmul.f32 %v27, %v207
  %v214 = vmul.f32 %v28, %v207
  %v215 = vmul.f32 %v29, %v207
  %v216 = vmul.f32 %v30, %v207
  %v217 = vmul.f32 %v31, %v207
  %v218 = vmul.f32 %v32, %v207
  %v219 = vmul.f32 %v33, %v207
  %v220 = vmul.f32 %v34, %v207
  %v221 = vmul.f32 %v35, %v207
  %v222 = vmul.f32 %v36, %v207
  %v223 = vmul.f32 %v37, %v207
  %v224 = vmul.f32 %v38, %v207
  %v225 = vmul.f32 %v39, %v207
  %v226 = vmul.f32 %v40, %v207
  %v227 = vmul.f32 %v41, %v207
  %v228 = vmul.f32 %v42, %v207
  %v229 = vmul.f32 %v43, %v207
  %v230 = vmul.f32 %v44, %v207
  %v231 = vmul.f32 %v45, %v207
  %v232 = vmul.f32 %v46, %v207
  %v233 = vmul.f32 %v47, %v207
  %v234 = vmul.f32 %v48, %v207
  %v235 = vmul.f32 %v49, %v207
  %v236 = vmul.f32 %v54, %v207
  %v237 = vmul.f32 %v55, %v207
  %v238 = vmul.f32 %v56, %v207
  %v239 = vmul.f32 %v57, %v207
  %v240 = vmul.f32 %v58, %v207
  %v241 = vmul.f32 %v59, %v207
  %v242 = vmul.f32 %v60, %v207
  %v243 = vmul.f32 %v61, %v207
  %v244 = vmul.f32 %v62, %v207
  %v245 = vmul.f32 %v63, %v207
  %v246 = vmul.f32 %v64, %v207
  %v247 = vmul.f32 %v65, %v207
  %v248 = vmul.f32 %v66, %v207
  %v249 = vmul.f32 %v67, %v207
  %v250 = vmul.f32 %v68, %v207
  %v251 = vmul.f32 %v69, %v207
  %v252 = vmul.f32 %v70, %v207
  %v253 = vmul.f32 %v71, %v207
  %v254 = vmul.f32 %v72, %v207
  %v255 = vmul.f32 %v73, %v207
  %v256 = vmul.f32 %v74, %v207
  %v257 = vmul.f32 %v75, %v207
  %v258 = vmul.f32 %v76, %v207
  %v259 = vmul.f32 %v77, %v207
  %v260 = vmul.f32 %v78, %v207
  %v261 = vmul.f32 %v79, %v207
  %v262 = vmul.f32 %v80, %v207
  %v263 = vmul.f32 %v81, %v207
  %vm320 = vcmask 1046528
  %v321 = vrot.slane %v208, 1
  %v322 = vrot.slane %v209, 1
  %v323 = vsel %vm320, %v321, %v322
  %v324 = vrot.slane %v210, 1
  %v325 = vrot.slane %v211, 1
  %v326 = vsel %vm320, %v324, %v325
  %v327 = vrot.slane %v212, 1
  %v328 = vrot.slane %v213, 1
  %v329 = vsel %vm320, %v327, %v328
  %v330 = vrot.slane %v214, 1
  %v331 = vrot.slane %v215, 1
  %v332 = vsel %vm320, %v330, %v331
  %v333 = vrot.slane %v216, 1
  %v334 = vrot.slane %v217, 1
  %v335 = vsel %vm320, %v333, %v334
  %v336 = vrot.slane %v218, 1
  %v337 = vrot.slane %v219, 1
  %v338 = vsel %vm320, %v336, %v337
  %v339 = vrot.slane %v220, 1
  %v340 = vrot.slane %v221, 1
  %v341 = vsel %vm320, %v339, %v340
  %v342 = vrot.slane %v222, 1
  %v343 = vrot.slane %v223, 1
  %v344 = vsel %vm320, %v342, %v343
  %v345 = vrot.slane %v224, 1
  %v346 = vrot.slane %v225, 1
  %v347 = vsel %vm320, %v345, %v346
  %v348 = vrot.slane %v226, 1
  %v349 = vrot.slane %v227, 1
  %v350 = vsel %vm320, %v348, %v349
  %v351 = vrot.slane %v228, 1
  %v352 = vrot.slane %v229, 1
  %v353 = vsel %vm320, %v351, %v352
  %v354 = vrot.slane %v230, 1
  %v355 = vrot.slane %v231, 1
  %v356 = vsel %vm320, %v354, %v355
  %v357 = vrot.slane %v232, 1
  %v358 = vrot.slane %v233, 1
  %v359 = vsel %vm320, %v357, %v358
  %v360 = vrot.slane %v234, 1
  %v361 = vrot.slane %v235, 1
  %v362 = vsel %vm320, %v360, %v361
  %v363 = vrot.slane %v236, 1
  %v364 = vrot.slane %v237, 1
  %v365 = vsel %vm320, %v363, %v364
  %v366 = vrot.slane %v238, 1
  %v367 = vrot.slane %v239, 1
  %v368 = vsel %vm320, %v366, %v367
  %v369 = vrot.slane %v240, 1
  %v370 = vrot.slane %v241, 1
  %v371 = vsel %vm320, %v369, %v370
  %v372 = vrot.slane %v242, 1
  %v373 = vrot.slane %v243, 1
  %v374 = vsel %vm320, %v372, %v373
  %v375 = vrot.slane %v244, 1
  %v376 = vrot.slane %v245, 1
  %v377 = vsel %vm320, %v375, %v376
  %v378 = vrot.slane %v246, 1
  %v379 = vrot.slane %v247, 1
  %v380 = vsel %vm320, %v378, %v379
  %v381 = vrot.slane %v248, 1
  %v382 = vrot.slane %v249, 1
  %v383 = vsel %vm320, %v381, %v382
  %v384 = vrot.slane %v250, 1
  %v385 = vrot.slane %v251, 1
  %v386 = vsel %vm320, %v384, %v385
  %v387 = vrot.slane %v252, 1
  %v388 = vrot.slane %v253, 1
  %v389 = vsel %vm320, %v387, %v388
  %v390 = vrot.slane %v254, 1
  %v391 = vrot.slane %v255, 1
  %v392 = vsel %vm320, %v390, %v391
  %v393 = vrot.slane %v256, 1
  %v394 = vrot.slane %v257, 1
  %v395 = vsel %vm320, %v393, %v394
  %v396 = vrot.slane %v258, 1
  %v397 = vrot.slane %v259, 1
  %v398 = vsel %vm320, %v396, %v397
  %v399 = vrot.slane %v260, 1
  %v400 = vrot.slane %v261, 1
  %v401 = vsel %vm320, %v399, %v400
  %v402 = vrot.slane %v262, 1
  %v403 = vrot.slane %v263, 1
  %v404 = vsel %vm320, %v402, %v403
  %v461 = vadd.f32 %v148, %v323
  %v462 = vadd.f32 %v149, %v322
  %v463 = vadd.f32 %v150, %v326
  %v464 = vadd.f32 %v151, %v325
  %v465 = vadd.f32 %v152, %v329
  %v466 = vadd.f32 %v153, %v328
  %v467 = vadd.f32 %v154, %v332
  %v468 = vadd.f32 %v155, %v331
  %v469 = vadd.f32 %v156, %v335
  %v470 = vadd.f32 %v157, %v334
  %v471 = vadd.f32 %v158, %v338
  %v472 = vadd.f32 %v159, %v337
  %v473 = vadd.f32 %v160, %v341
  %v474 = vadd.f32 %v161, %v340
  %v475 = vadd.f32 %v162, %v344
  %v476 = vadd.f32 %v163, %v343
  %v477 = vadd.f32 %v164, %v347
  %v478 = vadd.f32 %v165, %v346
  %v479 = vadd.f32 %v166, %v350
  %v480 = vadd.f32 %v167, %v349
  %v481 = vadd.f32 %v168, %v353
  %v482 = vadd.f32 %v169, %v352
  %v483 = vadd.f32 %v170, %v356
  %v484 = vadd.f32 %v171, %v355
  %v485 = vadd.f32 %v172, %v359
  %v486 = vadd.f32 %v173, %v358
  %v487 = vadd.f32 %v174, %v362
  %v488 = vadd.f32 %v175, %v361
  %v489 = vadd.f32 %v176, %v365
  %v490 = vadd.f32 %v177, %v364
  %v491 = vadd.f32 %v178, %v368
  %v492 = vadd.f32 %v179, %v367
  %v493 = vadd.f32 %v180, %v371
  %v494 = vadd.f32 %v181, %v370
  %v495 = vadd.f32 %v182, %v374
  %v496 = vadd.f32 %v183, %v373
  %v497 = vadd.f32 %v184, %v377
  %v498 = vadd.f32 %v185, %v376
  %v499 = vadd.f32 %v186, %v380
  %v500 = vadd.f32 %v187, %v379
  %v501 = vadd.f32 %v188, %v383
  %v502 = vadd.f32 %v189, %v382
  %v503 = vadd.f32 %v190, %v386
  %v504 = vadd.f32 %v191, %v385
  %v505 = vadd.f32 %v192, %v389
  %v506 = vadd.f32 %v193, %v388
  %v507 = vadd.f32 %v194, %v392
  %v508 = vadd.f32 %v195, %v391
  %v509 = vadd.f32 %v196, %v395
  %v510 = vadd.f32 %v197, %v394
  %v511 = vadd.f32 %v198, %v398
  %v512 = vadd.f32 %v199, %v397
  %v513 = vadd.f32 %v200, %v401
  %v514 = vadd.f32 %v201, %v400
  %v515 = vadd.f32 %v202, %v404
  %v516 = vadd.f32 %v203, %v403
  %v517 = vlaneseq
  %v518 = vshrl.u32 %v517, 7
  %v519 = vsub.s32 2, %v518
  %v520 = vrot.slane %v86, %v519
  %v521 = vmul.f32 %v22, %v520
  %v522 = vmul.f32 %v23, %v520
  %v523 = vmul.f32 %v24, %v520
  %v524 = vmul.f32 %v25, %v520
  %v525 = vmul.f32 %v26, %v520
  %v526 = vmul.f32 %v27, %v520
  %v527 = vmul.f32 %v28, %v520
  %v528 = vmul.f32 %v29, %v520
  %v529 = vmul.f32 %v30, %v520
  %v530 = vmul.f32 %v31, %v520
  %v531 = vmul.f32 %v32, %v520
  %v532 = vmul.f32 %v33, %v520
  %v533 = vmul.f32 %v34, %v520
  %v534 = vmul.f32 %v35, %v520
  %v535 = vmul.f32 %v36, %v520
  %v536 = vmul.f32 %v37, %v520
  %v537 = vmul.f32 %v38, %v520
  %v538 = vmul.f32 %v39, %v520
  %v539 = vmul.f32 %v40, %v520
  %v540 = vmul.f32 %v41, %v520
  %v541 = vmul.f32 %v42, %v520
  %v542 = vmul.f32 %v43, %v520
  %v543 = vmul.f32 %v44, %v520
  %v544 = vmul.f32 %v45, %v520
  %v545 = vmul.f32 %v46, %v520
  %v546 = vmul.f32 %v47, %v520
  %v547 = vmul.f32 %v48, %v520
  %v548 = vmul.f32 %v49, %v520
  %v549 = vmul.f32 %v54, %v520
  %v550 = vmul.f32 %v55, %v520
  %v551 = vmul.f32 %v56, %v520
  %v552 = vmul.f32 %v57, %v520
  %v553 = vmul.f32 %v58, %v520
  %v554 = vmul.f32 %v59, %v520
  %v555 = vmul.f32 %v60, %v520
  %v556 = vmul.f32 %v61, %v520
  %v557 = vmul.f32 %v62, %v520
  %v558 = vmul.f32 %v63, %v520
  %v559 = vmul.f32 %v64, %v520
  %v560 = vmul.f32 %v65, %v520
  %v561 = vmul.f32 %v66, %v520
  %v562 = vmul.f32 %v67, %v520
  %v563 = vmul.f32 %v68, %v520
  %v564 = vmul.f32 %v69, %v520
  %v565 = vmul.f32 %v70, %v520
  %v566 = vmul.f32 %v71, %v520
  %v567 = vmul.f32 %v72, %v520
  %v568 = vmul.f32 %v73, %v520
  %v569 = vmul.f32 %v74, %v520
  %v570 = vmul.f32 %v75, %v520
  %v571 = vmul.f32 %v76, %v520
  %v572 = vmul.f32 %v77, %v520
  %v573 = vmul.f32 %v78, %v520
  %v574 = vmul.f32 %v79, %v520
  %v575 = vmul.f32 %v80, %v520
  %v576 = vmul.f32 %v81, %v520
  %vm633 = vcmask 1045504
  %v634 = vrot.slane %v521, 2
  %v635 = vrot.slane %v522, 2
  %v636 = vsel %vm633, %v634, %v635
  %v637 = vrot.slane %v523, 2
  %v638 = vrot.slane %v524, 2
  %v639 = vsel %vm633, %v637, %v638
  %v640 = vrot.slane %v525, 2
  %v641 = vrot.slane %v526, 2
  %v642 = vsel %vm633, %v640, %v641
  %v643 = vrot.slane %v527, 2
  %v644 = vrot.slane %v528, 2
  %v645 = vsel %vm633, %v643, %v644
  %v646 = vrot.slane %v529, 2
  %v647 = vrot.slane %v530, 2
  %v648 = vsel %vm633, %v646, %v647
  %v649 = vrot.slane %v531, 2
  %v650 = vrot.slane %v532, 2
  %v651 = vsel %vm633, %v649, %v650
  %v652 = vrot.slane %v533, 2
  %v653 = vrot.slane %v534, 2
  %v654 = vsel %vm633, %v652, %v653
  %v655 = vrot.slane %v535, 2
  %v656 = vrot.slane %v536, 2
  %v657 = vsel %vm633, %v655, %v656
  %v658 = vrot.slane %v537, 2
  %v659 = vrot.slane %v538, 2
  %v660 = vsel %vm633, %v658, %v659
  %v661 = vrot.slane %v539, 2
  %v662 = vrot.slane %v540, 2
  %v663 = vsel %vm633, %v661, %v662
  %v664 = vrot.slane %v541, 2
  %v665 = vrot.slane %v542, 2
  %v666 = vsel %vm633, %v664, %v665
  %v667 = vrot.slane %v543, 2
  %v668 = vrot.slane %v544, 2
  %v669 = vsel %vm633, %v667, %v668
  %v670 = vrot.slane %v545, 2
  %v671 = vrot.slane %v546, 2
  %v672 = vsel %vm633, %v670, %v671
  %v673 = vrot.slane %v547, 2
  %v674 = vrot.slane %v548, 2
  %v675 = vsel %vm633, %v673, %v674
  %v676 = vrot.slane %v549, 2
  %v677 = vrot.slane %v550, 2
  %v678 = vsel %vm633, %v676, %v677
  %v679 = vrot.slane %v551, 2
  %v680 = vrot.slane %v552, 2
  %v681 = vsel %vm633, %v679, %v680
  %v682 = vrot.slane %v553, 2
  %v683 = vrot.slane %v554, 2
  %v684 = vsel %vm633, %v682, %v683
  %v685 = vrot.slane %v555, 2
  %v686 = vrot.slane %v556, 2
  %v687 = vsel %vm633, %v685, %v686
  %v688 = vrot.slane %v557, 2
  %v689 = vrot.slane %v558, 2
  %v690 = vsel %vm633, %v688, %v689
  %v691 = vrot.slane %v559, 2
  %v692 = vrot.slane %v560, 2
  %v693 = vsel %vm633, %v691, %v692
  %v694 = vrot.slane %v561, 2
  %v695 = vrot.slane %v562, 2
  %v696 = vsel %vm633, %v694, %v695
  %v697 = vrot.slane %v563, 2
  %v698 = vrot.slane %v564, 2
  %v699 = vsel %vm633, %v697, %v698
  %v700 = vrot.slane %v565, 2
  %v701 = vrot.slane %v566, 2
  %v702 = vsel %vm633, %v700, %v701
  %v703 = vrot.slane %v567, 2
  %v704 = vrot.slane %v568, 2
  %v705 = vsel %vm633, %v703, %v704
  %v706 = vrot.slane %v569, 2
  %v707 = vrot.slane %v570, 2
  %v708 = vsel %vm633, %v706, %v707
  %v709 = vrot.slane %v571, 2
  %v710 = vrot.slane %v572, 2
  %v711 = vsel %vm633, %v709, %v710
  %v712 = vrot.slane %v573, 2
  %v713 = vrot.slane %v574, 2
  %v714 = vsel %vm633, %v712, %v713
  %v715 = vrot.slane %v575, 2
  %v716 = vrot.slane %v576, 2
  %v717 = vsel %vm633, %v715, %v716
  %v774 = vadd.f32 %v461, %v636
  %v775 = vadd.f32 %v462, %v635
  %v776 = vadd.f32 %v463, %v639
  %v777 = vadd.f32 %v464, %v638
  %v778 = vadd.f32 %v465, %v642
  %v779 = vadd.f32 %v466, %v641
  %v780 = vadd.f32 %v467, %v645
  %v781 = vadd.f32 %v468, %v644
  %v782 = vadd.f32 %v469, %v648
  %v783 = vadd.f32 %v470, %v647
  %v784 = vadd.f32 %v471, %v651
  %v785 = vadd.f32 %v472, %v650
  %v786 = vadd.f32 %v473, %v654
  %v787 = vadd.f32 %v474, %v653
  %v788 = vadd.f32 %v475, %v657
  %v789 = vadd.f32 %v476, %v656
  %v790 = vadd.f32 %v477, %v660
  %v791 = vadd.f32 %v478, %v659
  %v792 = vadd.f32 %v479, %v663
  %v793 = vadd.f32 %v480, %v662
  %v794 = vadd.f32 %v481, %v666
  %v795 = vadd.f32 %v482, %v665
  %v796 = vadd.f32 %v483, %v669
  %v797 = vadd.f32 %v484, %v668
  %v798 = vadd.f32 %v485, %v672
  %v799 = vadd.f32 %v486, %v671
  %v800 = vadd.f32 %v487, %v675
  %v801 = vadd.f32 %v488, %v674
  %v802 = vadd.f32 %v489, %v678
  %v803 = vadd.f32 %v490, %v677
  %v804 = vadd.f32 %v491, %v681
  %v805 = vadd.f32 %v492, %v680
  %v806 = vadd.f32 %v493, %v684
  %v807 = vadd.f32 %v494, %v683
  %v808 = vadd.f32 %v495, %v687
  %v809 = vadd.f32 %v496, %v686
  %v810 = vadd.f32 %v497, %v690
  %v811 = vadd.f32 %v498, %v689
  %v812 = vadd.f32 %v499, %v693
  %v813 = vadd.f32 %v500, %v692
  %v814 = vadd.f32 %v501, %v696
  %v815 = vadd.f32 %v502, %v695
  %v816 = vadd.f32 %v503, %v699
  %v817 = vadd.f32 %v504, %v698
  %v818 = vadd.f32 %v505, %v702
  %v819 = vadd.f32 %v506, %v701
  %v820 = vadd.f32 %v507, %v705
  %v821 = vadd.f32 %v508, %v704
  %v822 = vadd.f32 %v509, %v708
  %v823 = vadd.f32 %v510, %v707
  %v824 = vadd.f32 %v511, %v711
  %v825 = vadd.f32 %v512, %v710
  %v826 = vadd.f32 %v513, %v714
  %v827 = vadd.f32 %v514, %v713
  %v828 = vadd.f32 %v515, %v717
  %v829 = vadd.f32 %v516, %v716
  %v830 = vlaneseq
  %v831 = vshrl.u32 %v830, 7
  %v832 = vsub.s32 3, %v831
  %v833 = vrot.slane %v86, %v832
  %v834 = vmul.f32 %v24, %v833
  %v835 = vmul.f32 %v25, %v833
  %v836 = vmul.f32 %v26, %v833
  %v837 = vmul.f32 %v27, %v833
  %v838 = vmul.f32 %v28, %v833
  %v839 = vmul.f32 %v29, %v833
  %v840 = vmul.f32 %v30, %v833
  %v841 = vmul.f32 %v31, %v833
  %v842 = vmul.f32 %v32, %v833
  %v843 = vmul.f32 %v33, %v833
  %v844 = vmul.f32 %v34, %v833
  %v845 = vmul.f32 %v35, %v833
  %v846 = vmul.f32 %v36, %v833
  %v847 = vmul.f32 %v37, %v833
  %v848 = vmul.f32 %v38, %v833
  %v849 = vmul.f32 %v39, %v833
  %v850 = vmul.f32 %v40, %v833
  %v851 = vmul.f32 %v41, %v833
  %v852 = vmul.f32 %v42, %v833
  %v853 = vmul.f32 %v43, %v833
  %v854 = vmul.f32 %v44, %v833
  %v855 = vmul.f32 %v45, %v833
  %v856 = vmul.f32 %v46, %v833
  %v857 = vmul.f32 %v47, %v833
  %v858 = vmul.f32 %v48, %v833
  %v859 = vmul.f32 %v49, %v833
  %v860 = vmul.f32 %v50, %v833
  %v861 = vmul.f32 %v51, %v833
  %v862 = vmul.f32 %v56, %v833
  %v863 = vmul.f32 %v57, %v833
  %v864 = vmul.f32 %v58, %v833
  %v865 = vmul.f32 %v59, %v833
  %v866 = vmul.f32 %v60, %v833
  %v867 = vmul.f32 %v61, %v833
  %v868 = vmul.f32 %v62, %v833
  %v869 = vmul.f32 %v63, %v833
  %v870 = vmul.f32 %v64, %v833
  %v871 = vmul.f32 %v65, %v833
  %v872 = vmul.f32 %v66, %v833
  %v873 = vmul.f32 %v67, %v833
  %v874 = vmul.f32 %v68, %v833
  %v875 = vmul.f32 %v69, %v833
  %v876 = vmul.f32 %v70, %v833
  %v877 = vmul.f32 %v71, %v833
  %v878 = vmul.f32 %v72, %v833
  %v879 = vmul.f32 %v73, %v833
  %v880 = vmul.f32 %v74, %v833
  %v881 = vmul.f32 %v75, %v833
  %v882 = vmul.f32 %v76, %v833
  %v883 = vmul.f32 %v77, %v833
  %v884 = vmul.f32 %v78, %v833
  %v885 = vmul.f32 %v79, %v833
  %v886 = vmul.f32 %v80, %v833
  %v887 = vmul.f32 %v81, %v833
  %v888 = vmul.f32 %v82, %v833
  %v889 = vmul.f32 %v83, %v833
  %v890 = vadd.f32 %v774, %v834
  %v891 = vadd.f32 %v775, %v835
  %v892 = vadd.f32 %v776, %v836
  %v893 = vadd.f32 %v777, %v837
  %v894 = vadd.f32 %v778, %v838
  %v895 = vadd.f32 %v779, %v839
  %v896 = vadd.f32 %v780, %v840
  %v897 = vadd.f32 %v781, %v841
  %v898 = vadd.f32 %v782, %v842
  %v899 = vadd.f32 %v783, %v843
  %v900 = vadd.f32 %v784, %v844
  %v901 = vadd.f32 %v785, %v845
  %v902 = vadd.f32 %v786, %v846
  %v903 = vadd.f32 %v787, %v847
  %v904 = vadd.f32 %v788, %v848
  %v905 = vadd.f32 %v789, %v849
  %v906 = vadd.f32 %v790, %v850
  %v907 = vadd.f32 %v791, %v851
  %v908 = vadd.f32 %v792, %v852
  %v909 = vadd.f32 %v793, %v853
  %v910 = vadd.f32 %v794, %v854
  %v911 = vadd.f32 %v795, %v855
  %v912 = vadd.f32 %v796, %v856
  %v913 = vadd.f32 %v797, %v857
  %v914 = vadd.f32 %v798, %v858
  %v915 = vadd.f32 %v799, %v859
  %v916 = vadd.f32 %v800, %v860
  %v917 = vadd.f32 %v801, %v861
  %v918 = vadd.f32 %v802, %v862
  %v919 = vadd.f32 %v803, %v863
  %v920 = vadd.f32 %v804, %v864
  %v921 = vadd.f32 %v805, %v865
  %v922 = vadd.f32 %v806, %v866
  %v923 = vadd.f32 %v807, %v867
  %v924 = vadd.f32 %v808, %v868
  %v925 = vadd.f32 %v809, %v869
  %v926 = vadd.f32 %v810, %v870
  %v927 = vadd.f32 %v811, %v871
  %v928 = vadd.f32 %v812, %v872
  %v929 = vadd.f32 %v813, %v873
  %v930 = vadd.f32 %v814, %v874
  %v931 = vadd.f32 %v815, %v875
  %v932 = vadd.f32 %v816, %v876
  %v933 = vadd.f32 %v817, %v877
  %v934 = vadd.f32 %v818, %v878
  %v935 = vadd.f32 %v819, %v879
  %v936 = vadd.f32 %v820, %v880
  %v937 = vadd.f32 %v821, %v881
  %v938 = vadd.f32 %v822, %v882
  %v939 = vadd.f32 %v823, %v883
  %v940 = vadd.f32 %v824, %v884
  %v941 = vadd.f32 %v825, %v885
  %v942 = vadd.f32 %v826, %v886
  %v943 = vadd.f32 %v827, %v887
  %v944 = vadd.f32 %v828, %v888
  %v945 = vadd.f32 %v829, %v889
  %v946 = vlaneseq
  %v947 = vshrl.u32 %v946, 7
  %v948 = vsub.s32 4, %v947
  %v949 = vrot.slane %v86, %v948
  %v950 = vmul.f32 %v24, %v949
  %v951 = vmul.f32 %v25, %v949
  %v952 = vmul.f32 %v26, %v949
  %v953 = vmul.f32 %v27, %v949
  %v954 = vmul.f32 %v28, %v949
  %v955 = vmul.f32 %v29, %v949
  %v956 = vmul.f32 %v30, %v949
  %v957 = vmul.f32 %v31, %v949
  %v958 = vmul.f32 %v32, %v949
  %v959 = vmul.f32 %v33, %v949
  %v960 = vmul.f32 %v34, %v949
  %v961 = vmul.f32 %v35, %v949
  %v962 = vmul.f32 %v36, %v949
  %v963 = vmul.f32 %v37, %v949
  %v964 = vmul.f32 %v38, %v949
  %v965 = vmul.f32 %v39, %v949
  %v966 = vmul.f32 %v40, %v949
  %v967 = vmul.f32 %v41, %v949
  %v968 = vmul.f32 %v42, %v949
  %v969 = vmul.f32 %v43, %v949
  %v970 = vmul.f32 %v44, %v949
  %v971 = vmul.f32 %v45, %v949
  %v972 = vmul.f32 %v46, %v949
  %v973 = vmul.f32 %v47, %v949
  %v974 = vmul.f32 %v48, %v949
  %v975 = vmul.f32 %v49, %v949
  %v976 = vmul.f32 %v50, %v949
  %v977 = vmul.f32 %v51, %v949
  %v978 = vmul.f32 %v56, %v949
  %v979 = vmul.f32 %v57, %v949
  %v980 = vmul.f32 %v58, %v949
  %v981 = vmul.f32 %v59, %v949
  %v982 = vmul.f32 %v60, %v949
  %v983 = vmul.f32 %v61, %v949
  %v984 = vmul.f32 %v62, %v949
  %v985 = vmul.f32 %v63, %v949
  %v986 = vmul.f32 %v64, %v949
  %v987 = vmul.f32 %v65, %v949
  %v988 = vmul.f32 %v66, %v949
  %v989 = vmul.f32 %v67, %v949
  %v990 = vmul.f32 %v68, %v949
  %v991 = vmul.f32 %v69, %v949
  %v992 = vmul.f32 %v70, %v949
  %v993 = vmul.f32 %v71, %v949
  %v994 = vmul.f32 %v72, %v949
  %v995 = vmul.f32 %v73, %v949
  %v996 = vmul.f32 %v74, %v949
  %v997 = vmul.f32 %v75, %v949
  %v998 = vmul.f32 %v76, %v949
  %v999 = vmul.f32 %v77, %v949
  %v1000 = vmul.f32 %v78, %v949
  %v1001 = vmul.f32 %v79, %v949
  %v1002 = vmul.f32 %v80, %v949
  %v1003 = vmul.f32 %v81, %v949
  %v1004 = vmul.f32 %v82, %v949
  %v1005 = vmul.f32 %v83, %v949
  %v1062 = vrot.slane %v950, 1
  %v1063 = vrot.slane %v951, 1
  %v1064 = vsel %vm320, %v1062, %v1063
  %v1065 = vrot.slane %v952, 1
  %v1066 = vrot.slane %v953, 1
  %v1067 = vsel %vm320, %v1065, %v1066
  %v1068 = vrot.slane %v954, 1
  %v1069 = vrot.slane %v955, 1
  %v1070 = vsel %vm320, %v1068, %v1069
  %v1071 = vrot.slane %v956, 1
  %v1072 = vrot.slane %v957, 1
  %v1073 = vsel %vm320, %v1071, %v1072
  %v1074 = vrot.slane %v958, 1
  %v1075 = vrot.slane %v959, 1
  %v1076 = vsel %vm320, %v1074, %v1075
  %v1077 = vrot.slane %v960, 1
  %v1078 = vrot.slane %v961, 1
  %v1079 = vsel %vm320, %v1077, %v1078
  %v1080 = vrot.slane %v962, 1
  %v1081 = vrot.slane %v963, 1
  %v1082 = vsel %vm320, %v1080, %v1081
  %v1083 = vrot.slane %v964, 1
  %v1084 = vrot.slane %v965, 1
  %v1085 = vsel %vm320, %v1083, %v1084
  %v1086 = vrot.slane %v966, 1
  %v1087 = vrot.slane %v967, 1
  %v1088 = vsel %vm320, %v1086, %v1087
  %v1089 = vrot.slane %v968, 1
  %v1090 = vrot.slane %v969, 1
  %v1091 = vsel %vm320, %v1089, %v1090
  %v1092 = vrot.slane %v970, 1
  %v1093 = vrot.slane %v971, 1
  %v1094 = vsel %vm320, %v1092, %v1093
  %v1095 = vrot.slane %v972, 1
  %v1096 = vrot.slane %v973, 1
  %v1097 = vsel %vm320, %v1095, %v1096
  %v1098 = vrot.slane %v974, 1
  %v1099 = vrot.slane %v975, 1
  %v1100 = vsel %vm320, %v1098, %v1099
  %v1101 = vrot.slane %v976, 1
  %v1102 = vrot.slane %v977, 1
  %v1103 = vsel %vm320, %v1101, %v1102
  %v1104 = vrot.slane %v978, 1
  %v1105 = vrot.slane %v979, 1
  %v1106 = vsel %vm320, %v1104, %v1105
  %v1107 = vrot.slane %v980, 1
  %v1108 = vrot.slane %v981, 1
  %v1109 = vsel %vm320, %v1107, %v1108
  %v1110 = vrot.slane %v982, 1
  %v1111 = vrot.slane %v983, 1
  %v1112 = vsel %vm320, %v1110, %v1111
  %v1113 = vrot.slane %v984, 1
  %v1114 = vrot.slane %v985, 1
  %v1115 = vsel %vm320, %v1113, %v1114
  %v1116 = vrot.slane %v986, 1
  %v1117 = vrot.slane %v987, 1
  %v1118 = vsel %vm320, %v1116, %v1117
  %v1119 = vrot.slane %v988, 1
  %v1120 = vrot.slane %v989, 1
  %v1121 = vsel %vm320, %v1119, %v1120
  %v1122 = vrot.slane %v990, 1
  %v1123 = vrot.slane %v991, 1
  %v1124 = vsel %vm320, %v1122, %v1123
  %v1125 = vrot.slane %v992, 1
  %v1126 = vrot.slane %v993, 1
  %v1127 = vsel %vm320, %v1125, %v1126
  %v1128 = vrot.slane %v994, 1
  %v1129 = vrot.slane %v995, 1
  %v1130 = vsel %vm320, %v1128, %v1129
  %v1131 = vrot.slane %v996, 1
  %v1132 = vrot.slane %v997, 1
  %v1133 = vsel %vm320, %v1131, %v1132
  %v1134 = vrot.slane %v998, 1
  %v1135 = vrot.slane %v999, 1
  %v1136 = vsel %vm320, %v1134, %v1135
  %v1137 = vrot.slane %v1000, 1
  %v1138 = vrot.slane %v1001, 1
  %v1139 = vsel %vm320, %v1137, %v1138
  %v1140 = vrot.slane %v1002, 1
  %v1141 = vrot.slane %v1003, 1
  %v1142 = vsel %vm320, %v1140, %v1141
  %v1143 = vrot.slane %v1004, 1
  %v1144 = vrot.slane %v1005, 1
  %v1145 = vsel %vm320, %v1143, %v1144
  %v1202 = vadd.f32 %v890, %v1064
  %v1203 = vadd.f32 %v891, %v1063
  %v1204 = vadd.f32 %v892, %v1067
  %v1205 = vadd.f32 %v893, %v1066
  %v1206 = vadd.f32 %v894, %v1070
  %v1207 = vadd.f32 %v895, %v1069
  %v1208 = vadd.f32 %v896, %v1073
  %v1209 = vadd.f32 %v897, %v1072
  %v1210 = vadd.f32 %v898, %v1076
  %v1211 = vadd.f32 %v899, %v1075
  %v1212 = vadd.f32 %v900, %v1079
  %v1213 = vadd.f32 %v901, %v1078
  %v1214 = vadd.f32 %v902, %v1082
  %v1215 = vadd.f32 %v903, %v1081
  %v1216 = vadd.f32 %v904, %v1085
  %v1217 = vadd.f32 %v905, %v1084
  %v1218 = vadd.f32 %v906, %v1088
  %v1219 = vadd.f32 %v907, %v1087
  %v1220 = vadd.f32 %v908, %v1091
  %v1221 = vadd.f32 %v909, %v1090
  %v1222 = vadd.f32 %v910, %v1094
  %v1223 = vadd.f32 %v911, %v1093
  %v1224 = vadd.f32 %v912, %v1097
  %v1225 = vadd.f32 %v913, %v1096
  %v1226 = vadd.f32 %v914, %v1100
  %v1227 = vadd.f32 %v915, %v1099
  %v1228 = vadd.f32 %v916, %v1103
  %v1229 = vadd.f32 %v917, %v1102
  %v1230 = vadd.f32 %v918, %v1106
  %v1231 = vadd.f32 %v919, %v1105
  %v1232 = vadd.f32 %v920, %v1109
  %v1233 = vadd.f32 %v921, %v1108
  %v1234 = vadd.f32 %v922, %v1112
  %v1235 = vadd.f32 %v923, %v1111
  %v1236 = vadd.f32 %v924, %v1115
  %v1237 = vadd.f32 %v925, %v1114
  %v1238 = vadd.f32 %v926, %v1118
  %v1239 = vadd.f32 %v927, %v1117
  %v1240 = vadd.f32 %v928, %v1121
  %v1241 = vadd.f32 %v929, %v1120
  %v1242 = vadd.f32 %v930, %v1124
  %v1243 = vadd.f32 %v931, %v1123
  %v1244 = vadd.f32 %v932, %v1127
  %v1245 = vadd.f32 %v933, %v1126
  %v1246 = vadd.f32 %v934, %v1130
  %v1247 = vadd.f32 %v935, %v1129
  %v1248 = vadd.f32 %v936, %v1133
  %v1249 = vadd.f32 %v937, %v1132
  %v1250 = vadd.f32 %v938, %v1136
  %v1251 = vadd.f32 %v939, %v1135
  %v1252 = vadd.f32 %v940, %v1139
  %v1253 = vadd.f32 %v941, %v1138
  %v1254 = vadd.f32 %v942, %v1142
  %v1255 = vadd.f32 %v943, %v1141
  %v1256 = vadd.f32 %v944, %v1145
  %v1257 = vadd.f32 %v945, %v1144
  %v1258 = vlaneseq
  %v1259 = vshrl.u32 %v1258, 7
  %v1260 = vsub.s32 5, %v1259
  %v1261 = vrot.slane %v86, %v1260
  %v1262 = vmul.f32 %v24, %v1261
  %v1263 = vmul.f32 %v25, %v1261
  %v1264 = vmul.f32 %v26, %v1261
  %v1265 = vmul.f32 %v27, %v1261
  %v1266 = vmul.f32 %v28, %v1261
  %v1267 = vmul.f32 %v29, %v1261
  %v1268 = vmul.f32 %v30, %v1261
  %v1269 = vmul.f32 %v31, %v1261
  %v1270 = vmul.f32 %v32, %v1261
  %v1271 = vmul.f32 %v33, %v1261
  %v1272 = vmul.f32 %v34, %v1261
  %v1273 = vmul.f32 %v35, %v1261
  %v1274 = vmul.f32 %v36, %v1261
  %v1275 = vmul.f32 %v37, %v1261
  %v1276 = vmul.f32 %v38, %v1261
  %v1277 = vmul.f32 %v39, %v1261
  %v1278 = vmul.f32 %v40, %v1261
  %v1279 = vmul.f32 %v41, %v1261
  %v1280 = vmul.f32 %v42, %v1261
  %v1281 = vmul.f32 %v43, %v1261
  %v1282 = vmul.f32 %v44, %v1261
  %v1283 = vmul.f32 %v45, %v1261
  %v1284 = vmul.f32 %v46, %v1261
  %v1285 = vmul.f32 %v47, %v1261
  %v1286 = vmul.f32 %v48, %v1261
  %v1287 = vmul.f32 %v49, %v1261
  %v1288 = vmul.f32 %v50, %v1261
  %v1289 = vmul.f32 %v51, %v1261
  %v1290 = vmul.f32 %v56, %v1261
  %v1291 = vmul.f32 %v57, %v1261
  %v1292 = vmul.f32 %v58, %v1261
  %v1293 = vmul.f32 %v59, %v1261
  %v1294 = vmul.f32 %v60, %v1261
  %v1295 = vmul.f32 %v61, %v1261
  %v1296 = vmul.f32 %v62, %v1261
  %v1297 = vmul.f32 %v63, %v1261
  %v1298 = vmul.f32 %v64, %v1261
  %v1299 = vmul.f32 %v65, %v1261
  %v1300 = vmul.f32 %v66, %v1261
  %v1301 = vmul.f32 %v67, %v1261
  %v1302 = vmul.f32 %v68, %v1261
  %v1303 = vmul.f32 %v69, %v1261
  %v1304 = vmul.f32 %v70, %v1261
  %v1305 = vmul.f32 %v71, %v1261
  %v1306 = vmul.f32 %v72, %v1261
  %v1307 = vmul.f32 %v73, %v1261
  %v1308 = vmul.f32 %v74, %v1261
  %v1309 = vmul.f32 %v75, %v1261
  %v1310 = vmul.f32 %v76, %v1261
  %v1311 = vmul.f32 %v77, %v1261
  %v1312 = vmul.f32 %v78, %v1261
  %v1313 = vmul.f32 %v79, %v1261
  %v1314 = vmul.f32 %v80, %v1261
  %v1315 = vmul.f32 %v81, %v1261
  %v1316 = vmul.f32 %v82, %v1261
  %v1317 = vmul.f32 %v83, %v1261
  %v1374 = vrot.slane %v1262, 2
  %v1375 = vrot.slane %v1263, 2
  %v1376 = vsel %vm633, %v1374, %v1375
  %v1377 = vrot.slane %v1264, 2
  %v1378 = vrot.slane %v1265, 2
  %v1379 = vsel %vm633, %v1377, %v1378
  %v1380 = vrot.slane %v1266, 2
  %v1381 = vrot.slane %v1267, 2
  %v1382 = vsel %vm633, %v1380, %v1381
  %v1383 = vrot.slane %v1268, 2
  %v1384 = vrot.slane %v1269, 2
  %v1385 = vsel %vm633, %v1383, %v1384
  %v1386 = vrot.slane %v1270, 2
  %v1387 = vrot.slane %v1271, 2
  %v1388 = vsel %vm633, %v1386, %v1387
  %v1389 = vrot.slane %v1272, 2
  %v1390 = vrot.slane %v1273, 2
  %v1391 = vsel %vm633, %v1389, %v1390
  %v1392 = vrot.slane %v1274, 2
  %v1393 = vrot.slane %v1275, 2
  %v1394 = vsel %vm633, %v1392, %v1393
  %v1395 = vrot.slane %v1276, 2
  %v1396 = vrot.slane %v1277, 2
  %v1397 = vsel %vm633, %v1395, %v1396
  %v1398 = vrot.slane %v1278, 2
  %v1399 = vrot.slane %v1279, 2
  %v1400 = vsel %vm633, %v1398, %v1399
  %v1401 = vrot.slane %v1280, 2
  %v1402 = vrot.slane %v1281, 2
  %v1403 = vsel %vm633, %v1401, %v1402
  %v1404 = vrot.slane %v1282, 2
  %v1405 = vrot.slane %v1283, 2
  %v1406 = vsel %vm633, %v1404, %v1405
  %v1407 = vrot.slane %v1284, 2
  %v1408 = vrot.slane %v1285, 2
  %v1409 = vsel %vm633, %v1407, %v1408
  %v1410 = vrot.slane %v1286, 2
  %v1411 = vrot.slane %v1287, 2
  %v1412 = vsel %vm633, %v1410, %v1411
  %v1413 = vrot.slane %v1288, 2
  %v1414 = vrot.slane %v1289, 2
  %v1415 = vsel %vm633, %v1413, %v1414
  %v1416 = vrot.slane %v1290, 2
  %v1417 = vrot.slane %v1291, 2
  %v1418 = vsel %vm633, %v1416, %v1417
  %v1419 = vrot.slane %v1292, 2
  %v1420 = vrot.slane %v1293, 2
  %v1421 = vsel %vm633, %v1419, %v1420
  %v1422 = vrot.slane %v1294, 2
  %v1423 = vrot.slane %v1295, 2
  %v1424 = vsel %vm633, %v1422, %v1423
  %v1425 = vrot.slane %v1296, 2
  %v1426 = vrot.slane %v1297, 2
  %v1427 = vsel %vm633, %v1425, %v1426
  %v1428 = vrot.slane %v1298, 2
  %v1429 = vrot.slane %v1299, 2
  %v1430 = vsel %vm633, %v1428, %v1429
  %v1431 = vrot.slane %v1300, 2
  %v1432 = vrot.slane %v1301, 2
  %v1433 = vsel %vm633, %v1431, %v1432
  %v1434 = vrot.slane %v1302, 2
  %v1435 = vrot.slane %v1303, 2
  %v1436 = vsel %vm633, %v1434, %v1435
  %v1437 = vrot.slane %v1304, 2
  %v1438 = vrot.slane %v1305, 2
  %v1439 = vsel %vm633, %v1437, %v1438
  %v1440 = vrot.slane %v1306, 2
  %v1441 = vrot.slane %v1307, 2
  %v1442 = vsel %vm633, %v1440, %v1441
  %v1443 = vrot.slane %v1308, 2
  %v1444 = vrot.slane %v1309, 2
  %v1445 = vsel %vm633, %v1443, %v1444
  %v1446 = vrot.slane %v1310, 2
  %v1447 = vrot.slane %v1311, 2
  %v1448 = vsel %vm633, %v1446, %v1447
  %v1449 = vrot.slane %v1312, 2
  %v1450 = vrot.slane %v1313, 2
  %v1451 = vsel %vm633, %v1449, %v1450
  %v1452 = vrot.slane %v1314, 2
  %v1453 = vrot.slane %v1315, 2
  %v1454 = vsel %vm633, %v1452, %v1453
  %v1455 = vrot.slane %v1316, 2
  %v1456 = vrot.slane %v1317, 2
  %v1457 = vsel %vm633, %v1455, %v1456
  %v1514 = vadd.f32 %v1202, %v1376
  %v1515 = vadd.f32 %v1203, %v1375
  %v1516 = vadd.f32 %v1204, %v1379
  %v1517 = vadd.f32 %v1205, %v1378
  %v1518 = vadd.f32 %v1206, %v1382
  %v1519 = vadd.f32 %v1207, %v1381
  %v1520 = vadd.f32 %v1208, %v1385
  %v1521 = vadd.f32 %v1209, %v1384
  %v1522 = vadd.f32 %v1210, %v1388
  %v1523 = vadd.f32 %v1211, %v1387
  %v1524 = vadd.f32 %v1212, %v1391
  %v1525 = vadd.f32 %v1213, %v1390
  %v1526 = vadd.f32 %v1214, %v1394
  %v1527 = vadd.f32 %v1215, %v1393
  %v1528 = vadd.f32 %v1216, %v1397
  %v1529 = vadd.f32 %v1217, %v1396
  %v1530 = vadd.f32 %v1218, %v1400
  %v1531 = vadd.f32 %v1219, %v1399
  %v1532 = vadd.f32 %v1220, %v1403
  %v1533 = vadd.f32 %v1221, %v1402
  %v1534 = vadd.f32 %v1222, %v1406
  %v1535 = vadd.f32 %v1223, %v1405
  %v1536 = vadd.f32 %v1224, %v1409
  %v1537 = vadd.f32 %v1225, %v1408
  %v1538 = vadd.f32 %v1226, %v1412
  %v1539 = vadd.f32 %v1227, %v1411
  %v1540 = vadd.f32 %v1228, %v1415
  %v1541 = vadd.f32 %v1229, %v1414
  %v1542 = vadd.f32 %v1230, %v1418
  %v1543 = vadd.f32 %v1231, %v1417
  %v1544 = vadd.f32 %v1232, %v1421
  %v1545 = vadd.f32 %v1233, %v1420
  %v1546 = vadd.f32 %v1234, %v1424
  %v1547 = vadd.f32 %v1235, %v1423
  %v1548 = vadd.f32 %v1236, %v1427
  %v1549 = vadd.f32 %v1237, %v1426
  %v1550 = vadd.f32 %v1238, %v1430
  %v1551 = vadd.f32 %v1239, %v1429
  %v1552 = vadd.f32 %v1240, %v1433
  %v1553 = vadd.f32 %v1241, %v1432
  %v1554 = vadd.f32 %v1242, %v1436
  %v1555 = vadd.f32 %v1243, %v1435
  %v1556 = vadd.f32 %v1244, %v1439
  %v1557 = vadd.f32 %v1245, %v1438
  %v1558 = vadd.f32 %v1246, %v1442
  %v1559 = vadd.f32 %v1247, %v1441
  %v1560 = vadd.f32 %v1248, %v1445
  %v1561 = vadd.f32 %v1249, %v1444
  %v1562 = vadd.f32 %v1250, %v1448
  %v1563 = vadd.f32 %v1251, %v1447
  %v1564 = vadd.f32 %v1252, %v1451
  %v1565 = vadd.f32 %v1253, %v1450
  %v1566 = vadd.f32 %v1254, %v1454
  %v1567 = vadd.f32 %v1255, %v1453
  %v1568 = vadd.f32 %v1256, %v1457
  %v1569 = vadd.f32 %v1257, %v1456
  %v1570 = vlaneseq
  %v1571 = vshrl.u32 %v1570, 7
  %v1572 = vsub.s32 6, %v1571
  %v1573 = vrot.slane %v86, %v1572
  %v1574 = vmul.f32 %v26, %v1573
  %v1575 = vmul.f32 %v27, %v1573
  %v1576 = vmul.f32 %v28, %v1573
  %v1577 = vmul.f32 %v29, %v1573
  %v1578 = vmul.f32 %v30, %v1573
  %v1579 = vmul.f32 %v31, %v1573
  %v1580 = vmul.f32 %v32, %v1573
  %v1581 = vmul.f32 %v33, %v1573
  %v1582 = vmul.f32 %v34, %v1573
  %v1583 = vmul.f32 %v35, %v1573
  %v1584 = vmul.f32 %v36, %v1573
  %v1585 = vmul.f32 %v37, %v1573
  %v1586 = vmul.f32 %v38, %v1573
  %v1587 = vmul.f32 %v39, %v1573
  %v1588 = vmul.f32 %v40, %v1573
  %v1589 = vmul.f32 %v41, %v1573
  %v1590 = vmul.f32 %v42, %v1573
  %v1591 = vmul.f32 %v43, %v1573
  %v1592 = vmul.f32 %v44, %v1573
  %v1593 = vmul.f32 %v45, %v1573
  %v1594 = vmul.f32 %v46, %v1573
  %v1595 = vmul.f32 %v47, %v1573
  %v1596 = vmul.f32 %v48, %v1573
  %v1597 = vmul.f32 %v49, %v1573
  %v1598 = vmul.f32 %v50, %v1573
  %v1599 = vmul.f32 %v51, %v1573
  %v1600 = vmul.f32 %v52, %v1573
  %v1601 = vmul.f32 %v53, %v1573
  %v1602 = vmul.f32 %v58, %v1573
  %v1603 = vmul.f32 %v59, %v1573
  %v1604 = vmul.f32 %v60, %v1573
  %v1605 = vmul.f32 %v61, %v1573
  %v1606 = vmul.f32 %v62, %v1573
  %v1607 = vmul.f32 %v63, %v1573
  %v1608 = vmul.f32 %v64, %v1573
  %v1609 = vmul.f32 %v65, %v1573
  %v1610 = vmul.f32 %v66, %v1573
  %v1611 = vmul.f32 %v67, %v1573
  %v1612 = vmul.f32 %v68, %v1573
  %v1613 = vmul.f32 %v69, %v1573
  %v1614 = vmul.f32 %v70, %v1573
  %v1615 = vmul.f32 %v71, %v1573
  %v1616 = vmul.f32 %v72, %v1573
  %v1617 = vmul.f32 %v73, %v1573
  %v1618 = vmul.f32 %v74, %v1573
  %v1619 = vmul.f32 %v75, %v1573
  %v1620 = vmul.f32 %v76, %v1573
  %v1621 = vmul.f32 %v77, %v1573
  %v1622 = vmul.f32 %v78, %v1573
  %v1623 = vmul.f32 %v79, %v1573
  %v1624 = vmul.f32 %v80, %v1573
  %v1625 = vmul.f32 %v81, %v1573
  %v1626 = vmul.f32 %v82, %v1573
  %v1627 = vmul.f32 %v83, %v1573
  %v1628 = vmul.f32 %v84, %v1573
  %v1629 = vmul.f32 %v85, %v1573
  %v1630 = vadd.f32 %v1514, %v1574
  %v1631 = vadd.f32 %v1515, %v1575
  %v1632 = vadd.f32 %v1516, %v1576
  %v1633 = vadd.f32 %v1517, %v1577
  %v1634 = vadd.f32 %v1518, %v1578
  %v1635 = vadd.f32 %v1519, %v1579
  %v1636 = vadd.f32 %v1520, %v1580
  %v1637 = vadd.f32 %v1521, %v1581
  %v1638 = vadd.f32 %v1522, %v1582
  %v1639 = vadd.f32 %v1523, %v1583
  %v1640 = vadd.f32 %v1524, %v1584
  %v1641 = vadd.f32 %v1525, %v1585
  %v1642 = vadd.f32 %v1526, %v1586
  %v1643 = vadd.f32 %v1527, %v1587
  %v1644 = vadd.f32 %v1528, %v1588
  %v1645 = vadd.f32 %v1529, %v1589
  %v1646 = vadd.f32 %v1530, %v1590
  %v1647 = vadd.f32 %v1531, %v1591
  %v1648 = vadd.f32 %v1532, %v1592
  %v1649 = vadd.f32 %v1533, %v1593
  %v1650 = vadd.f32 %v1534, %v1594
  %v1651 = vadd.f32 %v1535, %v1595
  %v1652 = vadd.f32 %v1536, %v1596
  %v1653 = vadd.f32 %v1537, %v1597
  %v1654 = vadd.f32 %v1538, %v1598
  %v1655 = vadd.f32 %v1539, %v1599
  %v1656 = vadd.f32 %v1540, %v1600
  %v1657 = vadd.f32 %v1541, %v1601
  %v1658 = vadd.f32 %v1542, %v1602
  %v1659 = vadd.f32 %v1543, %v1603
  %v1660 = vadd.f32 %v1544, %v1604
  %v1661 = vadd.f32 %v1545, %v1605
  %v1662 = vadd.f32 %v1546, %v1606
  %v1663 = vadd.f32 %v1547, %v1607
  %v1664 = vadd.f32 %v1548, %v1608
  %v1665 = vadd.f32 %v1549, %v1609
  %v1666 = vadd.f32 %v1550, %v1610
  %v1667 = vadd.f32 %v1551, %v1611
  %v1668 = vadd.f32 %v1552, %v1612
  %v1669 = vadd.f32 %v1553, %v1613
  %v1670 = vadd.f32 %v1554, %v1614
  %v1671 = vadd.f32 %v1555, %v1615
  %v1672 = vadd.f32 %v1556, %v1616
  %v1673 = vadd.f32 %v1557, %v1617
  %v1674 = vadd.f32 %v1558, %v1618
  %v1675 = vadd.f32 %v1559, %v1619
  %v1676 = vadd.f32 %v1560, %v1620
  %v1677 = vadd.f32 %v1561, %v1621
  %v1678 = vadd.f32 %v1562, %v1622
  %v1679 = vadd.f32 %v1563, %v1623
  %v1680 = vadd.f32 %v1564, %v1624
  %v1681 = vadd.f32 %v1565, %v1625
  %v1682 = vadd.f32 %v1566, %v1626
  %v1683 = vadd.f32 %v1567, %v1627
  %v1684 = vadd.f32 %v1568, %v1628
  %v1685 = vadd.f32 %v1569, %v1629
  %v1686 = vlaneseq
  %v1687 = vshrl.u32 %v1686, 7
  %v1688 = vsub.s32 7, %v1687
  %v1689 = vrot.slane %v86, %v1688
  %v1690 = vmul.f32 %v26, %v1689
  %v1691 = vmul.f32 %v27, %v1689
  %v1692 = vmul.f32 %v28, %v1689
  %v1693 = vmul.f32 %v29, %v1689
  %v1694 = vmul.f32 %v30, %v1689
  %v1695 = vmul.f32 %v31, %v1689
  %v1696 = vmul.f32 %v32, %v1689
  %v1697 = vmul.f32 %v33, %v1689
  %v1698 = vmul.f32 %v34, %v1689
  %v1699 = vmul.f32 %v35, %v1689
  %v1700 = vmul.f32 %v36, %v1689
  %v1701 = vmul.f32 %v37, %v1689
  %v1702 = vmul.f32 %v38, %v1689
  %v1703 = vmul.f32 %v39, %v1689
  %v1704 = vmul.f32 %v40, %v1689
  %v1705 = vmul.f32 %v41, %v1689
  %v1706 = vmul.f32 %v42, %v1689
  %v1707 = vmul.f32 %v43, %v1689
  %v1708 = vmul.f32 %v44, %v1689
  %v1709 = vmul.f32 %v45, %v1689
  %v1710 = vmul.f32 %v46, %v1689
  %v1711 = vmul.f32 %v47, %v1689
  %v1712 = vmul.f32 %v48, %v1689
  %v1713 = vmul.f32 %v49, %v1689
  %v1714 = vmul.f32 %v50, %v1689
  %v1715 = vmul.f32 %v51, %v1689
  %v1716 = vmul.f32 %v52, %v1689
  %v1717 = vmul.f32 %v53, %v1689
  %v1718 = vmul.f32 %v58, %v1689
  %v1719 = vmul.f32 %v59, %v1689
  %v1720 = vmul.f32 %v60, %v1689
  %v1721 = vmul.f32 %v61, %v1689
  %v1722 = vmul.f32 %v62, %v1689
  %v1723 = vmul.f32 %v63, %v1689
  %v1724 = vmul.f32 %v64, %v1689
  %v1725 = vmul.f32 %v65, %v1689
  %v1726 = vmul.f32 %v66, %v1689
  %v1727 = vmul.f32 %v67, %v1689
  %v1728 = vmul.f32 %v68, %v1689
  %v1729 = vmul.f32 %v69, %v1689
  %v1730 = vmul.f32 %v70, %v1689
  %v1731 = vmul.f32 %v71, %v1689
  %v1732 = vmul.f32 %v72, %v1689
  %v1733 = vmul.f32 %v73, %v1689
  %v1734 = vmul.f32 %v74, %v1689
  %v1735 = vmul.f32 %v75, %v1689
  %v1736 = vmul.f32 %v76, %v1689
  %v1737 = vmul.f32 %v77, %v1689
  %v1738 = vmul.f32 %v78, %v1689
  %v1739 = vmul.f32 %v79, %v1689
  %v1740 = vmul.f32 %v80, %v1689
  %v1741 = vmul.f32 %v81, %v1689
  %v1742 = vmul.f32 %v82, %v1689
  %v1743 = vmul.f32 %v83, %v1689
  %v1744 = vmul.f32 %v84, %v1689
  %v1745 = vmul.f32 %v85, %v1689
  %v1802 = vrot.slane %v1690, 1
  %v1803 = vrot.slane %v1691, 1
  %v1804 = vsel %vm320, %v1802, %v1803
  %v1805 = vrot.slane %v1692, 1
  %v1806 = vrot.slane %v1693, 1
  %v1807 = vsel %vm320, %v1805, %v1806
  %v1808 = vrot.slane %v1694, 1
  %v1809 = vrot.slane %v1695, 1
  %v1810 = vsel %vm320, %v1808, %v1809
  %v1811 = vrot.slane %v1696, 1
  %v1812 = vrot.slane %v1697, 1
  %v1813 = vsel %vm320, %v1811, %v1812
  %v1814 = vrot.slane %v1698, 1
  %v1815 = vrot.slane %v1699, 1
  %v1816 = vsel %vm320, %v1814, %v1815
  %v1817 = vrot.slane %v1700, 1
  %v1818 = vrot.slane %v1701, 1
  %v1819 = vsel %vm320, %v1817, %v1818
  %v1820 = vrot.slane %v1702, 1
  %v1821 = vrot.slane %v1703, 1
  %v1822 = vsel %vm320, %v1820, %v1821
  %v1823 = vrot.slane %v1704, 1
  %v1824 = vrot.slane %v1705, 1
  %v1825 = vsel %vm320, %v1823, %v1824
  %v1826 = vrot.slane %v1706, 1
  %v1827 = vrot.slane %v1707, 1
  %v1828 = vsel %vm320, %v1826, %v1827
  %v1829 = vrot.slane %v1708, 1
  %v1830 = vrot.slane %v1709, 1
  %v1831 = vsel %vm320, %v1829, %v1830
  %v1832 = vrot.slane %v1710, 1
  %v1833 = vrot.slane %v1711, 1
  %v1834 = vsel %vm320, %v1832, %v1833
  %v1835 = vrot.slane %v1712, 1
  %v1836 = vrot.slane %v1713, 1
  %v1837 = vsel %vm320, %v1835, %v1836
  %v1838 = vrot.slane %v1714, 1
  %v1839 = vrot.slane %v1715, 1
  %v1840 = vsel %vm320, %v1838, %v1839
  %v1841 = vrot.slane %v1716, 1
  %v1842 = vrot.slane %v1717, 1
  %v1843 = vsel %vm320, %v1841, %v1842
  %v1844 = vrot.slane %v1718, 1
  %v1845 = vrot.slane %v1719, 1
  %v1846 = vsel %vm320, %v1844, %v1845
  %v1847 = vrot.slane %v1720, 1
  %v1848 = vrot.slane %v1721, 1
  %v1849 = vsel %vm320, %v1847, %v1848
  %v1850 = vrot.slane %v1722, 1
  %v1851 = vrot.slane %v1723, 1
  %v1852 = vsel %vm320, %v1850, %v1851
  %v1853 = vrot.slane %v1724, 1
  %v1854 = vrot.slane %v1725, 1
  %v1855 = vsel %vm320, %v1853, %v1854
  %v1856 = vrot.slane %v1726, 1
  %v1857 = vrot.slane %v1727, 1
  %v1858 = vsel %vm320, %v1856, %v1857
  %v1859 = vrot.slane %v1728, 1
  %v1860 = vrot.slane %v1729, 1
  %v1861 = vsel %vm320, %v1859, %v1860
  %v1862 = vrot.slane %v1730, 1
  %v1863 = vrot.slane %v1731, 1
  %v1864 = vsel %vm320, %v1862, %v1863
  %v1865 = vrot.slane %v1732, 1
  %v1866 = vrot.slane %v1733, 1
  %v1867 = vsel %vm320, %v1865, %v1866
  %v1868 = vrot.slane %v1734, 1
  %v1869 = vrot.slane %v1735, 1
  %v1870 = vsel %vm320, %v1868, %v1869
  %v1871 = vrot.slane %v1736, 1
  %v1872 = vrot.slane %v1737, 1
  %v1873 = vsel %vm320, %v1871, %v1872
  %v1874 = vrot.slane %v1738, 1
  %v1875 = vrot.slane %v1739, 1
  %v1876 = vsel %vm320, %v1874, %v1875
  %v1877 = vrot.slane %v1740, 1
  %v1878 = vrot.slane %v1741, 1
  %v1879 = vsel %vm320, %v1877, %v1878
  %v1880 = vrot.slane %v1742, 1
  %v1881 = vrot.slane %v1743, 1
  %v1882 = vsel %vm320, %v1880, %v1881
  %v1883 = vrot.slane %v1744, 1
  %v1884 = vrot.slane %v1745, 1
  %v1885 = vsel %vm320, %v1883, %v1884
  %v1942 = vadd.f32 %v1630, %v1804
  %v1943 = vadd.f32 %v1631, %v1803
  %v1944 = vadd.f32 %v1632, %v1807
  %v1945 = vadd.f32 %v1633, %v1806
  %v1946 = vadd.f32 %v1634, %v1810
  %v1947 = vadd.f32 %v1635, %v1809
  %v1948 = vadd.f32 %v1636, %v1813
  %v1949 = vadd.f32 %v1637, %v1812
  %v1950 = vadd.f32 %v1638, %v1816
  %v1951 = vadd.f32 %v1639, %v1815
  %v1952 = vadd.f32 %v1640, %v1819
  %v1953 = vadd.f32 %v1641, %v1818
  %v1954 = vadd.f32 %v1642, %v1822
  %v1955 = vadd.f32 %v1643, %v1821
  %v1956 = vadd.f32 %v1644, %v1825
  %v1957 = vadd.f32 %v1645, %v1824
  %v1958 = vadd.f32 %v1646, %v1828
  %v1959 = vadd.f32 %v1647, %v1827
  %v1960 = vadd.f32 %v1648, %v1831
  %v1961 = vadd.f32 %v1649, %v1830
  %v1962 = vadd.f32 %v1650, %v1834
  %v1963 = vadd.f32 %v1651, %v1833
  %v1964 = vadd.f32 %v1652, %v1837
  %v1965 = vadd.f32 %v1653, %v1836
  %v1966 = vadd.f32 %v1654, %v1840
  %v1967 = vadd.f32 %v1655, %v1839
  %v1968 = vadd.f32 %v1656, %v1843
  %v1969 = vadd.f32 %v1657, %v1842
  %v1970 = vadd.f32 %v1658, %v1846
  %v1971 = vadd.f32 %v1659, %v1845
  %v1972 = vadd.f32 %v1660, %v1849
  %v1973 = vadd.f32 %v1661, %v1848
  %v1974 = vadd.f32 %v1662, %v1852
  %v1975 = vadd.f32 %v1663, %v1851
  %v1976 = vadd.f32 %v1664, %v1855
  %v1977 = vadd.f32 %v1665, %v1854
  %v1978 = vadd.f32 %v1666, %v1858
  %v1979 = vadd.f32 %v1667, %v1857
  %v1980 = vadd.f32 %v1668, %v1861
  %v1981 = vadd.f32 %v1669, %v1860
  %v1982 = vadd.f32 %v1670, %v1864
  %v1983 = vadd.f32 %v1671, %v1863
  %v1984 = vadd.f32 %v1672, %v1867
  %v1985 = vadd.f32 %v1673, %v1866
  %v1986 = vadd.f32 %v1674, %v1870
  %v1987 = vadd.f32 %v1675, %v1869
  %v1988 = vadd.f32 %v1676, %v1873
  %v1989 = vadd.f32 %v1677, %v1872
  %v1990 = vadd.f32 %v1678, %v1876
  %v1991 = vadd.f32 %v1679, %v1875
  %v1992 = vadd.f32 %v1680, %v1879
  %v1993 = vadd.f32 %v1681, %v1878
  %v1994 = vadd.f32 %v1682, %v1882
  %v1995 = vadd.f32 %v1683, %v1881
  %v1996 = vadd.f32 %v1684, %v1885
  %v1997 = vadd.f32 %v1685, %v1884
  %v1998 = vlaneseq
  %v1999 = vshrl.u32 %v1998, 7
  %v2000 = vsub.s32 0, %v1999
  %v2001 = vrot.slane %v87, %v2000
  %v2002 = vmul.f32 %v26, %v2001
  %v2003 = vmul.f32 %v27, %v2001
  %v2004 = vmul.f32 %v28, %v2001
  %v2005 = vmul.f32 %v29, %v2001
  %v2006 = vmul.f32 %v30, %v2001
  %v2007 = vmul.f32 %v31, %v2001
  %v2008 = vmul.f32 %v32, %v2001
  %v2009 = vmul.f32 %v33, %v2001
  %v2010 = vmul.f32 %v34, %v2001
  %v2011 = vmul.f32 %v35, %v2001
  %v2012 = vmul.f32 %v36, %v2001
  %v2013 = vmul.f32 %v37, %v2001
  %v2014 = vmul.f32 %v38, %v2001
  %v2015 = vmul.f32 %v39, %v2001
  %v2016 = vmul.f32 %v40, %v2001
  %v2017 = vmul.f32 %v41, %v2001
  %v2018 = vmul.f32 %v42, %v2001
  %v2019 = vmul.f32 %v43, %v2001
  %v2020 = vmul.f32 %v44, %v2001
  %v2021 = vmul.f32 %v45, %v2001
  %v2022 = vmul.f32 %v46, %v2001
  %v2023 = vmul.f32 %v47, %v2001
  %v2024 = vmul.f32 %v48, %v2001
  %v2025 = vmul.f32 %v49, %v2001
  %v2026 = vmul.f32 %v50, %v2001
  %v2027 = vmul.f32 %v51, %v2001
  %v2028 = vmul.f32 %v52, %v2001
  %v2029 = vmul.f32 %v53, %v2001
  %v2030 = vmul.f32 %v58, %v2001
  %v2031 = vmul.f32 %v59, %v2001
  %v2032 = vmul.f32 %v60, %v2001
  %v2033 = vmul.f32 %v61, %v2001
  %v2034 = vmul.f32 %v62, %v2001
  %v2035 = vmul.f32 %v63, %v2001
  %v2036 = vmul.f32 %v64, %v2001
  %v2037 = vmul.f32 %v65, %v2001
  %v2038 = vmul.f32 %v66, %v2001
  %v2039 = vmul.f32 %v67, %v2001
  %v2040 = vmul.f32 %v68, %v2001
  %v2041 = vmul.f32 %v69, %v2001
  %v2042 = vmul.f32 %v70, %v2001
  %v2043 = vmul.f32 %v71, %v2001
  %v2044 = vmul.f32 %v72, %v2001
  %v2045 = vmul.f32 %v73, %v2001
  %v2046 = vmul.f32 %v74, %v2001
  %v2047 = vmul.f32 %v75, %v2001
  %v2048 = vmul.f32 %v76, %v2001
  %v2049 = vmul.f32 %v77, %v2001
  %v2050 = vmul.f32 %v78, %v2001
  %v2051 = vmul.f32 %v79, %v2001
  %v2052 = vmul.f32 %v80, %v2001
  %v2053 = vmul.f32 %v81, %v2001
  %v2054 = vmul.f32 %v82, %v2001
  %v2055 = vmul.f32 %v83, %v2001
  %v2056 = vmul.f32 %v84, %v2001
  %v2057 = vmul.f32 %v85, %v2001
  %v2114 = vrot.slane %v2002, 2
  %v2115 = vrot.slane %v2003, 2
  %v2116 = vsel %vm633, %v2114, %v2115
  %v2117 = vrot.slane %v2004, 2
  %v2118 = vrot.slane %v2005, 2
  %v2119 = vsel %vm633, %v2117, %v2118
  %v2120 = vrot.slane %v2006, 2
  %v2121 = vrot.slane %v2007, 2
  %v2122 = vsel %vm633, %v2120, %v2121
  %v2123 = vrot.slane %v2008, 2
  %v2124 = vrot.slane %v2009, 2
  %v2125 = vsel %vm633, %v2123, %v2124
  %v2126 = vrot.slane %v2010, 2
  %v2127 = vrot.slane %v2011, 2
  %v2128 = vsel %vm633, %v2126, %v2127
  %v2129 = vrot.slane %v2012, 2
  %v2130 = vrot.slane %v2013, 2
  %v2131 = vsel %vm633, %v2129, %v2130
  %v2132 = vrot.slane %v2014, 2
  %v2133 = vrot.slane %v2015, 2
  %v2134 = vsel %vm633, %v2132, %v2133
  %v2135 = vrot.slane %v2016, 2
  %v2136 = vrot.slane %v2017, 2
  %v2137 = vsel %vm633, %v2135, %v2136
  %v2138 = vrot.slane %v2018, 2
  %v2139 = vrot.slane %v2019, 2
  %v2140 = vsel %vm633, %v2138, %v2139
  %v2141 = vrot.slane %v2020, 2
  %v2142 = vrot.slane %v2021, 2
  %v2143 = vsel %vm633, %v2141, %v2142
  %v2144 = vrot.slane %v2022, 2
  %v2145 = vrot.slane %v2023, 2
  %v2146 = vsel %vm633, %v2144, %v2145
  %v2147 = vrot.slane %v2024, 2
  %v2148 = vrot.slane %v2025, 2
  %v2149 = vsel %vm633, %v2147, %v2148
  %v2150 = vrot.slane %v2026, 2
  %v2151 = vrot.slane %v2027, 2
  %v2152 = vsel %vm633, %v2150, %v2151
  %v2153 = vrot.slane %v2028, 2
  %v2154 = vrot.slane %v2029, 2
  %v2155 = vsel %vm633, %v2153, %v2154
  %v2156 = vrot.slane %v2030, 2
  %v2157 = vrot.slane %v2031, 2
  %v2158 = vsel %vm633, %v2156, %v2157
  %v2159 = vrot.slane %v2032, 2
  %v2160 = vrot.slane %v2033, 2
  %v2161 = vsel %vm633, %v2159, %v2160
  %v2162 = vrot.slane %v2034, 2
  %v2163 = vrot.slane %v2035, 2
  %v2164 = vsel %vm633, %v2162, %v2163
  %v2165 = vrot.slane %v2036, 2
  %v2166 = vrot.slane %v2037, 2
  %v2167 = vsel %vm633, %v2165, %v2166
  %v2168 = vrot.slane %v2038, 2
  %v2169 = vrot.slane %v2039, 2
  %v2170 = vsel %vm633, %v2168, %v2169
  %v2171 = vrot.slane %v2040, 2
  %v2172 = vrot.slane %v2041, 2
  %v2173 = vsel %vm633, %v2171, %v2172
  %v2174 = vrot.slane %v2042, 2
  %v2175 = vrot.slane %v2043, 2
  %v2176 = vsel %vm633, %v2174, %v2175
  %v2177 = vrot.slane %v2044, 2
  %v2178 = vrot.slane %v2045, 2
  %v2179 = vsel %vm633, %v2177, %v2178
  %v2180 = vrot.slane %v2046, 2
  %v2181 = vrot.slane %v2047, 2
  %v2182 = vsel %vm633, %v2180, %v2181
  %v2183 = vrot.slane %v2048, 2
  %v2184 = vrot.slane %v2049, 2
  %v2185 = vsel %vm633, %v2183, %v2184
  %v2186 = vrot.slane %v2050, 2
  %v2187 = vrot.slane %v2051, 2
  %v2188 = vsel %vm633, %v2186, %v2187
  %v2189 = vrot.slane %v2052, 2
  %v2190 = vrot.slane %v2053, 2
  %v2191 = vsel %vm633, %v2189, %v2190
  %v2192 = vrot.slane %v2054, 2
  %v2193 = vrot.slane %v2055, 2
  %v2194 = vsel %vm633, %v2192, %v2193
  %v2195 = vrot.slane %v2056, 2
  %v2196 = vrot.slane %v2057, 2
  %v2197 = vsel %vm633, %v2195, %v2196
  %v2254 = vadd.f32 %v1942, %v2116
  %v2255 = vadd.f32 %v1943, %v2115
  %v2256 = vadd.f32 %v1944, %v2119
  %v2257 = vadd.f32 %v1945, %v2118
  %v2258 = vadd.f32 %v1946, %v2122
  %v2259 = vadd.f32 %v1947, %v2121
  %v2260 = vadd.f32 %v1948, %v2125
  %v2261 = vadd.f32 %v1949, %v2124
  %v2262 = vadd.f32 %v1950, %v2128
  %v2263 = vadd.f32 %v1951, %v2127
  %v2264 = vadd.f32 %v1952, %v2131
  %v2265 = vadd.f32 %v1953, %v2130
  %v2266 = vadd.f32 %v1954, %v2134
  %v2267 = vadd.f32 %v1955, %v2133
  %v2268 = vadd.f32 %v1956, %v2137
  %v2269 = vadd.f32 %v1957, %v2136
  %v2270 = vadd.f32 %v1958, %v2140
  %v2271 = vadd.f32 %v1959, %v2139
  %v2272 = vadd.f32 %v1960, %v2143
  %v2273 = vadd.f32 %v1961, %v2142
  %v2274 = vadd.f32 %v1962, %v2146
  %v2275 = vadd.f32 %v1963, %v2145
  %v2276 = vadd.f32 %v1964, %v2149
  %v2277 = vadd.f32 %v1965, %v2148
  %v2278 = vadd.f32 %v1966, %v2152
  %v2279 = vadd.f32 %v1967, %v2151
  %v2280 = vadd.f32 %v1968, %v2155
  %v2281 = vadd.f32 %v1969, %v2154
  %v2282 = vadd.f32 %v1970, %v2158
  %v2283 = vadd.f32 %v1971, %v2157
  %v2284 = vadd.f32 %v1972, %v2161
  %v2285 = vadd.f32 %v1973, %v2160
  %v2286 = vadd.f32 %v1974, %v2164
  %v2287 = vadd.f32 %v1975, %v2163
  %v2288 = vadd.f32 %v1976, %v2167
  %v2289 = vadd.f32 %v1977, %v2166
  %v2290 = vadd.f32 %v1978, %v2170
  %v2291 = vadd.f32 %v1979, %v2169
  %v2292 = vadd.f32 %v1980, %v2173
  %v2293 = vadd.f32 %v1981, %v2172
  %v2294 = vadd.f32 %v1982, %v2176
  %v2295 = vadd.f32 %v1983, %v2175
  %v2296 = vadd.f32 %v1984, %v2179
  %v2297 = vadd.f32 %v1985, %v2178
  %v2298 = vadd.f32 %v1986, %v2182
  %v2299 = vadd.f32 %v1987, %v2181
  %v2300 = vadd.f32 %v1988, %v2185
  %v2301 = vadd.f32 %v1989, %v2184
  %v2302 = vadd.f32 %v1990, %v2188
  %v2303 = vadd.f32 %v1991, %v2187
  %v2304 = vadd.f32 %v1992, %v2191
  %v2305 = vadd.f32 %v1993, %v2190
  %v2306 = vadd.f32 %v1994, %v2194
  %v2307 = vadd.f32 %v1995, %v2193
  %v2308 = vadd.f32 %v1996, %v2197
  %v2309 = vadd.f32 %v1997, %v2196
  %v2310 = vld [vmem:[%s2] sm:$0x1]
  %v2312 = vlaneseq
  %v2313 = vshrl.u32 %v2312, 7
  %v2314 = vsub.s32 0, %v2313
  %v2315 = vrot.slane %v2310, %v2314
  %v2317 = vmul.f32 %v2254, %v2315
  %v2318 = vmul.f32 %v2255, %v2315
  %v2319 = vmul.f32 %v2256, %v2315
  %v2320 = vmul.f32 %v2257, %v2315
  %v2321 = vmul.f32 %v2258, %v2315
  %v2322 = vmul.f32 %v2259, %v2315
  %v2323 = vmul.f32 %v2260, %v2315
  %v2324 = vmul.f32 %v2261, %v2315
  %v2325 = vmul.f32 %v2262, %v2315
  %v2326 = vmul.f32 %v2263, %v2315
  %v2327 = vmul.f32 %v2264, %v2315
  %v2328 = vmul.f32 %v2265, %v2315
  %v2329 = vmul.f32 %v2266, %v2315
  %v2330 = vmul.f32 %v2267, %v2315
  %v2331 = vmul.f32 %v2268, %v2315
  %v2332 = vmul.f32 %v2269, %v2315
  %v2333 = vmul.f32 %v2270, %v2315
  %v2334 = vmul.f32 %v2271, %v2315
  %v2335 = vmul.f32 %v2272, %v2315
  %v2336 = vmul.f32 %v2273, %v2315
  %v2337 = vmul.f32 %v2274, %v2315
  %v2338 = vmul.f32 %v2275, %v2315
  %v2339 = vmul.f32 %v2276, %v2315
  %v2340 = vmul.f32 %v2277, %v2315
  %v2341 = vmul.f32 %v2278, %v2315
  %v2342 = vmul.f32 %v2279, %v2315
  %v2343 = vmul.f32 %v2280, %v2315
  %v2344 = vmul.f32 %v2281, %v2315
  %v2345 = vmul.f32 %v2282, %v2315
  %v2346 = vmul.f32 %v2283, %v2315
  %v2347 = vmul.f32 %v2284, %v2315
  %v2348 = vmul.f32 %v2285, %v2315
  %v2349 = vmul.f32 %v2286, %v2315
  %v2350 = vmul.f32 %v2287, %v2315
  %v2351 = vmul.f32 %v2288, %v2315
  %v2352 = vmul.f32 %v2289, %v2315
  %v2353 = vmul.f32 %v2290, %v2315
  %v2354 = vmul.f32 %v2291, %v2315
  %v2355 = vmul.f32 %v2292, %v2315
  %v2356 = vmul.f32 %v2293, %v2315
  %v2357 = vmul.f32 %v2294, %v2315
  %v2358 = vmul.f32 %v2295, %v2315
  %v2359 = vmul.f32 %v2296, %v2315
  %v2360 = vmul.f32 %v2297, %v2315
  %v2361 = vmul.f32 %v2298, %v2315
  %v2362 = vmul.f32 %v2299, %v2315
  %v2363 = vmul.f32 %v2300, %v2315
  %v2364 = vmul.f32 %v2301, %v2315
  %v2365 = vmul.f32 %v2302, %v2315
  %v2366 = vmul.f32 %v2303, %v2315
  %v2367 = vmul.f32 %v2304, %v2315
  %v2368 = vmul.f32 %v2305, %v2315
  %v2369 = vmul.f32 %v2306, %v2315
  %v2370 = vmul.f32 %v2307, %v2315
  %v2371 = vmul.f32 %v2308, %v2315
  %v2372 = vmul.f32 %v2309, %v2315
  %v2373 = vld [vmem:[%s3] sm:$0x1]
  %v2375 = vlaneseq
  %v2376 = vshrl.u32 %v2375, 7
  %v2377 = vsub.s32 0, %v2376
  %v2378 = vrot.slane %v2373, %v2377
  %v2380 = vadd.f32 %v2317, %v2378
  %v2381 = vadd.f32 %v2318, %v2378
  %v2382 = vadd.f32 %v2319, %v2378
  %v2383 = vadd.f32 %v2320, %v2378
  %v2384 = vadd.f32 %v2321, %v2378
  %v2385 = vadd.f32 %v2322, %v2378
  %v2386 = vadd.f32 %v2323, %v2378
  %v2387 = vadd.f32 %v2324, %v2378
  %v2388 = vadd.f32 %v2325, %v2378
  %v2389 = vadd.f32 %v2326, %v2378
  %v2390 = vadd.f32 %v2327, %v2378
  %v2391 = vadd.f32 %v2328, %v2378
  %v2392 = vadd.f32 %v2329, %v2378
  %v2393 = vadd.f32 %v2330, %v2378
  %v2394 = vadd.f32 %v2331, %v2378
  %v2395 = vadd.f32 %v2332, %v2378
  %v2396 = vadd.f32 %v2333, %v2378
  %v2397 = vadd.f32 %v2334, %v2378
  %v2398 = vadd.f32 %v2335, %v2378
  %v2399 = vadd.f32 %v2336, %v2378
  %v2400 = vadd.f32 %v2337, %v2378
  %v2401 = vadd.f32 %v2338, %v2378
  %v2402 = vadd.f32 %v2339, %v2378
  %v2403 = vadd.f32 %v2340, %v2378
  %v2404 = vadd.f32 %v2341, %v2378
  %v2405 = vadd.f32 %v2342, %v2378
  %v2406 = vadd.f32 %v2343, %v2378
  %v2407 = vadd.f32 %v2344, %v2378
  %v2408 = vadd.f32 %v2345, %v2378
  %v2409 = vadd.f32 %v2346, %v2378
  %v2410 = vadd.f32 %v2347, %v2378
  %v2411 = vadd.f32 %v2348, %v2378
  %v2412 = vadd.f32 %v2349, %v2378
  %v2413 = vadd.f32 %v2350, %v2378
  %v2414 = vadd.f32 %v2351, %v2378
  %v2415 = vadd.f32 %v2352, %v2378
  %v2416 = vadd.f32 %v2353, %v2378
  %v2417 = vadd.f32 %v2354, %v2378
  %v2418 = vadd.f32 %v2355, %v2378
  %v2419 = vadd.f32 %v2356, %v2378
  %v2420 = vadd.f32 %v2357, %v2378
  %v2421 = vadd.f32 %v2358, %v2378
  %v2422 = vadd.f32 %v2359, %v2378
  %v2423 = vadd.f32 %v2360, %v2378
  %v2424 = vadd.f32 %v2361, %v2378
  %v2425 = vadd.f32 %v2362, %v2378
  %v2426 = vadd.f32 %v2363, %v2378
  %v2427 = vadd.f32 %v2364, %v2378
  %v2428 = vadd.f32 %v2365, %v2378
  %v2429 = vadd.f32 %v2366, %v2378
  %v2430 = vadd.f32 %v2367, %v2378
  %v2431 = vadd.f32 %v2368, %v2378
  %v2432 = vadd.f32 %v2369, %v2378
  %v2433 = vadd.f32 %v2370, %v2378
  %v2434 = vadd.f32 %v2371, %v2378
  %v2435 = vadd.f32 %v2372, %v2378
  %v2436 = vmax.f32 %v2380, 0.0
  %v2437 = vmax.f32 %v2381, 0.0
  %v2438 = vmax.f32 %v2382, 0.0
  %v2439 = vmax.f32 %v2383, 0.0
  %v2440 = vmax.f32 %v2384, 0.0
  %v2441 = vmax.f32 %v2385, 0.0
  %v2442 = vmax.f32 %v2386, 0.0
  %v2443 = vmax.f32 %v2387, 0.0
  %v2444 = vmax.f32 %v2388, 0.0
  %v2445 = vmax.f32 %v2389, 0.0
  %v2446 = vmax.f32 %v2390, 0.0
  %v2447 = vmax.f32 %v2391, 0.0
  %v2448 = vmax.f32 %v2392, 0.0
  %v2449 = vmax.f32 %v2393, 0.0
  %v2450 = vmax.f32 %v2394, 0.0
  %v2451 = vmax.f32 %v2395, 0.0
  %v2452 = vmax.f32 %v2396, 0.0
  %v2453 = vmax.f32 %v2397, 0.0
  %v2454 = vmax.f32 %v2398, 0.0
  %v2455 = vmax.f32 %v2399, 0.0
  %v2456 = vmax.f32 %v2400, 0.0
  %v2457 = vmax.f32 %v2401, 0.0
  %v2458 = vmax.f32 %v2402, 0.0
  %v2459 = vmax.f32 %v2403, 0.0
  %v2460 = vmax.f32 %v2404, 0.0
  %v2461 = vmax.f32 %v2405, 0.0
  %v2462 = vmax.f32 %v2406, 0.0
  %v2463 = vmax.f32 %v2407, 0.0
  %v2464 = vmax.f32 %v2408, 0.0
  %v2465 = vmax.f32 %v2409, 0.0
  %v2466 = vmax.f32 %v2410, 0.0
  %v2467 = vmax.f32 %v2411, 0.0
  %v2468 = vmax.f32 %v2412, 0.0
  %v2469 = vmax.f32 %v2413, 0.0
  %v2470 = vmax.f32 %v2414, 0.0
  %v2471 = vmax.f32 %v2415, 0.0
  %v2472 = vmax.f32 %v2416, 0.0
  %v2473 = vmax.f32 %v2417, 0.0
  %v2474 = vmax.f32 %v2418, 0.0
  %v2475 = vmax.f32 %v2419, 0.0
  %v2476 = vmax.f32 %v2420, 0.0
  %v2477 = vmax.f32 %v2421, 0.0
  %v2478 = vmax.f32 %v2422, 0.0
  %v2479 = vmax.f32 %v2423, 0.0
  %v2480 = vmax.f32 %v2424, 0.0
  %v2481 = vmax.f32 %v2425, 0.0
  %v2482 = vmax.f32 %v2426, 0.0
  %v2483 = vmax.f32 %v2427, 0.0
  %v2484 = vmax.f32 %v2428, 0.0
  %v2485 = vmax.f32 %v2429, 0.0
  %v2486 = vmax.f32 %v2430, 0.0
  %v2487 = vmax.f32 %v2431, 0.0
  %v2488 = vmax.f32 %v2432, 0.0
  %v2489 = vmax.f32 %v2433, 0.0
  %v2490 = vmax.f32 %v2434, 0.0
  %v2491 = vmax.f32 %v2435, 0.0
  %v2492 = vld [vmem:[%s4] sm:$0xf]
  %2494 = vset.pattern.permute.xlu0 0
  %2495 = vperm.xlu0 %2494, %v2436
  %v2496 = vpop.permute.xlu0 %2495
  %2499 = vset.pattern.permute.xlu0 0
  %2500 = vperm.xlu0 %2499, %v2437
  %v2501 = vpop.permute.xlu0 %2500
  %2504 = vset.pattern.permute.xlu0 0
  %2505 = vperm.xlu0 %2504, %v2438
  %v2506 = vpop.permute.xlu0 %2505
  %2509 = vset.pattern.permute.xlu0 0
  %2510 = vperm.xlu0 %2509, %v2439
  %v2511 = vpop.permute.xlu0 %2510
  %2514 = vset.pattern.permute.xlu0 0
  %2515 = vperm.xlu0 %2514, %v2440
  %v2516 = vpop.permute.xlu0 %2515
  %2519 = vset.pattern.permute.xlu0 0
  %2520 = vperm.xlu0 %2519, %v2441
  %v2521 = vpop.permute.xlu0 %2520
  %2524 = vset.pattern.permute.xlu0 0
  %2525 = vperm.xlu0 %2524, %v2442
  %v2526 = vpop.permute.xlu0 %2525
  %2529 = vset.pattern.permute.xlu0 0
  %2530 = vperm.xlu0 %2529, %v2443
  %v2531 = vpop.permute.xlu0 %2530
  %2534 = vset.pattern.permute.xlu0 0
  %2535 = vperm.xlu0 %2534, %v2444
  %v2536 = vpop.permute.xlu0 %2535
  %2539 = vset.pattern.permute.xlu0 0
  %2540 = vperm.xlu0 %2539, %v2445
  %v2541 = vpop.permute.xlu0 %2540
  %2544 = vset.pattern.permute.xlu0 0
  %2545 = vperm.xlu0 %2544, %v2446
  %v2546 = vpop.permute.xlu0 %2545
  %2549 = vset.pattern.permute.xlu0 0
  %2550 = vperm.xlu0 %2549, %v2447
  %v2551 = vpop.permute.xlu0 %2550
  %2554 = vset.pattern.permute.xlu0 0
  %2555 = vperm.xlu0 %2554, %v2448
  %v2556 = vpop.permute.xlu0 %2555
  %2559 = vset.pattern.permute.xlu0 0
  %2560 = vperm.xlu0 %2559, %v2449
  %v2561 = vpop.permute.xlu0 %2560
  %2564 = vset.pattern.permute.xlu0 0
  %2565 = vperm.xlu0 %2564, %v2450
  %v2566 = vpop.permute.xlu0 %2565
  %2569 = vset.pattern.permute.xlu0 0
  %2570 = vperm.xlu0 %2569, %v2451
  %v2571 = vpop.permute.xlu0 %2570
  %2574 = vset.pattern.permute.xlu0 0
  %2575 = vperm.xlu0 %2574, %v2452
  %v2576 = vpop.permute.xlu0 %2575
  %2579 = vset.pattern.permute.xlu0 0
  %2580 = vperm.xlu0 %2579, %v2453
  %v2581 = vpop.permute.xlu0 %2580
  %2584 = vset.pattern.permute.xlu0 0
  %2585 = vperm.xlu0 %2584, %v2454
  %v2586 = vpop.permute.xlu0 %2585
  %2589 = vset.pattern.permute.xlu0 0
  %2590 = vperm.xlu0 %2589, %v2455
  %v2591 = vpop.permute.xlu0 %2590
  %2594 = vset.pattern.permute.xlu0 0
  %2595 = vperm.xlu0 %2594, %v2456
  %v2596 = vpop.permute.xlu0 %2595
  %2599 = vset.pattern.permute.xlu0 0
  %2600 = vperm.xlu0 %2599, %v2457
  %v2601 = vpop.permute.xlu0 %2600
  %2604 = vset.pattern.permute.xlu0 0
  %2605 = vperm.xlu0 %2604, %v2458
  %v2606 = vpop.permute.xlu0 %2605
  %2609 = vset.pattern.permute.xlu0 0
  %2610 = vperm.xlu0 %2609, %v2459
  %v2611 = vpop.permute.xlu0 %2610
  %2614 = vset.pattern.permute.xlu0 0
  %2615 = vperm.xlu0 %2614, %v2460
  %v2616 = vpop.permute.xlu0 %2615
  %2619 = vset.pattern.permute.xlu0 0
  %2620 = vperm.xlu0 %2619, %v2461
  %v2621 = vpop.permute.xlu0 %2620
  %2624 = vset.pattern.permute.xlu0 0
  %2625 = vperm.xlu0 %2624, %v2462
  %v2626 = vpop.permute.xlu0 %2625
  %2629 = vset.pattern.permute.xlu0 0
  %2630 = vperm.xlu0 %2629, %v2463
  %v2631 = vpop.permute.xlu0 %2630
  %2634 = vset.pattern.permute.xlu0 0
  %2635 = vperm.xlu0 %2634, %v2464
  %v2636 = vpop.permute.xlu0 %2635
  %2639 = vset.pattern.permute.xlu0 0
  %2640 = vperm.xlu0 %2639, %v2465
  %v2641 = vpop.permute.xlu0 %2640
  %2644 = vset.pattern.permute.xlu0 0
  %2645 = vperm.xlu0 %2644, %v2466
  %v2646 = vpop.permute.xlu0 %2645
  %2649 = vset.pattern.permute.xlu0 0
  %2650 = vperm.xlu0 %2649, %v2467
  %v2651 = vpop.permute.xlu0 %2650
  %2654 = vset.pattern.permute.xlu0 0
  %2655 = vperm.xlu0 %2654, %v2468
  %v2656 = vpop.permute.xlu0 %2655
  %2659 = vset.pattern.permute.xlu0 0
  %2660 = vperm.xlu0 %2659, %v2469
  %v2661 = vpop.permute.xlu0 %2660
  %2664 = vset.pattern.permute.xlu0 0
  %2665 = vperm.xlu0 %2664, %v2470
  %v2666 = vpop.permute.xlu0 %2665
  %2669 = vset.pattern.permute.xlu0 0
  %2670 = vperm.xlu0 %2669, %v2471
  %v2671 = vpop.permute.xlu0 %2670
  %2674 = vset.pattern.permute.xlu0 0
  %2675 = vperm.xlu0 %2674, %v2472
  %v2676 = vpop.permute.xlu0 %2675
  %2679 = vset.pattern.permute.xlu0 0
  %2680 = vperm.xlu0 %2679, %v2473
  %v2681 = vpop.permute.xlu0 %2680
  %2684 = vset.pattern.permute.xlu0 0
  %2685 = vperm.xlu0 %2684, %v2474
  %v2686 = vpop.permute.xlu0 %2685
  %2689 = vset.pattern.permute.xlu0 0
  %2690 = vperm.xlu0 %2689, %v2475
  %v2691 = vpop.permute.xlu0 %2690
  %2694 = vset.pattern.permute.xlu0 0
  %2695 = vperm.xlu0 %2694, %v2476
  %v2696 = vpop.permute.xlu0 %2695
  %2699 = vset.pattern.permute.xlu0 0
  %2700 = vperm.xlu0 %2699, %v2477
  %v2701 = vpop.permute.xlu0 %2700
  %2704 = vset.pattern.permute.xlu0 0
  %2705 = vperm.xlu0 %2704, %v2478
  %v2706 = vpop.permute.xlu0 %2705
  %2709 = vset.pattern.permute.xlu0 0
  %2710 = vperm.xlu0 %2709, %v2479
  %v2711 = vpop.permute.xlu0 %2710
  %2714 = vset.pattern.permute.xlu0 0
  %2715 = vperm.xlu0 %2714, %v2480
  %v2716 = vpop.permute.xlu0 %2715
  %2719 = vset.pattern.permute.xlu0 0
  %2720 = vperm.xlu0 %2719, %v2481
  %v2721 = vpop.permute.xlu0 %2720
  %2724 = vset.pattern.permute.xlu0 0
  %2725 = vperm.xlu0 %2724, %v2482
  %v2726 = vpop.permute.xlu0 %2725
  %2729 = vset.pattern.permute.xlu0 0
  %2730 = vperm.xlu0 %2729, %v2483
  %v2731 = vpop.permute.xlu0 %2730
  %2734 = vset.pattern.permute.xlu0 0
  %2735 = vperm.xlu0 %2734, %v2484
  %v2736 = vpop.permute.xlu0 %2735
  %2739 = vset.pattern.permute.xlu0 0
  %2740 = vperm.xlu0 %2739, %v2485
  %v2741 = vpop.permute.xlu0 %2740
  %2744 = vset.pattern.permute.xlu0 0
  %2745 = vperm.xlu0 %2744, %v2486
  %v2746 = vpop.permute.xlu0 %2745
  %2749 = vset.pattern.permute.xlu0 0
  %2750 = vperm.xlu0 %2749, %v2487
  %v2751 = vpop.permute.xlu0 %2750
  %2754 = vset.pattern.permute.xlu0 0
  %2755 = vperm.xlu0 %2754, %v2488
  %v2756 = vpop.permute.xlu0 %2755
  %2759 = vset.pattern.permute.xlu0 0
  %2760 = vperm.xlu0 %2759, %v2489
  %v2761 = vpop.permute.xlu0 %2760
  %2764 = vset.pattern.permute.xlu0 0
  %2765 = vperm.xlu0 %2764, %v2490
  %v2766 = vpop.permute.xlu0 %2765
  %2769 = vset.pattern.permute.xlu0 0
  %2770 = vperm.xlu0 %2769, %v2491
  %v2771 = vpop.permute.xlu0 %2770
  %v2773 = vlaneseq
  %v2774 = vshrl.u32 %v2773, 7
  %v2775 = vsub.s32 0, %v2774
  %v2776 = vrot.slane %v2492, %v2775
  %v2777 = vmul.f32 %v2496, %v2776
  %v2778 = vmul.f32 %v2501, %v2776
  %v2779 = vmul.f32 %v2506, %v2776
  %v2780 = vmul.f32 %v2511, %v2776
  %v2781 = vmul.f32 %v2516, %v2776
  %v2782 = vmul.f32 %v2521, %v2776
  %v2783 = vmul.f32 %v2526, %v2776
  %v2784 = vmul.f32 %v2531, %v2776
  %v2785 = vmul.f32 %v2536, %v2776
  %v2786 = vmul.f32 %v2541, %v2776
  %v2787 = vmul.f32 %v2546, %v2776
  %v2788 = vmul.f32 %v2551, %v2776
  %v2789 = vmul.f32 %v2556, %v2776
  %v2790 = vmul.f32 %v2561, %v2776
  %v2791 = vmul.f32 %v2566, %v2776
  %v2792 = vmul.f32 %v2571, %v2776
  %v2793 = vmul.f32 %v2576, %v2776
  %v2794 = vmul.f32 %v2581, %v2776
  %v2795 = vmul.f32 %v2586, %v2776
  %v2796 = vmul.f32 %v2591, %v2776
  %v2797 = vmul.f32 %v2596, %v2776
  %v2798 = vmul.f32 %v2601, %v2776
  %v2799 = vmul.f32 %v2606, %v2776
  %v2800 = vmul.f32 %v2611, %v2776
  %v2801 = vmul.f32 %v2616, %v2776
  %v2802 = vmul.f32 %v2621, %v2776
  %v2803 = vmul.f32 %v2626, %v2776
  %v2804 = vmul.f32 %v2631, %v2776
  %v2805 = vmul.f32 %v2636, %v2776
  %v2806 = vmul.f32 %v2641, %v2776
  %v2807 = vmul.f32 %v2646, %v2776
  %v2808 = vmul.f32 %v2651, %v2776
  %v2809 = vmul.f32 %v2656, %v2776
  %v2810 = vmul.f32 %v2661, %v2776
  %v2811 = vmul.f32 %v2666, %v2776
  %v2812 = vmul.f32 %v2671, %v2776
  %v2813 = vmul.f32 %v2676, %v2776
  %v2814 = vmul.f32 %v2681, %v2776
  %v2815 = vmul.f32 %v2686, %v2776
  %v2816 = vmul.f32 %v2691, %v2776
  %v2817 = vmul.f32 %v2696, %v2776
  %v2818 = vmul.f32 %v2701, %v2776
  %v2819 = vmul.f32 %v2706, %v2776
  %v2820 = vmul.f32 %v2711, %v2776
  %v2821 = vmul.f32 %v2716, %v2776
  %v2822 = vmul.f32 %v2721, %v2776
  %v2823 = vmul.f32 %v2726, %v2776
  %v2824 = vmul.f32 %v2731, %v2776
  %v2825 = vmul.f32 %v2736, %v2776
  %v2826 = vmul.f32 %v2741, %v2776
  %v2827 = vmul.f32 %v2746, %v2776
  %v2828 = vmul.f32 %v2751, %v2776
  %v2829 = vmul.f32 %v2756, %v2776
  %v2830 = vmul.f32 %v2761, %v2776
  %v2831 = vmul.f32 %v2766, %v2776
  %v2832 = vmul.f32 %v2771, %v2776
  %v2833 = vadd.f32 %v2777, 0.0
  %v2834 = vadd.f32 %v2778, 0.0
  %v2835 = vadd.f32 %v2779, 0.0
  %v2836 = vadd.f32 %v2780, 0.0
  %v2837 = vadd.f32 %v2781, 0.0
  %v2838 = vadd.f32 %v2782, 0.0
  %v2839 = vadd.f32 %v2783, 0.0
  %v2840 = vadd.f32 %v2784, 0.0
  %v2841 = vadd.f32 %v2785, 0.0
  %v2842 = vadd.f32 %v2786, 0.0
  %v2843 = vadd.f32 %v2787, 0.0
  %v2844 = vadd.f32 %v2788, 0.0
  %v2845 = vadd.f32 %v2789, 0.0
  %v2846 = vadd.f32 %v2790, 0.0
  %v2847 = vadd.f32 %v2791, 0.0
  %v2848 = vadd.f32 %v2792, 0.0
  %v2849 = vadd.f32 %v2793, 0.0
  %v2850 = vadd.f32 %v2794, 0.0
  %v2851 = vadd.f32 %v2795, 0.0
  %v2852 = vadd.f32 %v2796, 0.0
  %v2853 = vadd.f32 %v2797, 0.0
  %v2854 = vadd.f32 %v2798, 0.0
  %v2855 = vadd.f32 %v2799, 0.0
  %v2856 = vadd.f32 %v2800, 0.0
  %v2857 = vadd.f32 %v2801, 0.0
  %v2858 = vadd.f32 %v2802, 0.0
  %v2859 = vadd.f32 %v2803, 0.0
  %v2860 = vadd.f32 %v2804, 0.0
  %v2861 = vadd.f32 %v2805, 0.0
  %v2862 = vadd.f32 %v2806, 0.0
  %v2863 = vadd.f32 %v2807, 0.0
  %v2864 = vadd.f32 %v2808, 0.0
  %v2865 = vadd.f32 %v2809, 0.0
  %v2866 = vadd.f32 %v2810, 0.0
  %v2867 = vadd.f32 %v2811, 0.0
  %v2868 = vadd.f32 %v2812, 0.0
  %v2869 = vadd.f32 %v2813, 0.0
  %v2870 = vadd.f32 %v2814, 0.0
  %v2871 = vadd.f32 %v2815, 0.0
  %v2872 = vadd.f32 %v2816, 0.0
  %v2873 = vadd.f32 %v2817, 0.0
  %v2874 = vadd.f32 %v2818, 0.0
  %v2875 = vadd.f32 %v2819, 0.0
  %v2876 = vadd.f32 %v2820, 0.0
  %v2877 = vadd.f32 %v2821, 0.0
  %v2878 = vadd.f32 %v2822, 0.0
  %v2879 = vadd.f32 %v2823, 0.0
  %v2880 = vadd.f32 %v2824, 0.0
  %v2881 = vadd.f32 %v2825, 0.0
  %v2882 = vadd.f32 %v2826, 0.0
  %v2883 = vadd.f32 %v2827, 0.0
  %v2884 = vadd.f32 %v2828, 0.0
  %v2885 = vadd.f32 %v2829, 0.0
  %v2886 = vadd.f32 %v2830, 0.0
  %v2887 = vadd.f32 %v2831, 0.0
  %v2888 = vadd.f32 %v2832, 0.0
  %2889 = vset.pattern.permute.xlu0 1
  %2890 = vperm.xlu0 %2889, %v2436
  %v2891 = vpop.permute.xlu0 %2890
  %2893 = vset.pattern.permute.xlu0 1
  %2894 = vperm.xlu0 %2893, %v2437
  %v2895 = vpop.permute.xlu0 %2894
  %2897 = vset.pattern.permute.xlu0 1
  %2898 = vperm.xlu0 %2897, %v2438
  %v2899 = vpop.permute.xlu0 %2898
  %2901 = vset.pattern.permute.xlu0 1
  %2902 = vperm.xlu0 %2901, %v2439
  %v2903 = vpop.permute.xlu0 %2902
  %2905 = vset.pattern.permute.xlu0 1
  %2906 = vperm.xlu0 %2905, %v2440
  %v2907 = vpop.permute.xlu0 %2906
  %2909 = vset.pattern.permute.xlu0 1
  %2910 = vperm.xlu0 %2909, %v2441
  %v2911 = vpop.permute.xlu0 %2910
  %2913 = vset.pattern.permute.xlu0 1
  %2914 = vperm.xlu0 %2913, %v2442
  %v2915 = vpop.permute.xlu0 %2914
  %2917 = vset.pattern.permute.xlu0 1
  %2918 = vperm.xlu0 %2917, %v2443
  %v2919 = vpop.permute.xlu0 %2918
  %2921 = vset.pattern.permute.xlu0 1
  %2922 = vperm.xlu0 %2921, %v2444
  %v2923 = vpop.permute.xlu0 %2922
  %2925 = vset.pattern.permute.xlu0 1
  %2926 = vperm.xlu0 %2925, %v2445
  %v2927 = vpop.permute.xlu0 %2926
  %2929 = vset.pattern.permute.xlu0 1
  %2930 = vperm.xlu0 %2929, %v2446
  %v2931 = vpop.permute.xlu0 %2930
  %2933 = vset.pattern.permute.xlu0 1
  %2934 = vperm.xlu0 %2933, %v2447
  %v2935 = vpop.permute.xlu0 %2934
  %2937 = vset.pattern.permute.xlu0 1
  %2938 = vperm.xlu0 %2937, %v2448
  %v2939 = vpop.permute.xlu0 %2938
  %2941 = vset.pattern.permute.xlu0 1
  %2942 = vperm.xlu0 %2941, %v2449
  %v2943 = vpop.permute.xlu0 %2942
  %2945 = vset.pattern.permute.xlu0 1
  %2946 = vperm.xlu0 %2945, %v2450
  %v2947 = vpop.permute.xlu0 %2946
  %2949 = vset.pattern.permute.xlu0 1
  %2950 = vperm.xlu0 %2949, %v2451
  %v2951 = vpop.permute.xlu0 %2950
  %2953 = vset.pattern.permute.xlu0 1
  %2954 = vperm.xlu0 %2953, %v2452
  %v2955 = vpop.permute.xlu0 %2954
  %2957 = vset.pattern.permute.xlu0 1
  %2958 = vperm.xlu0 %2957, %v2453
  %v2959 = vpop.permute.xlu0 %2958
  %2961 = vset.pattern.permute.xlu0 1
  %2962 = vperm.xlu0 %2961, %v2454
  %v2963 = vpop.permute.xlu0 %2962
  %2965 = vset.pattern.permute.xlu0 1
  %2966 = vperm.xlu0 %2965, %v2455
  %v2967 = vpop.permute.xlu0 %2966
  %2969 = vset.pattern.permute.xlu0 1
  %2970 = vperm.xlu0 %2969, %v2456
  %v2971 = vpop.permute.xlu0 %2970
  %2973 = vset.pattern.permute.xlu0 1
  %2974 = vperm.xlu0 %2973, %v2457
  %v2975 = vpop.permute.xlu0 %2974
  %2977 = vset.pattern.permute.xlu0 1
  %2978 = vperm.xlu0 %2977, %v2458
  %v2979 = vpop.permute.xlu0 %2978
  %2981 = vset.pattern.permute.xlu0 1
  %2982 = vperm.xlu0 %2981, %v2459
  %v2983 = vpop.permute.xlu0 %2982
  %2985 = vset.pattern.permute.xlu0 1
  %2986 = vperm.xlu0 %2985, %v2460
  %v2987 = vpop.permute.xlu0 %2986
  %2989 = vset.pattern.permute.xlu0 1
  %2990 = vperm.xlu0 %2989, %v2461
  %v2991 = vpop.permute.xlu0 %2990
  %2993 = vset.pattern.permute.xlu0 1
  %2994 = vperm.xlu0 %2993, %v2462
  %v2995 = vpop.permute.xlu0 %2994
  %2997 = vset.pattern.permute.xlu0 1
  %2998 = vperm.xlu0 %2997, %v2463
  %v2999 = vpop.permute.xlu0 %2998
  %3001 = vset.pattern.permute.xlu0 1
  %3002 = vperm.xlu0 %3001, %v2464
  %v3003 = vpop.permute.xlu0 %3002
  %3005 = vset.pattern.permute.xlu0 1
  %3006 = vperm.xlu0 %3005, %v2465
  %v3007 = vpop.permute.xlu0 %3006
  %3009 = vset.pattern.permute.xlu0 1
  %3010 = vperm.xlu0 %3009, %v2466
  %v3011 = vpop.permute.xlu0 %3010
  %3013 = vset.pattern.permute.xlu0 1
  %3014 = vperm.xlu0 %3013, %v2467
  %v3015 = vpop.permute.xlu0 %3014
  %3017 = vset.pattern.permute.xlu0 1
  %3018 = vperm.xlu0 %3017, %v2468
  %v3019 = vpop.permute.xlu0 %3018
  %3021 = vset.pattern.permute.xlu0 1
  %3022 = vperm.xlu0 %3021, %v2469
  %v3023 = vpop.permute.xlu0 %3022
  %3025 = vset.pattern.permute.xlu0 1
  %3026 = vperm.xlu0 %3025, %v2470
  %v3027 = vpop.permute.xlu0 %3026
  %3029 = vset.pattern.permute.xlu0 1
  %3030 = vperm.xlu0 %3029, %v2471
  %v3031 = vpop.permute.xlu0 %3030
  %3033 = vset.pattern.permute.xlu0 1
  %3034 = vperm.xlu0 %3033, %v2472
  %v3035 = vpop.permute.xlu0 %3034
  %3037 = vset.pattern.permute.xlu0 1
  %3038 = vperm.xlu0 %3037, %v2473
  %v3039 = vpop.permute.xlu0 %3038
  %3041 = vset.pattern.permute.xlu0 1
  %3042 = vperm.xlu0 %3041, %v2474
  %v3043 = vpop.permute.xlu0 %3042
  %3045 = vset.pattern.permute.xlu0 1
  %3046 = vperm.xlu0 %3045, %v2475
  %v3047 = vpop.permute.xlu0 %3046
  %3049 = vset.pattern.permute.xlu0 1
  %3050 = vperm.xlu0 %3049, %v2476
  %v3051 = vpop.permute.xlu0 %3050
  %3053 = vset.pattern.permute.xlu0 1
  %3054 = vperm.xlu0 %3053, %v2477
  %v3055 = vpop.permute.xlu0 %3054
  %3057 = vset.pattern.permute.xlu0 1
  %3058 = vperm.xlu0 %3057, %v2478
  %v3059 = vpop.permute.xlu0 %3058
  %3061 = vset.pattern.permute.xlu0 1
  %3062 = vperm.xlu0 %3061, %v2479
  %v3063 = vpop.permute.xlu0 %3062
  %3065 = vset.pattern.permute.xlu0 1
  %3066 = vperm.xlu0 %3065, %v2480
  %v3067 = vpop.permute.xlu0 %3066
  %3069 = vset.pattern.permute.xlu0 1
  %3070 = vperm.xlu0 %3069, %v2481
  %v3071 = vpop.permute.xlu0 %3070
  %3073 = vset.pattern.permute.xlu0 1
  %3074 = vperm.xlu0 %3073, %v2482
  %v3075 = vpop.permute.xlu0 %3074
  %3077 = vset.pattern.permute.xlu0 1
  %3078 = vperm.xlu0 %3077, %v2483
  %v3079 = vpop.permute.xlu0 %3078
  %3081 = vset.pattern.permute.xlu0 1
  %3082 = vperm.xlu0 %3081, %v2484
  %v3083 = vpop.permute.xlu0 %3082
  %3085 = vset.pattern.permute.xlu0 1
  %3086 = vperm.xlu0 %3085, %v2485
  %v3087 = vpop.permute.xlu0 %3086
  %3089 = vset.pattern.permute.xlu0 1
  %3090 = vperm.xlu0 %3089, %v2486
  %v3091 = vpop.permute.xlu0 %3090
  %3093 = vset.pattern.permute.xlu0 1
  %3094 = vperm.xlu0 %3093, %v2487
  %v3095 = vpop.permute.xlu0 %3094
  %3097 = vset.pattern.permute.xlu0 1
  %3098 = vperm.xlu0 %3097, %v2488
  %v3099 = vpop.permute.xlu0 %3098
  %3101 = vset.pattern.permute.xlu0 1
  %3102 = vperm.xlu0 %3101, %v2489
  %v3103 = vpop.permute.xlu0 %3102
  %3105 = vset.pattern.permute.xlu0 1
  %3106 = vperm.xlu0 %3105, %v2490
  %v3107 = vpop.permute.xlu0 %3106
  %3109 = vset.pattern.permute.xlu0 1
  %3110 = vperm.xlu0 %3109, %v2491
  %v3111 = vpop.permute.xlu0 %3110
  %v3113 = vlaneseq
  %v3114 = vshrl.u32 %v3113, 7
  %v3115 = vsub.s32 1, %v3114
  %v3116 = vrot.slane %v2492, %v3115
  %v3117 = vmul.f32 %v2891, %v3116
  %v3118 = vmul.f32 %v2895, %v3116
  %v3119 = vmul.f32 %v2899, %v3116
  %v3120 = vmul.f32 %v2903, %v3116
  %v3121 = vmul.f32 %v2907, %v3116
  %v3122 = vmul.f32 %v2911, %v3116
  %v3123 = vmul.f32 %v2915, %v3116
  %v3124 = vmul.f32 %v2919, %v3116
  %v3125 = vmul.f32 %v2923, %v3116
  %v3126 = vmul.f32 %v2927, %v3116
  %v3127 = vmul.f32 %v2931, %v3116
  %v3128 = vmul.f32 %v2935, %v3116
  %v3129 = vmul.f32 %v2939, %v3116
  %v3130 = vmul.f32 %v2943, %v3116
  %v3131 = vmul.f32 %v2947, %v3116
  %v3132 = vmul.f32 %v2951, %v3116
  %v3133 = vmul.f32 %v2955, %v3116
  %v3134 = vmul.f32 %v2959, %v3116
  %v3135 = vmul.f32 %v2963, %v3116
  %v3136 = vmul.f32 %v2967, %v3116
  %v3137 = vmul.f32 %v2971, %v3116
  %v3138 = vmul.f32 %v2975, %v3116
  %v3139 = vmul.f32 %v2979, %v3116
  %v3140 = vmul.f32 %v2983, %v3116
  %v3141 = vmul.f32 %v2987, %v3116
  %v3142 = vmul.f32 %v2991, %v3116
  %v3143 = vmul.f32 %v2995, %v3116
  %v3144 = vmul.f32 %v2999, %v3116
  %v3145 = vmul.f32 %v3003, %v3116
  %v3146 = vmul.f32 %v3007, %v3116
  %v3147 = vmul.f32 %v3011, %v3116
  %v3148 = vmul.f32 %v3015, %v3116
  %v3149 = vmul.f32 %v3019, %v3116
  %v3150 = vmul.f32 %v3023, %v3116
  %v3151 = vmul.f32 %v3027, %v3116
  %v3152 = vmul.f32 %v3031, %v3116
  %v3153 = vmul.f32 %v3035, %v3116
  %v3154 = vmul.f32 %v3039, %v3116
  %v3155 = vmul.f32 %v3043, %v3116
  %v3156 = vmul.f32 %v3047, %v3116
  %v3157 = vmul.f32 %v3051, %v3116
  %v3158 = vmul.f32 %v3055, %v3116
  %v3159 = vmul.f32 %v3059, %v3116
  %v3160 = vmul.f32 %v3063, %v3116
  %v3161 = vmul.f32 %v3067, %v3116
  %v3162 = vmul.f32 %v3071, %v3116
  %v3163 = vmul.f32 %v3075, %v3116
  %v3164 = vmul.f32 %v3079, %v3116
  %v3165 = vmul.f32 %v3083, %v3116
  %v3166 = vmul.f32 %v3087, %v3116
  %v3167 = vmul.f32 %v3091, %v3116
  %v3168 = vmul.f32 %v3095, %v3116
  %v3169 = vmul.f32 %v3099, %v3116
  %v3170 = vmul.f32 %v3103, %v3116
  %v3171 = vmul.f32 %v3107, %v3116
  %v3172 = vmul.f32 %v3111, %v3116
  %v3173 = vadd.f32 %v2833, %v3117
  %v3174 = vadd.f32 %v2834, %v3118
  %v3175 = vadd.f32 %v2835, %v3119
  %v3176 = vadd.f32 %v2836, %v3120
  %v3177 = vadd.f32 %v2837, %v3121
  %v3178 = vadd.f32 %v2838, %v3122
  %v3179 = vadd.f32 %v2839, %v3123
  %v3180 = vadd.f32 %v2840, %v3124
  %v3181 = vadd.f32 %v2841, %v3125
  %v3182 = vadd.f32 %v2842, %v3126
  %v3183 = vadd.f32 %v2843, %v3127
  %v3184 = vadd.f32 %v2844, %v3128
  %v3185 = vadd.f32 %v2845, %v3129
  %v3186 = vadd.f32 %v2846, %v3130
  %v3187 = vadd.f32 %v2847, %v3131
  %v3188 = vadd.f32 %v2848, %v3132
  %v3189 = vadd.f32 %v2849, %v3133
  %v3190 = vadd.f32 %v2850, %v3134
  %v3191 = vadd.f32 %v2851, %v3135
  %v3192 = vadd.f32 %v2852, %v3136
  %v3193 = vadd.f32 %v2853, %v3137
  %v3194 = vadd.f32 %v2854, %v3138
  %v3195 = vadd.f32 %v2855, %v3139
  %v3196 = vadd.f32 %v2856, %v3140
  %v3197 = vadd.f32 %v2857, %v3141
  %v3198 = vadd.f32 %v2858, %v3142
  %v3199 = vadd.f32 %v2859, %v3143
  %v3200 = vadd.f32 %v2860, %v3144
  %v3201 = vadd.f32 %v2861, %v3145
  %v3202 = vadd.f32 %v2862, %v3146
  %v3203 = vadd.f32 %v2863, %v3147
  %v3204 = vadd.f32 %v2864, %v3148
  %v3205 = vadd.f32 %v2865, %v3149
  %v3206 = vadd.f32 %v2866, %v3150
  %v3207 = vadd.f32 %v2867, %v3151
  %v3208 = vadd.f32 %v2868, %v3152
  %v3209 = vadd.f32 %v2869, %v3153
  %v3210 = vadd.f32 %v2870, %v3154
  %v3211 = vadd.f32 %v2871, %v3155
  %v3212 = vadd.f32 %v2872, %v3156
  %v3213 = vadd.f32 %v2873, %v3157
  %v3214 = vadd.f32 %v2874, %v3158
  %v3215 = vadd.f32 %v2875, %v3159
  %v3216 = vadd.f32 %v2876, %v3160
  %v3217 = vadd.f32 %v2877, %v3161
  %v3218 = vadd.f32 %v2878, %v3162
  %v3219 = vadd.f32 %v2879, %v3163
  %v3220 = vadd.f32 %v2880, %v3164
  %v3221 = vadd.f32 %v2881, %v3165
  %v3222 = vadd.f32 %v2882, %v3166
  %v3223 = vadd.f32 %v2883, %v3167
  %v3224 = vadd.f32 %v2884, %v3168
  %v3225 = vadd.f32 %v2885, %v3169
  %v3226 = vadd.f32 %v2886, %v3170
  %v3227 = vadd.f32 %v2887, %v3171
  %v3228 = vadd.f32 %v2888, %v3172
  %3229 = vset.pattern.permute.xlu0 2
  %3230 = vperm.xlu0 %3229, %v2436
  %v3231 = vpop.permute.xlu0 %3230
  %3233 = vset.pattern.permute.xlu0 2
  %3234 = vperm.xlu0 %3233, %v2437
  %v3235 = vpop.permute.xlu0 %3234
  %3237 = vset.pattern.permute.xlu0 2
  %3238 = vperm.xlu0 %3237, %v2438
  %v3239 = vpop.permute.xlu0 %3238
  %3241 = vset.pattern.permute.xlu0 2
  %3242 = vperm.xlu0 %3241, %v2439
  %v3243 = vpop.permute.xlu0 %3242
  %3245 = vset.pattern.permute.xlu0 2
  %3246 = vperm.xlu0 %3245, %v2440
  %v3247 = vpop.permute.xlu0 %3246
  %3249 = vset.pattern.permute.xlu0 2
  %3250 = vperm.xlu0 %3249, %v2441
  %v3251 = vpop.permute.xlu0 %3250
  %3253 = vset.pattern.permute.xlu0 2
  %3254 = vperm.xlu0 %3253, %v2442
  %v3255 = vpop.permute.xlu0 %3254
  %3257 = vset.pattern.permute.xlu0 2
  %3258 = vperm.xlu0 %3257, %v2443
  %v3259 = vpop.permute.xlu0 %3258
  %3261 = vset.pattern.permute.xlu0 2
  %3262 = vperm.xlu0 %3261, %v2444
  %v3263 = vpop.permute.xlu0 %3262
  %3265 = vset.pattern.permute.xlu0 2
  %3266 = vperm.xlu0 %3265, %v2445
  %v3267 = vpop.permute.xlu0 %3266
  %3269 = vset.pattern.permute.xlu0 2
  %3270 = vperm.xlu0 %3269, %v2446
  %v3271 = vpop.permute.xlu0 %3270
  %3273 = vset.pattern.permute.xlu0 2
  %3274 = vperm.xlu0 %3273, %v2447
  %v3275 = vpop.permute.xlu0 %3274
  %3277 = vset.pattern.permute.xlu0 2
  %3278 = vperm.xlu0 %3277, %v2448
  %v3279 = vpop.permute.xlu0 %3278
  %3281 = vset.pattern.permute.xlu0 2
  %3282 = vperm.xlu0 %3281, %v2449
  %v3283 = vpop.permute.xlu0 %3282
  %3285 = vset.pattern.permute.xlu0 2
  %3286 = vperm.xlu0 %3285, %v2450
  %v3287 = vpop.permute.xlu0 %3286
  %3289 = vset.pattern.permute.xlu0 2
  %3290 = vperm.xlu0 %3289, %v2451
  %v3291 = vpop.permute.xlu0 %3290
  %3293 = vset.pattern.permute.xlu0 2
  %3294 = vperm.xlu0 %3293, %v2452
  %v3295 = vpop.permute.xlu0 %3294
  %3297 = vset.pattern.permute.xlu0 2
  %3298 = vperm.xlu0 %3297, %v2453
  %v3299 = vpop.permute.xlu0 %3298
  %3301 = vset.pattern.permute.xlu0 2
  %3302 = vperm.xlu0 %3301, %v2454
  %v3303 = vpop.permute.xlu0 %3302
  %3305 = vset.pattern.permute.xlu0 2
  %3306 = vperm.xlu0 %3305, %v2455
  %v3307 = vpop.permute.xlu0 %3306
  %3309 = vset.pattern.permute.xlu0 2
  %3310 = vperm.xlu0 %3309, %v2456
  %v3311 = vpop.permute.xlu0 %3310
  %3313 = vset.pattern.permute.xlu0 2
  %3314 = vperm.xlu0 %3313, %v2457
  %v3315 = vpop.permute.xlu0 %3314
  %3317 = vset.pattern.permute.xlu0 2
  %3318 = vperm.xlu0 %3317, %v2458
  %v3319 = vpop.permute.xlu0 %3318
  %3321 = vset.pattern.permute.xlu0 2
  %3322 = vperm.xlu0 %3321, %v2459
  %v3323 = vpop.permute.xlu0 %3322
  %3325 = vset.pattern.permute.xlu0 2
  %3326 = vperm.xlu0 %3325, %v2460
  %v3327 = vpop.permute.xlu0 %3326
  %3329 = vset.pattern.permute.xlu0 2
  %3330 = vperm.xlu0 %3329, %v2461
  %v3331 = vpop.permute.xlu0 %3330
  %3333 = vset.pattern.permute.xlu0 2
  %3334 = vperm.xlu0 %3333, %v2462
  %v3335 = vpop.permute.xlu0 %3334
  %3337 = vset.pattern.permute.xlu0 2
  %3338 = vperm.xlu0 %3337, %v2463
  %v3339 = vpop.permute.xlu0 %3338
  %3341 = vset.pattern.permute.xlu0 2
  %3342 = vperm.xlu0 %3341, %v2464
  %v3343 = vpop.permute.xlu0 %3342
  %3345 = vset.pattern.permute.xlu0 2
  %3346 = vperm.xlu0 %3345, %v2465
  %v3347 = vpop.permute.xlu0 %3346
  %3349 = vset.pattern.permute.xlu0 2
  %3350 = vperm.xlu0 %3349, %v2466
  %v3351 = vpop.permute.xlu0 %3350
  %3353 = vset.pattern.permute.xlu0 2
  %3354 = vperm.xlu0 %3353, %v2467
  %v3355 = vpop.permute.xlu0 %3354
  %3357 = vset.pattern.permute.xlu0 2
  %3358 = vperm.xlu0 %3357, %v2468
  %v3359 = vpop.permute.xlu0 %3358
  %3361 = vset.pattern.permute.xlu0 2
  %3362 = vperm.xlu0 %3361, %v2469
  %v3363 = vpop.permute.xlu0 %3362
  %3365 = vset.pattern.permute.xlu0 2
  %3366 = vperm.xlu0 %3365, %v2470
  %v3367 = vpop.permute.xlu0 %3366
  %3369 = vset.pattern.permute.xlu0 2
  %3370 = vperm.xlu0 %3369, %v2471
  %v3371 = vpop.permute.xlu0 %3370
  %3373 = vset.pattern.permute.xlu0 2
  %3374 = vperm.xlu0 %3373, %v2472
  %v3375 = vpop.permute.xlu0 %3374
  %3377 = vset.pattern.permute.xlu0 2
  %3378 = vperm.xlu0 %3377, %v2473
  %v3379 = vpop.permute.xlu0 %3378
  %3381 = vset.pattern.permute.xlu0 2
  %3382 = vperm.xlu0 %3381, %v2474
  %v3383 = vpop.permute.xlu0 %3382
  %3385 = vset.pattern.permute.xlu0 2
  %3386 = vperm.xlu0 %3385, %v2475
  %v3387 = vpop.permute.xlu0 %3386
  %3389 = vset.pattern.permute.xlu0 2
  %3390 = vperm.xlu0 %3389, %v2476
  %v3391 = vpop.permute.xlu0 %3390
  %3393 = vset.pattern.permute.xlu0 2
  %3394 = vperm.xlu0 %3393, %v2477
  %v3395 = vpop.permute.xlu0 %3394
  %3397 = vset.pattern.permute.xlu0 2
  %3398 = vperm.xlu0 %3397, %v2478
  %v3399 = vpop.permute.xlu0 %3398
  %3401 = vset.pattern.permute.xlu0 2
  %3402 = vperm.xlu0 %3401, %v2479
  %v3403 = vpop.permute.xlu0 %3402
  %3405 = vset.pattern.permute.xlu0 2
  %3406 = vperm.xlu0 %3405, %v2480
  %v3407 = vpop.permute.xlu0 %3406
  %3409 = vset.pattern.permute.xlu0 2
  %3410 = vperm.xlu0 %3409, %v2481
  %v3411 = vpop.permute.xlu0 %3410
  %3413 = vset.pattern.permute.xlu0 2
  %3414 = vperm.xlu0 %3413, %v2482
  %v3415 = vpop.permute.xlu0 %3414
  %3417 = vset.pattern.permute.xlu0 2
  %3418 = vperm.xlu0 %3417, %v2483
  %v3419 = vpop.permute.xlu0 %3418
  %3421 = vset.pattern.permute.xlu0 2
  %3422 = vperm.xlu0 %3421, %v2484
  %v3423 = vpop.permute.xlu0 %3422
  %3425 = vset.pattern.permute.xlu0 2
  %3426 = vperm.xlu0 %3425, %v2485
  %v3427 = vpop.permute.xlu0 %3426
  %3429 = vset.pattern.permute.xlu0 2
  %3430 = vperm.xlu0 %3429, %v2486
  %v3431 = vpop.permute.xlu0 %3430
  %3433 = vset.pattern.permute.xlu0 2
  %3434 = vperm.xlu0 %3433, %v2487
  %v3435 = vpop.permute.xlu0 %3434
  %3437 = vset.pattern.permute.xlu0 2
  %3438 = vperm.xlu0 %3437, %v2488
  %v3439 = vpop.permute.xlu0 %3438
  %3441 = vset.pattern.permute.xlu0 2
  %3442 = vperm.xlu0 %3441, %v2489
  %v3443 = vpop.permute.xlu0 %3442
  %3445 = vset.pattern.permute.xlu0 2
  %3446 = vperm.xlu0 %3445, %v2490
  %v3447 = vpop.permute.xlu0 %3446
  %3449 = vset.pattern.permute.xlu0 2
  %3450 = vperm.xlu0 %3449, %v2491
  %v3451 = vpop.permute.xlu0 %3450
  %v3453 = vlaneseq
  %v3454 = vshrl.u32 %v3453, 7
  %v3455 = vsub.s32 2, %v3454
  %v3456 = vrot.slane %v2492, %v3455
  %v3457 = vmul.f32 %v3231, %v3456
  %v3458 = vmul.f32 %v3235, %v3456
  %v3459 = vmul.f32 %v3239, %v3456
  %v3460 = vmul.f32 %v3243, %v3456
  %v3461 = vmul.f32 %v3247, %v3456
  %v3462 = vmul.f32 %v3251, %v3456
  %v3463 = vmul.f32 %v3255, %v3456
  %v3464 = vmul.f32 %v3259, %v3456
  %v3465 = vmul.f32 %v3263, %v3456
  %v3466 = vmul.f32 %v3267, %v3456
  %v3467 = vmul.f32 %v3271, %v3456
  %v3468 = vmul.f32 %v3275, %v3456
  %v3469 = vmul.f32 %v3279, %v3456
  %v3470 = vmul.f32 %v3283, %v3456
  %v3471 = vmul.f32 %v3287, %v3456
  %v3472 = vmul.f32 %v3291, %v3456
  %v3473 = vmul.f32 %v3295, %v3456
  %v3474 = vmul.f32 %v3299, %v3456
  %v3475 = vmul.f32 %v3303, %v3456
  %v3476 = vmul.f32 %v3307, %v3456
  %v3477 = vmul.f32 %v3311, %v3456
  %v3478 = vmul.f32 %v3315, %v3456
  %v3479 = vmul.f32 %v3319, %v3456
  %v3480 = vmul.f32 %v3323, %v3456
  %v3481 = vmul.f32 %v3327, %v3456
  %v3482 = vmul.f32 %v3331, %v3456
  %v3483 = vmul.f32 %v3335, %v3456
  %v3484 = vmul.f32 %v3339, %v3456
  %v3485 = vmul.f32 %v3343, %v3456
  %v3486 = vmul.f32 %v3347, %v3456
  %v3487 = vmul.f32 %v3351, %v3456
  %v3488 = vmul.f32 %v3355, %v3456
  %v3489 = vmul.f32 %v3359, %v3456
  %v3490 = vmul.f32 %v3363, %v3456
  %v3491 = vmul.f32 %v3367, %v3456
  %v3492 = vmul.f32 %v3371, %v3456
  %v3493 = vmul.f32 %v3375, %v3456
  %v3494 = vmul.f32 %v3379, %v3456
  %v3495 = vmul.f32 %v3383, %v3456
  %v3496 = vmul.f32 %v3387, %v3456
  %v3497 = vmul.f32 %v3391, %v3456
  %v3498 = vmul.f32 %v3395, %v3456
  %v3499 = vmul.f32 %v3399, %v3456
  %v3500 = vmul.f32 %v3403, %v3456
  %v3501 = vmul.f32 %v3407, %v3456
  %v3502 = vmul.f32 %v3411, %v3456
  %v3503 = vmul.f32 %v3415, %v3456
  %v3504 = vmul.f32 %v3419, %v3456
  %v3505 = vmul.f32 %v3423, %v3456
  %v3506 = vmul.f32 %v3427, %v3456
  %v3507 = vmul.f32 %v3431, %v3456
  %v3508 = vmul.f32 %v3435, %v3456
  %v3509 = vmul.f32 %v3439, %v3456
  %v3510 = vmul.f32 %v3443, %v3456
  %v3511 = vmul.f32 %v3447, %v3456
  %v3512 = vmul.f32 %v3451, %v3456
  %v3513 = vadd.f32 %v3173, %v3457
  %v3514 = vadd.f32 %v3174, %v3458
  %v3515 = vadd.f32 %v3175, %v3459
  %v3516 = vadd.f32 %v3176, %v3460
  %v3517 = vadd.f32 %v3177, %v3461
  %v3518 = vadd.f32 %v3178, %v3462
  %v3519 = vadd.f32 %v3179, %v3463
  %v3520 = vadd.f32 %v3180, %v3464
  %v3521 = vadd.f32 %v3181, %v3465
  %v3522 = vadd.f32 %v3182, %v3466
  %v3523 = vadd.f32 %v3183, %v3467
  %v3524 = vadd.f32 %v3184, %v3468
  %v3525 = vadd.f32 %v3185, %v3469
  %v3526 = vadd.f32 %v3186, %v3470
  %v3527 = vadd.f32 %v3187, %v3471
  %v3528 = vadd.f32 %v3188, %v3472
  %v3529 = vadd.f32 %v3189, %v3473
  %v3530 = vadd.f32 %v3190, %v3474
  %v3531 = vadd.f32 %v3191, %v3475
  %v3532 = vadd.f32 %v3192, %v3476
  %v3533 = vadd.f32 %v3193, %v3477
  %v3534 = vadd.f32 %v3194, %v3478
  %v3535 = vadd.f32 %v3195, %v3479
  %v3536 = vadd.f32 %v3196, %v3480
  %v3537 = vadd.f32 %v3197, %v3481
  %v3538 = vadd.f32 %v3198, %v3482
  %v3539 = vadd.f32 %v3199, %v3483
  %v3540 = vadd.f32 %v3200, %v3484
  %v3541 = vadd.f32 %v3201, %v3485
  %v3542 = vadd.f32 %v3202, %v3486
  %v3543 = vadd.f32 %v3203, %v3487
  %v3544 = vadd.f32 %v3204, %v3488
  %v3545 = vadd.f32 %v3205, %v3489
  %v3546 = vadd.f32 %v3206, %v3490
  %v3547 = vadd.f32 %v3207, %v3491
  %v3548 = vadd.f32 %v3208, %v3492
  %v3549 = vadd.f32 %v3209, %v3493
  %v3550 = vadd.f32 %v3210, %v3494
  %v3551 = vadd.f32 %v3211, %v3495
  %v3552 = vadd.f32 %v3212, %v3496
  %v3553 = vadd.f32 %v3213, %v3497
  %v3554 = vadd.f32 %v3214, %v3498
  %v3555 = vadd.f32 %v3215, %v3499
  %v3556 = vadd.f32 %v3216, %v3500
  %v3557 = vadd.f32 %v3217, %v3501
  %v3558 = vadd.f32 %v3218, %v3502
  %v3559 = vadd.f32 %v3219, %v3503
  %v3560 = vadd.f32 %v3220, %v3504
  %v3561 = vadd.f32 %v3221, %v3505
  %v3562 = vadd.f32 %v3222, %v3506
  %v3563 = vadd.f32 %v3223, %v3507
  %v3564 = vadd.f32 %v3224, %v3508
  %v3565 = vadd.f32 %v3225, %v3509
  %v3566 = vadd.f32 %v3226, %v3510
  %v3567 = vadd.f32 %v3227, %v3511
  %v3568 = vadd.f32 %v3228, %v3512
  %3569 = vset.pattern.permute.xlu0 3
  %3570 = vperm.xlu0 %3569, %v2436
  %v3571 = vpop.permute.xlu0 %3570
  %3573 = vset.pattern.permute.xlu0 3
  %3574 = vperm.xlu0 %3573, %v2437
  %v3575 = vpop.permute.xlu0 %3574
  %3577 = vset.pattern.permute.xlu0 3
  %3578 = vperm.xlu0 %3577, %v2438
  %v3579 = vpop.permute.xlu0 %3578
  %3581 = vset.pattern.permute.xlu0 3
  %3582 = vperm.xlu0 %3581, %v2439
  %v3583 = vpop.permute.xlu0 %3582
  %3585 = vset.pattern.permute.xlu0 3
  %3586 = vperm.xlu0 %3585, %v2440
  %v3587 = vpop.permute.xlu0 %3586
  %3589 = vset.pattern.permute.xlu0 3
  %3590 = vperm.xlu0 %3589, %v2441
  %v3591 = vpop.permute.xlu0 %3590
  %3593 = vset.pattern.permute.xlu0 3
  %3594 = vperm.xlu0 %3593, %v2442
  %v3595 = vpop.permute.xlu0 %3594
  %3597 = vset.pattern.permute.xlu0 3
  %3598 = vperm.xlu0 %3597, %v2443
  %v3599 = vpop.permute.xlu0 %3598
  %3601 = vset.pattern.permute.xlu0 3
  %3602 = vperm.xlu0 %3601, %v2444
  %v3603 = vpop.permute.xlu0 %3602
  %3605 = vset.pattern.permute.xlu0 3
  %3606 = vperm.xlu0 %3605, %v2445
  %v3607 = vpop.permute.xlu0 %3606
  %3609 = vset.pattern.permute.xlu0 3
  %3610 = vperm.xlu0 %3609, %v2446
  %v3611 = vpop.permute.xlu0 %3610
  %3613 = vset.pattern.permute.xlu0 3
  %3614 = vperm.xlu0 %3613, %v2447
  %v3615 = vpop.permute.xlu0 %3614
  %3617 = vset.pattern.permute.xlu0 3
  %3618 = vperm.xlu0 %3617, %v2448
  %v3619 = vpop.permute.xlu0 %3618
  %3621 = vset.pattern.permute.xlu0 3
  %3622 = vperm.xlu0 %3621, %v2449
  %v3623 = vpop.permute.xlu0 %3622
  %3625 = vset.pattern.permute.xlu0 3
  %3626 = vperm.xlu0 %3625, %v2450
  %v3627 = vpop.permute.xlu0 %3626
  %3629 = vset.pattern.permute.xlu0 3
  %3630 = vperm.xlu0 %3629, %v2451
  %v3631 = vpop.permute.xlu0 %3630
  %3633 = vset.pattern.permute.xlu0 3
  %3634 = vperm.xlu0 %3633, %v2452
  %v3635 = vpop.permute.xlu0 %3634
  %3637 = vset.pattern.permute.xlu0 3
  %3638 = vperm.xlu0 %3637, %v2453
  %v3639 = vpop.permute.xlu0 %3638
  %3641 = vset.pattern.permute.xlu0 3
  %3642 = vperm.xlu0 %3641, %v2454
  %v3643 = vpop.permute.xlu0 %3642
  %3645 = vset.pattern.permute.xlu0 3
  %3646 = vperm.xlu0 %3645, %v2455
  %v3647 = vpop.permute.xlu0 %3646
  %3649 = vset.pattern.permute.xlu0 3
  %3650 = vperm.xlu0 %3649, %v2456
  %v3651 = vpop.permute.xlu0 %3650
  %3653 = vset.pattern.permute.xlu0 3
  %3654 = vperm.xlu0 %3653, %v2457
  %v3655 = vpop.permute.xlu0 %3654
  %3657 = vset.pattern.permute.xlu0 3
  %3658 = vperm.xlu0 %3657, %v2458
  %v3659 = vpop.permute.xlu0 %3658
  %3661 = vset.pattern.permute.xlu0 3
  %3662 = vperm.xlu0 %3661, %v2459
  %v3663 = vpop.permute.xlu0 %3662
  %3665 = vset.pattern.permute.xlu0 3
  %3666 = vperm.xlu0 %3665, %v2460
  %v3667 = vpop.permute.xlu0 %3666
  %3669 = vset.pattern.permute.xlu0 3
  %3670 = vperm.xlu0 %3669, %v2461
  %v3671 = vpop.permute.xlu0 %3670
  %3673 = vset.pattern.permute.xlu0 3
  %3674 = vperm.xlu0 %3673, %v2462
  %v3675 = vpop.permute.xlu0 %3674
  %3677 = vset.pattern.permute.xlu0 3
  %3678 = vperm.xlu0 %3677, %v2463
  %v3679 = vpop.permute.xlu0 %3678
  %3681 = vset.pattern.permute.xlu0 3
  %3682 = vperm.xlu0 %3681, %v2464
  %v3683 = vpop.permute.xlu0 %3682
  %3685 = vset.pattern.permute.xlu0 3
  %3686 = vperm.xlu0 %3685, %v2465
  %v3687 = vpop.permute.xlu0 %3686
  %3689 = vset.pattern.permute.xlu0 3
  %3690 = vperm.xlu0 %3689, %v2466
  %v3691 = vpop.permute.xlu0 %3690
  %3693 = vset.pattern.permute.xlu0 3
  %3694 = vperm.xlu0 %3693, %v2467
  %v3695 = vpop.permute.xlu0 %3694
  %3697 = vset.pattern.permute.xlu0 3
  %3698 = vperm.xlu0 %3697, %v2468
  %v3699 = vpop.permute.xlu0 %3698
  %3701 = vset.pattern.permute.xlu0 3
  %3702 = vperm.xlu0 %3701, %v2469
  %v3703 = vpop.permute.xlu0 %3702
  %3705 = vset.pattern.permute.xlu0 3
  %3706 = vperm.xlu0 %3705, %v2470
  %v3707 = vpop.permute.xlu0 %3706
  %3709 = vset.pattern.permute.xlu0 3
  %3710 = vperm.xlu0 %3709, %v2471
  %v3711 = vpop.permute.xlu0 %3710
  %3713 = vset.pattern.permute.xlu0 3
  %3714 = vperm.xlu0 %3713, %v2472
  %v3715 = vpop.permute.xlu0 %3714
  %3717 = vset.pattern.permute.xlu0 3
  %3718 = vperm.xlu0 %3717, %v2473
  %v3719 = vpop.permute.xlu0 %3718
  %3721 = vset.pattern.permute.xlu0 3
  %3722 = vperm.xlu0 %3721, %v2474
  %v3723 = vpop.permute.xlu0 %3722
  %3725 = vset.pattern.permute.xlu0 3
  %3726 = vperm.xlu0 %3725, %v2475
  %v3727 = vpop.permute.xlu0 %3726
  %3729 = vset.pattern.permute.xlu0 3
  %3730 = vperm.xlu0 %3729, %v2476
  %v3731 = vpop.permute.xlu0 %3730
  %3733 = vset.pattern.permute.xlu0 3
  %3734 = vperm.xlu0 %3733, %v2477
  %v3735 = vpop.permute.xlu0 %3734
  %3737 = vset.pattern.permute.xlu0 3
  %3738 = vperm.xlu0 %3737, %v2478
  %v3739 = vpop.permute.xlu0 %3738
  %3741 = vset.pattern.permute.xlu0 3
  %3742 = vperm.xlu0 %3741, %v2479
  %v3743 = vpop.permute.xlu0 %3742
  %3745 = vset.pattern.permute.xlu0 3
  %3746 = vperm.xlu0 %3745, %v2480
  %v3747 = vpop.permute.xlu0 %3746
  %3749 = vset.pattern.permute.xlu0 3
  %3750 = vperm.xlu0 %3749, %v2481
  %v3751 = vpop.permute.xlu0 %3750
  %3753 = vset.pattern.permute.xlu0 3
  %3754 = vperm.xlu0 %3753, %v2482
  %v3755 = vpop.permute.xlu0 %3754
  %3757 = vset.pattern.permute.xlu0 3
  %3758 = vperm.xlu0 %3757, %v2483
  %v3759 = vpop.permute.xlu0 %3758
  %3761 = vset.pattern.permute.xlu0 3
  %3762 = vperm.xlu0 %3761, %v2484
  %v3763 = vpop.permute.xlu0 %3762
  %3765 = vset.pattern.permute.xlu0 3
  %3766 = vperm.xlu0 %3765, %v2485
  %v3767 = vpop.permute.xlu0 %3766
  %3769 = vset.pattern.permute.xlu0 3
  %3770 = vperm.xlu0 %3769, %v2486
  %v3771 = vpop.permute.xlu0 %3770
  %3773 = vset.pattern.permute.xlu0 3
  %3774 = vperm.xlu0 %3773, %v2487
  %v3775 = vpop.permute.xlu0 %3774
  %3777 = vset.pattern.permute.xlu0 3
  %3778 = vperm.xlu0 %3777, %v2488
  %v3779 = vpop.permute.xlu0 %3778
  %3781 = vset.pattern.permute.xlu0 3
  %3782 = vperm.xlu0 %3781, %v2489
  %v3783 = vpop.permute.xlu0 %3782
  %3785 = vset.pattern.permute.xlu0 3
  %3786 = vperm.xlu0 %3785, %v2490
  %v3787 = vpop.permute.xlu0 %3786
  %3789 = vset.pattern.permute.xlu0 3
  %3790 = vperm.xlu0 %3789, %v2491
  %v3791 = vpop.permute.xlu0 %3790
  %v3793 = vlaneseq
  %v3794 = vshrl.u32 %v3793, 7
  %v3795 = vsub.s32 3, %v3794
  %v3796 = vrot.slane %v2492, %v3795
  %v3797 = vmul.f32 %v3571, %v3796
  %v3798 = vmul.f32 %v3575, %v3796
  %v3799 = vmul.f32 %v3579, %v3796
  %v3800 = vmul.f32 %v3583, %v3796
  %v3801 = vmul.f32 %v3587, %v3796
  %v3802 = vmul.f32 %v3591, %v3796
  %v3803 = vmul.f32 %v3595, %v3796
  %v3804 = vmul.f32 %v3599, %v3796
  %v3805 = vmul.f32 %v3603, %v3796
  %v3806 = vmul.f32 %v3607, %v3796
  %v3807 = vmul.f32 %v3611, %v3796
  %v3808 = vmul.f32 %v3615, %v3796
  %v3809 = vmul.f32 %v3619, %v3796
  %v3810 = vmul.f32 %v3623, %v3796
  %v3811 = vmul.f32 %v3627, %v3796
  %v3812 = vmul.f32 %v3631, %v3796
  %v3813 = vmul.f32 %v3635, %v3796
  %v3814 = vmul.f32 %v3639, %v3796
  %v3815 = vmul.f32 %v3643, %v3796
  %v3816 = vmul.f32 %v3647, %v3796
  %v3817 = vmul.f32 %v3651, %v3796
  %v3818 = vmul.f32 %v3655, %v3796
  %v3819 = vmul.f32 %v3659, %v3796
  %v3820 = vmul.f32 %v3663, %v3796
  %v3821 = vmul.f32 %v3667, %v3796
  %v3822 = vmul.f32 %v3671, %v3796
  %v3823 = vmul.f32 %v3675, %v3796
  %v3824 = vmul.f32 %v3679, %v3796
  %v3825 = vmul.f32 %v3683, %v3796
  %v3826 = vmul.f32 %v3687, %v3796
  %v3827 = vmul.f32 %v3691, %v3796
  %v3828 = vmul.f32 %v3695, %v3796
  %v3829 = vmul.f32 %v3699, %v3796
  %v3830 = vmul.f32 %v3703, %v3796
  %v3831 = vmul.f32 %v3707, %v3796
  %v3832 = vmul.f32 %v3711, %v3796
  %v3833 = vmul.f32 %v3715, %v3796
  %v3834 = vmul.f32 %v3719, %v3796
  %v3835 = vmul.f32 %v3723, %v3796
  %v3836 = vmul.f32 %v3727, %v3796
  %v3837 = vmul.f32 %v3731, %v3796
  %v3838 = vmul.f32 %v3735, %v3796
  %v3839 = vmul.f32 %v3739, %v3796
  %v3840 = vmul.f32 %v3743, %v3796
  %v3841 = vmul.f32 %v3747, %v3796
  %v3842 = vmul.f32 %v3751, %v3796
  %v3843 = vmul.f32 %v3755, %v3796
  %v3844 = vmul.f32 %v3759, %v3796
  %v3845 = vmul.f32 %v3763, %v3796
  %v3846 = vmul.f32 %v3767, %v3796
  %v3847 = vmul.f32 %v3771, %v3796
  %v3848 = vmul.f32 %v3775, %v3796
  %v3849 = vmul.f32 %v3779, %v3796
  %v3850 = vmul.f32 %v3783, %v3796
  %v3851 = vmul.f32 %v3787, %v3796
  %v3852 = vmul.f32 %v3791, %v3796
  %v3853 = vadd.f32 %v3513, %v3797
  %v3854 = vadd.f32 %v3514, %v3798
  %v3855 = vadd.f32 %v3515, %v3799
  %v3856 = vadd.f32 %v3516, %v3800
  %v3857 = vadd.f32 %v3517, %v3801
  %v3858 = vadd.f32 %v3518, %v3802
  %v3859 = vadd.f32 %v3519, %v3803
  %v3860 = vadd.f32 %v3520, %v3804
  %v3861 = vadd.f32 %v3521, %v3805
  %v3862 = vadd.f32 %v3522, %v3806
  %v3863 = vadd.f32 %v3523, %v3807
  %v3864 = vadd.f32 %v3524, %v3808
  %v3865 = vadd.f32 %v3525, %v3809
  %v3866 = vadd.f32 %v3526, %v3810
  %v3867 = vadd.f32 %v3527, %v3811
  %v3868 = vadd.f32 %v3528, %v3812
  %v3869 = vadd.f32 %v3529, %v3813
  %v3870 = vadd.f32 %v3530, %v3814
  %v3871 = vadd.f32 %v3531, %v3815
  %v3872 = vadd.f32 %v3532, %v3816
  %v3873 = vadd.f32 %v3533, %v3817
  %v3874 = vadd.f32 %v3534, %v3818
  %v3875 = vadd.f32 %v3535, %v3819
  %v3876 = vadd.f32 %v3536, %v3820
  %v3877 = vadd.f32 %v3537, %v3821
  %v3878 = vadd.f32 %v3538, %v3822
  %v3879 = vadd.f32 %v3539, %v3823
  %v3880 = vadd.f32 %v3540, %v3824
  %v3881 = vadd.f32 %v3541, %v3825
  %v3882 = vadd.f32 %v3542, %v3826
  %v3883 = vadd.f32 %v3543, %v3827
  %v3884 = vadd.f32 %v3544, %v3828
  %v3885 = vadd.f32 %v3545, %v3829
  %v3886 = vadd.f32 %v3546, %v3830
  %v3887 = vadd.f32 %v3547, %v3831
  %v3888 = vadd.f32 %v3548, %v3832
  %v3889 = vadd.f32 %v3549, %v3833
  %v3890 = vadd.f32 %v3550, %v3834
  %v3891 = vadd.f32 %v3551, %v3835
  %v3892 = vadd.f32 %v3552, %v3836
  %v3893 = vadd.f32 %v3553, %v3837
  %v3894 = vadd.f32 %v3554, %v3838
  %v3895 = vadd.f32 %v3555, %v3839
  %v3896 = vadd.f32 %v3556, %v3840
  %v3897 = vadd.f32 %v3557, %v3841
  %v3898 = vadd.f32 %v3558, %v3842
  %v3899 = vadd.f32 %v3559, %v3843
  %v3900 = vadd.f32 %v3560, %v3844
  %v3901 = vadd.f32 %v3561, %v3845
  %v3902 = vadd.f32 %v3562, %v3846
  %v3903 = vadd.f32 %v3563, %v3847
  %v3904 = vadd.f32 %v3564, %v3848
  %v3905 = vadd.f32 %v3565, %v3849
  %v3906 = vadd.f32 %v3566, %v3850
  %v3907 = vadd.f32 %v3567, %v3851
  %v3908 = vadd.f32 %v3568, %v3852
  %vm3909 = vcmask 64512
  %v3910 = vsel %vm3909, %v3853, 0.0
  %vm3911 = vcmask 62464
  %v3912 = vsel %vm3911, %v3854, 0.0
  %v3913 = vadd.f32 %v3910, %v3912
  %v3914 = vsel %vm3909, %v3855, 0.0
  %v3915 = vadd.f32 %v3913, %v3914
  %v3916 = vsel %vm3911, %v3856, 0.0
  %v3917 = vadd.f32 %v3915, %v3916
  %v3918 = vsel %vm3909, %v3857, 0.0
  %v3919 = vadd.f32 %v3917, %v3918
  %v3920 = vsel %vm3911, %v3858, 0.0
  %v3921 = vadd.f32 %v3919, %v3920
  %v3922 = vsel %vm3909, %v3859, 0.0
  %v3923 = vadd.f32 %v3921, %v3922
  %v3924 = vsel %vm3911, %v3860, 0.0
  %v3925 = vadd.f32 %v3923, %v3924
  %v3926 = vsel %vm3909, %v3861, 0.0
  %v3927 = vadd.f32 %v3925, %v3926
  %v3928 = vsel %vm3911, %v3862, 0.0
  %v3929 = vadd.f32 %v3927, %v3928
  %v3930 = vsel %vm3909, %v3863, 0.0
  %v3931 = vadd.f32 %v3929, %v3930
  %v3932 = vsel %vm3911, %v3864, 0.0
  %v3933 = vadd.f32 %v3931, %v3932
  %v3934 = vsel %vm3909, %v3865, 0.0
  %v3935 = vadd.f32 %v3933, %v3934
  %v3936 = vsel %vm3911, %v3866, 0.0
  %v3937 = vadd.f32 %v3935, %v3936
  %v3938 = vsel %vm3909, %v3867, 0.0
  %v3939 = vadd.f32 %v3937, %v3938
  %v3940 = vsel %vm3911, %v3868, 0.0
  %v3941 = vadd.f32 %v3939, %v3940
  %v3942 = vsel %vm3909, %v3869, 0.0
  %v3943 = vadd.f32 %v3941, %v3942
  %v3944 = vsel %vm3911, %v3870, 0.0
  %v3945 = vadd.f32 %v3943, %v3944
  %v3946 = vsel %vm3909, %v3871, 0.0
  %v3947 = vadd.f32 %v3945, %v3946
  %v3948 = vsel %vm3911, %v3872, 0.0
  %v3949 = vadd.f32 %v3947, %v3948
  %v3950 = vsel %vm3909, %v3873, 0.0
  %v3951 = vadd.f32 %v3949, %v3950
  %v3952 = vsel %vm3911, %v3874, 0.0
  %v3953 = vadd.f32 %v3951, %v3952
  %v3954 = vsel %vm3909, %v3875, 0.0
  %v3955 = vadd.f32 %v3953, %v3954
  %v3956 = vsel %vm3911, %v3876, 0.0
  %v3957 = vadd.f32 %v3955, %v3956
  %v3958 = vsel %vm3909, %v3877, 0.0
  %v3959 = vadd.f32 %v3957, %v3958
  %v3960 = vsel %vm3911, %v3878, 0.0
  %v3961 = vadd.f32 %v3959, %v3960
  %v3962 = vsel %vm3909, %v3879, 0.0
  %v3963 = vadd.f32 %v3961, %v3962
  %v3964 = vsel %vm3911, %v3880, 0.0
  %v3965 = vadd.f32 %v3963, %v3964
  %v3966 = vsel %vm3909, %v3881, 0.0
  %v3967 = vadd.f32 %v3965, %v3966
  %v3968 = vsel %vm3911, %v3882, 0.0
  %v3969 = vadd.f32 %v3967, %v3968
  %v3970 = vsel %vm3909, %v3883, 0.0
  %v3971 = vadd.f32 %v3969, %v3970
  %v3972 = vsel %vm3911, %v3884, 0.0
  %v3973 = vadd.f32 %v3971, %v3972
  %v3974 = vsel %vm3909, %v3885, 0.0
  %v3975 = vadd.f32 %v3973, %v3974
  %v3976 = vsel %vm3911, %v3886, 0.0
  %v3977 = vadd.f32 %v3975, %v3976
  %v3978 = vsel %vm3909, %v3887, 0.0
  %v3979 = vadd.f32 %v3977, %v3978
  %v3980 = vsel %vm3911, %v3888, 0.0
  %v3981 = vadd.f32 %v3979, %v3980
  %v3982 = vsel %vm3909, %v3889, 0.0
  %v3983 = vadd.f32 %v3981, %v3982
  %v3984 = vsel %vm3911, %v3890, 0.0
  %v3985 = vadd.f32 %v3983, %v3984
  %v3986 = vsel %vm3909, %v3891, 0.0
  %v3987 = vadd.f32 %v3985, %v3986
  %v3988 = vsel %vm3911, %v3892, 0.0
  %v3989 = vadd.f32 %v3987, %v3988
  %v3990 = vsel %vm3909, %v3893, 0.0
  %v3991 = vadd.f32 %v3989, %v3990
  %v3992 = vsel %vm3911, %v3894, 0.0
  %v3993 = vadd.f32 %v3991, %v3992
  %v3994 = vsel %vm3909, %v3895, 0.0
  %v3995 = vadd.f32 %v3993, %v3994
  %v3996 = vsel %vm3911, %v3896, 0.0
  %v3997 = vadd.f32 %v3995, %v3996
  %v3998 = vsel %vm3909, %v3897, 0.0
  %v3999 = vadd.f32 %v3997, %v3998
  %v4000 = vsel %vm3911, %v3898, 0.0
  %v4001 = vadd.f32 %v3999, %v4000
  %v4002 = vsel %vm3909, %v3899, 0.0
  %v4003 = vadd.f32 %v4001, %v4002
  %v4004 = vsel %vm3911, %v3900, 0.0
  %v4005 = vadd.f32 %v4003, %v4004
  %v4006 = vsel %vm3909, %v3901, 0.0
  %v4007 = vadd.f32 %v4005, %v4006
  %v4008 = vsel %vm3911, %v3902, 0.0
  %v4009 = vadd.f32 %v4007, %v4008
  %v4010 = vsel %vm3909, %v3903, 0.0
  %v4011 = vadd.f32 %v4009, %v4010
  %v4012 = vsel %vm3911, %v3904, 0.0
  %v4013 = vadd.f32 %v4011, %v4012
  %v4014 = vsel %vm3909, %v3905, 0.0
  %v4015 = vadd.f32 %v4013, %v4014
  %v4016 = vsel %vm3911, %v3906, 0.0
  %v4017 = vadd.f32 %v4015, %v4016
  %v4018 = vsel %vm3909, %v3907, 0.0
  %v4019 = vadd.f32 %v4017, %v4018
  %v4020 = vsel %vm3911, %v3908, 0.0
  %v4021 = vadd.f32 %v4019, %v4020
  %v4022 = vrot.slane %v4021, 4
  %v4023 = vadd.f32 %v4021, %v4022
  %v4024 = vrot.slane %v4023, 2
  %v4025 = vadd.f32 %v4023, %v4024
  %v4026 = vrot.slane %v4025, 1
  %v4027 = vadd.f32 %v4025, %v4026
  %v4028 = vmul.f32 %v4027, 0.0025510204
  %v4029 = vsub.f32 %v3853, %v4028
  %v4030 = vsub.f32 %v3854, %v4028
  %v4031 = vsub.f32 %v3855, %v4028
  %v4032 = vsub.f32 %v3856, %v4028
  %v4033 = vsub.f32 %v3857, %v4028
  %v4034 = vsub.f32 %v3858, %v4028
  %v4035 = vsub.f32 %v3859, %v4028
  %v4036 = vsub.f32 %v3860, %v4028
  %v4037 = vsub.f32 %v3861, %v4028
  %v4038 = vsub.f32 %v3862, %v4028
  %v4039 = vsub.f32 %v3863, %v4028
  %v4040 = vsub.f32 %v3864, %v4028
  %v4041 = vsub.f32 %v3865, %v4028
  %v4042 = vsub.f32 %v3866, %v4028
  %v4043 = vsub.f32 %v3867, %v4028
  %v4044 = vsub.f32 %v3868, %v4028
  %v4045 = vsub.f32 %v3869, %v4028
  %v4046 = vsub.f32 %v3870, %v4028
  %v4047 = vsub.f32 %v3871, %v4028
  %v4048 = vsub.f32 %v3872, %v4028
  %v4049 = vsub.f32 %v3873, %v4028
  %v4050 = vsub.f32 %v3874, %v4028
  %v4051 = vsub.f32 %v3875, %v4028
  %v4052 = vsub.f32 %v3876, %v4028
  %v4053 = vsub.f32 %v3877, %v4028
  %v4054 = vsub.f32 %v3878, %v4028
  %v4055 = vsub.f32 %v3879, %v4028
  %v4056 = vsub.f32 %v3880, %v4028
  %v4057 = vsub.f32 %v3881, %v4028
  %v4058 = vsub.f32 %v3882, %v4028
  %v4059 = vsub.f32 %v3883, %v4028
  %v4060 = vsub.f32 %v3884, %v4028
  %v4061 = vsub.f32 %v3885, %v4028
  %v4062 = vsub.f32 %v3886, %v4028
  %v4063 = vsub.f32 %v3887, %v4028
  %v4064 = vsub.f32 %v3888, %v4028
  %v4065 = vsub.f32 %v3889, %v4028
  %v4066 = vsub.f32 %v3890, %v4028
  %v4067 = vsub.f32 %v3891, %v4028
  %v4068 = vsub.f32 %v3892, %v4028
  %v4069 = vsub.f32 %v3893, %v4028
  %v4070 = vsub.f32 %v3894, %v4028
  %v4071 = vsub.f32 %v3895, %v4028
  %v4072 = vsub.f32 %v3896, %v4028
  %v4073 = vsub.f32 %v3897, %v4028
  %v4074 = vsub.f32 %v3898, %v4028
  %v4075 = vsub.f32 %v3899, %v4028
  %v4076 = vsub.f32 %v3900, %v4028
  %v4077 = vsub.f32 %v3901, %v4028
  %v4078 = vsub.f32 %v3902, %v4028
  %v4079 = vsub.f32 %v3903, %v4028
  %v4080 = vsub.f32 %v3904, %v4028
  %v4081 = vsub.f32 %v3905, %v4028
  %v4082 = vsub.f32 %v3906, %v4028
  %v4083 = vsub.f32 %v3907, %v4028
  %v4084 = vsub.f32 %v3908, %v4028
  %v4085 = vmul.f32 %v4029, %v4029
  %v4086 = vmul.f32 %v4030, %v4030
  %v4087 = vmul.f32 %v4031, %v4031
  %v4088 = vmul.f32 %v4032, %v4032
  %v4089 = vmul.f32 %v4033, %v4033
  %v4090 = vmul.f32 %v4034, %v4034
  %v4091 = vmul.f32 %v4035, %v4035
  %v4092 = vmul.f32 %v4036, %v4036
  %v4093 = vmul.f32 %v4037, %v4037
  %v4094 = vmul.f32 %v4038, %v4038
  %v4095 = vmul.f32 %v4039, %v4039
  %v4096 = vmul.f32 %v4040, %v4040
  %v4097 = vmul.f32 %v4041, %v4041
  %v4098 = vmul.f32 %v4042, %v4042
  %v4099 = vmul.f32 %v4043, %v4043
  %v4100 = vmul.f32 %v4044, %v4044
  %v4101 = vmul.f32 %v4045, %v4045
  %v4102 = vmul.f32 %v4046, %v4046
  %v4103 = vmul.f32 %v4047, %v4047
  %v4104 = vmul.f32 %v4048, %v4048
  %v4105 = vmul.f32 %v4049, %v4049
  %v4106 = vmul.f32 %v4050, %v4050
  %v4107 = vmul.f32 %v4051, %v4051
  %v4108 = vmul.f32 %v4052, %v4052
  %v4109 = vmul.f32 %v4053, %v4053
  %v4110 = vmul.f32 %v4054, %v4054
  %v4111 = vmul.f32 %v4055, %v4055
  %v4112 = vmul.f32 %v4056, %v4056
  %v4113 = vmul.f32 %v4057, %v4057
  %v4114 = vmul.f32 %v4058, %v4058
  %v4115 = vmul.f32 %v4059, %v4059
  %v4116 = vmul.f32 %v4060, %v4060
  %v4117 = vmul.f32 %v4061, %v4061
  %v4118 = vmul.f32 %v4062, %v4062
  %v4119 = vmul.f32 %v4063, %v4063
  %v4120 = vmul.f32 %v4064, %v4064
  %v4121 = vmul.f32 %v4065, %v4065
  %v4122 = vmul.f32 %v4066, %v4066
  %v4123 = vmul.f32 %v4067, %v4067
  %v4124 = vmul.f32 %v4068, %v4068
  %v4125 = vmul.f32 %v4069, %v4069
  %v4126 = vmul.f32 %v4070, %v4070
  %v4127 = vmul.f32 %v4071, %v4071
  %v4128 = vmul.f32 %v4072, %v4072
  %v4129 = vmul.f32 %v4073, %v4073
  %v4130 = vmul.f32 %v4074, %v4074
  %v4131 = vmul.f32 %v4075, %v4075
  %v4132 = vmul.f32 %v4076, %v4076
  %v4133 = vmul.f32 %v4077, %v4077
  %v4134 = vmul.f32 %v4078, %v4078
  %v4135 = vmul.f32 %v4079, %v4079
  %v4136 = vmul.f32 %v4080, %v4080
  %v4137 = vmul.f32 %v4081, %v4081
  %v4138 = vmul.f32 %v4082, %v4082
  %v4139 = vmul.f32 %v4083, %v4083
  %v4140 = vmul.f32 %v4084, %v4084
  %v4141 = vsel %vm3909, %v4085, 0.0
  %v4142 = vsel %vm3911, %v4086, 0.0
  %v4143 = vadd.f32 %v4141, %v4142
  %v4144 = vsel %vm3909, %v4087, 0.0
  %v4145 = vadd.f32 %v4143, %v4144
  %v4146 = vsel %vm3911, %v4088, 0.0
  %v4147 = vadd.f32 %v4145, %v4146
  %v4148 = vsel %vm3909, %v4089, 0.0
  %v4149 = vadd.f32 %v4147, %v4148
  %v4150 = vsel %vm3911, %v4090, 0.0
  %v4151 = vadd.f32 %v4149, %v4150
  %v4152 = vsel %vm3909, %v4091, 0.0
  %v4153 = vadd.f32 %v4151, %v4152
  %v4154 = vsel %vm3911, %v4092, 0.0
  %v4155 = vadd.f32 %v4153, %v4154
  %v4156 = vsel %vm3909, %v4093, 0.0
  %v4157 = vadd.f32 %v4155, %v4156
  %v4158 = vsel %vm3911, %v4094, 0.0
  %v4159 = vadd.f32 %v4157, %v4158
  %v4160 = vsel %vm3909, %v4095, 0.0
  %v4161 = vadd.f32 %v4159, %v4160
  %v4162 = vsel %vm3911, %v4096, 0.0
  %v4163 = vadd.f32 %v4161, %v4162
  %v4164 = vsel %vm3909, %v4097, 0.0
  %v4165 = vadd.f32 %v4163, %v4164
  %v4166 = vsel %vm3911, %v4098, 0.0
  %v4167 = vadd.f32 %v4165, %v4166
  %v4168 = vsel %vm3909, %v4099, 0.0
  %v4169 = vadd.f32 %v4167, %v4168
  %v4170 = vsel %vm3911, %v4100, 0.0
  %v4171 = vadd.f32 %v4169, %v4170
  %v4172 = vsel %vm3909, %v4101, 0.0
  %v4173 = vadd.f32 %v4171, %v4172
  %v4174 = vsel %vm3911, %v4102, 0.0
  %v4175 = vadd.f32 %v4173, %v4174
  %v4176 = vsel %vm3909, %v4103, 0.0
  %v4177 = vadd.f32 %v4175, %v4176
  %v4178 = vsel %vm3911, %v4104, 0.0
  %v4179 = vadd.f32 %v4177, %v4178
  %v4180 = vsel %vm3909, %v4105, 0.0
  %v4181 = vadd.f32 %v4179, %v4180
  %v4182 = vsel %vm3911, %v4106, 0.0
  %v4183 = vadd.f32 %v4181, %v4182
  %v4184 = vsel %vm3909, %v4107, 0.0
  %v4185 = vadd.f32 %v4183, %v4184
  %v4186 = vsel %vm3911, %v4108, 0.0
  %v4187 = vadd.f32 %v4185, %v4186
  %v4188 = vsel %vm3909, %v4109, 0.0
  %v4189 = vadd.f32 %v4187, %v4188
  %v4190 = vsel %vm3911, %v4110, 0.0
  %v4191 = vadd.f32 %v4189, %v4190
  %v4192 = vsel %vm3909, %v4111, 0.0
  %v4193 = vadd.f32 %v4191, %v4192
  %v4194 = vsel %vm3911, %v4112, 0.0
  %v4195 = vadd.f32 %v4193, %v4194
  %v4196 = vsel %vm3909, %v4113, 0.0
  %v4197 = vadd.f32 %v4195, %v4196
  %v4198 = vsel %vm3911, %v4114, 0.0
  %v4199 = vadd.f32 %v4197, %v4198
  %v4200 = vsel %vm3909, %v4115, 0.0
  %v4201 = vadd.f32 %v4199, %v4200
  %v4202 = vsel %vm3911, %v4116, 0.0
  %v4203 = vadd.f32 %v4201, %v4202
  %v4204 = vsel %vm3909, %v4117, 0.0
  %v4205 = vadd.f32 %v4203, %v4204
  %v4206 = vsel %vm3911, %v4118, 0.0
  %v4207 = vadd.f32 %v4205, %v4206
  %v4208 = vsel %vm3909, %v4119, 0.0
  %v4209 = vadd.f32 %v4207, %v4208
  %v4210 = vsel %vm3911, %v4120, 0.0
  %v4211 = vadd.f32 %v4209, %v4210
  %v4212 = vsel %vm3909, %v4121, 0.0
  %v4213 = vadd.f32 %v4211, %v4212
  %v4214 = vsel %vm3911, %v4122, 0.0
  %v4215 = vadd.f32 %v4213, %v4214
  %v4216 = vsel %vm3909, %v4123, 0.0
  %v4217 = vadd.f32 %v4215, %v4216
  %v4218 = vsel %vm3911, %v4124, 0.0
  %v4219 = vadd.f32 %v4217, %v4218
  %v4220 = vsel %vm3909, %v4125, 0.0
  %v4221 = vadd.f32 %v4219, %v4220
  %v4222 = vsel %vm3911, %v4126, 0.0
  %v4223 = vadd.f32 %v4221, %v4222
  %v4224 = vsel %vm3909, %v4127, 0.0
  %v4225 = vadd.f32 %v4223, %v4224
  %v4226 = vsel %vm3911, %v4128, 0.0
  %v4227 = vadd.f32 %v4225, %v4226
  %v4228 = vsel %vm3909, %v4129, 0.0
  %v4229 = vadd.f32 %v4227, %v4228
  %v4230 = vsel %vm3911, %v4130, 0.0
  %v4231 = vadd.f32 %v4229, %v4230
  %v4232 = vsel %vm3909, %v4131, 0.0
  %v4233 = vadd.f32 %v4231, %v4232
  %v4234 = vsel %vm3911, %v4132, 0.0
  %v4235 = vadd.f32 %v4233, %v4234
  %v4236 = vsel %vm3909, %v4133, 0.0
  %v4237 = vadd.f32 %v4235, %v4236
  %v4238 = vsel %vm3911, %v4134, 0.0
  %v4239 = vadd.f32 %v4237, %v4238
  %v4240 = vsel %vm3909, %v4135, 0.0
  %v4241 = vadd.f32 %v4239, %v4240
  %v4242 = vsel %vm3911, %v4136, 0.0
  %v4243 = vadd.f32 %v4241, %v4242
  %v4244 = vsel %vm3909, %v4137, 0.0
  %v4245 = vadd.f32 %v4243, %v4244
  %v4246 = vsel %vm3911, %v4138, 0.0
  %v4247 = vadd.f32 %v4245, %v4246
  %v4248 = vsel %vm3909, %v4139, 0.0
  %v4249 = vadd.f32 %v4247, %v4248
  %v4250 = vsel %vm3911, %v4140, 0.0
  %v4251 = vadd.f32 %v4249, %v4250
  %v4252 = vrot.slane %v4251, 4
  %v4253 = vadd.f32 %v4251, %v4252
  %v4254 = vrot.slane %v4253, 2
  %v4255 = vadd.f32 %v4253, %v4254
  %v4256 = vrot.slane %v4255, 1
  %v4257 = vadd.f32 %v4255, %v4256
  %vm4258 = vcmask 1040384
  %v4259 = vsel %vm4258, %v4027, %v4257
  %vm4260 = vcmask 58368
  %4261 = vst.msk [vmem:[%s6] sm:$0x3] %vm4260, %v4259
  %4262 = vst.msk [vmem:[%s5] sm:$0xff] %vm3909, %v3853
  %4263 = vst.msk [vmem:[%s5 + $0x8] sm:$0x3f] %vm3911, %v3854
  %4264 = vst.msk [vmem:[%s5 + $0x10] sm:$0xff] %vm3909, %v3855
  %4265 = vst.msk [vmem:[%s5 + $0x18] sm:$0x3f] %vm3911, %v3856
  %4266 = vst.msk [vmem:[%s5 + $0x20] sm:$0xff] %vm3909, %v3857
  %4267 = vst.msk [vmem:[%s5 + $0x28] sm:$0x3f] %vm3911, %v3858
  %4268 = vst.msk [vmem:[%s5 + $0x30] sm:$0xff] %vm3909, %v3859
  %4269 = vst.msk [vmem:[%s5 + $0x38] sm:$0x3f] %vm3911, %v3860
  %4270 = vst.msk [vmem:[%s5 + $0x40] sm:$0xff] %vm3909, %v3861
  %4271 = vst.msk [vmem:[%s5 + $0x48] sm:$0x3f] %vm3911, %v3862
  %4272 = vst.msk [vmem:[%s5 + $0x50] sm:$0xff] %vm3909, %v3863
  %4273 = vst.msk [vmem:[%s5 + $0x58] sm:$0x3f] %vm3911, %v3864
  %4274 = vst.msk [vmem:[%s5 + $0x60] sm:$0xff] %vm3909, %v3865
  %4275 = vst.msk [vmem:[%s5 + $0x68] sm:$0x3f] %vm3911, %v3866
  %4276 = vst.msk [vmem:[%s5 + $0x70] sm:$0xff] %vm3909, %v3867
  %4277 = vst.msk [vmem:[%s5 + $0x78] sm:$0x3f] %vm3911, %v3868
  %4278 = vst.msk [vmem:[%s5 + $0x80] sm:$0xff] %vm3909, %v3869
  %4279 = vst.msk [vmem:[%s5 + $0x88] sm:$0x3f] %vm3911, %v3870
  %4280 = vst.msk [vmem:[%s5 + $0x90] sm:$0xff] %vm3909, %v3871
  %4281 = vst.msk [vmem:[%s5 + $0x98] sm:$0x3f] %vm3911, %v3872
  %4282 = vst.msk [vmem:[%s5 + $0xa0] sm:$0xff] %vm3909, %v3873
  %4283 = vst.msk [vmem:[%s5 + $0xa8] sm:$0x3f] %vm3911, %v3874
  %4284 = vst.msk [vmem:[%s5 + $0xb0] sm:$0xff] %vm3909, %v3875
  %4285 = vst.msk [vmem:[%s5 + $0xb8] sm:$0x3f] %vm3911, %v3876
  %4286 = vst.msk [vmem:[%s5 + $0xc0] sm:$0xff] %vm3909, %v3877
  %4287 = vst.msk [vmem:[%s5 + $0xc8] sm:$0x3f] %vm3911, %v3878
  %4288 = vst.msk [vmem:[%s5 + $0xd0] sm:$0xff] %vm3909, %v3879
  %4289 = vst.msk [vmem:[%s5 + $0xd8] sm:$0x3f] %vm3911, %v3880
  %4290 = vst.msk [vmem:[%s5 + $0xe0] sm:$0xff] %vm3909, %v3881
  %4291 = vst.msk [vmem:[%s5 + $0xe8] sm:$0x3f] %vm3911, %v3882
  %4292 = vst.msk [vmem:[%s5 + $0xf0] sm:$0xff] %vm3909, %v3883
  %4293 = vst.msk [vmem:[%s5 + $0xf8] sm:$0x3f] %vm3911, %v3884
  %4294 = vst.msk [vmem:[%s5 + $0x100] sm:$0xff] %vm3909, %v3885
  %4295 = vst.msk [vmem:[%s5 + $0x108] sm:$0x3f] %vm3911, %v3886
  %4296 = vst.msk [vmem:[%s5 + $0x110] sm:$0xff] %vm3909, %v3887
  %4297 = vst.msk [vmem:[%s5 + $0x118] sm:$0x3f] %vm3911, %v3888
  %4298 = vst.msk [vmem:[%s5 + $0x120] sm:$0xff] %vm3909, %v3889
  %4299 = vst.msk [vmem:[%s5 + $0x128] sm:$0x3f] %vm3911, %v3890
  %4300 = vst.msk [vmem:[%s5 + $0x130] sm:$0xff] %vm3909, %v3891
  %4301 = vst.msk [vmem:[%s5 + $0x138] sm:$0x3f] %vm3911, %v3892
  %4302 = vst.msk [vmem:[%s5 + $0x140] sm:$0xff] %vm3909, %v3893
  %4303 = vst.msk [vmem:[%s5 + $0x148] sm:$0x3f] %vm3911, %v3894
  %4304 = vst.msk [vmem:[%s5 + $0x150] sm:$0xff] %vm3909, %v3895
  %4305 = vst.msk [vmem:[%s5 + $0x158] sm:$0x3f] %vm3911, %v3896
  %4306 = vst.msk [vmem:[%s5 + $0x160] sm:$0xff] %vm3909, %v3897
  %4307 = vst.msk [vmem:[%s5 + $0x168] sm:$0x3f] %vm3911, %v3898
  %4308 = vst.msk [vmem:[%s5 + $0x170] sm:$0xff] %vm3909, %v3899
  %4309 = vst.msk [vmem:[%s5 + $0x178] sm:$0x3f] %vm3911, %v3900
  %4310 = vst.msk [vmem:[%s5 + $0x180] sm:$0xff] %vm3909, %v3901
  %4311 = vst.msk [vmem:[%s5 + $0x188] sm:$0x3f] %vm3911, %v3902
  %4312 = vst.msk [vmem:[%s5 + $0x190] sm:$0xff] %vm3909, %v3903
  %4313 = vst.msk [vmem:[%s5 + $0x198] sm:$0x3f] %vm3911, %v3904
  %4314 = vst.msk [vmem:[%s5 + $0x1a0] sm:$0xff] %vm3909, %v3905
  %4315 = vst.msk [vmem:[%s5 + $0x1a8] sm:$0x3f] %vm3911, %v3906
  %4316 = vst.msk [vmem:[%s5 + $0x1b0] sm:$0xff] %vm3909, %v3907
  %4317 = vst.msk [vmem:[%s5 + $0x1b8] sm:$0x3f] %vm3911, %v3908
  // Predicated region
  $region22: #{depthwise_pointwise_forward.4} parent=0 // pred_check
    _
  $region23: #{depthwise_pointwise_forward.4} parent=0 // pred_check_branch
    %4319 = sbr.rel (0) target = $region25
  $region24: #{depthwise_pointwise_forward.4} parent=0 // pred_region
    _
  $region25: #{depthwise_pointwise_forward.4} parent=0 // pred_fallthru
    _
  // Predicated region
  $region26: #{depthwise_pointwise_forward.4} parent=0 // pred_check
    _
  $region27: #{depthwise_pointwise_forward.4} parent=0 // pred_check_branch
    %4321 = sbr.rel (0) target = $region29
  $region28: #{depthwise_pointwise_forward.4} parent=0 // pred_region
    _
  $region29: #{depthwise_pointwise_forward.4} parent=0 // pred_fallthru
    _
  // Predicated region
  $region30: #{depthwise_pointwise_forward.4} parent=0 // pred_check
    _
  $region31: #{depthwise_pointwise_forward.4} parent=0 // pred_check_branch
    %4323 = sbr.rel (0) target = $region33
  $region32: #{depthwise_pointwise_forward.4} parent=0 // pred_region
    _
  $region33: #{depthwise_pointwise_forward.4} parent=0 // pred_fallthru
    _
  // Predicated region
  $region34: #{depthwise_pointwise_forward.4} parent=0 // pred_check
    _
  $region35: #{depthwise_pointwise_forward.4} parent=0 // pred_check_branch
    %4325 = sbr.rel (0) target = $region37
  $region36: #{depthwise_pointwise_forward.4} parent=0 // pred_region
    _
  $region37: #{depthwise_pointwise_forward.4} parent=0 // pred_fallthru
    _

</llo_original>
